<compile_context>
chip_gen: v7x
topology: tpu7x:2x2x1
jax: 0.10.0
libtpu: 0.0.40
codegen_flags: <defaults>
</compile_context>

<pallas_src>
import functools

import jax
import jax.numpy as jnp
import numpy as np
from jax import lax
from jax.experimental import pallas as pl
from jax.experimental.pallas import tpu as pltpu

_UNROLL_T_MAX = 16   # fully unroll the recurrence up to this many timesteps
_SUBLANE = 8
_LANE = 128


def _round_up(n, m):
    return ((n + m - 1) // m) * m


# ----------------------------- kernel -----------------------------

def _bilstm_kernel(x_ref, wih_ref, whh_ref, b_ref, out_ref, xw_ref, *, T, B):
    """Fused bidirectional LSTM recurrence.

    x_ref:   (T*B, 2F)   row block t = [x_t | x_{T-1-t}]  (bf16)
    wih_ref: (2F, 8H)    block-structured input->gates; rows 0:F drive forward gate columns,
                         rows F:2F drive backward gate columns (bf16). Gate columns are
                         interleaved [i_f,i_b,f_f,f_b,g_f,g_b,o_f,o_b], each H wide.
    whh_ref: (2H, 8H)    block-diagonal recurrent weights, rows ordered [h_fwd | h_bwd] (bf16)
    b_ref:   (1, 8H)     fused bias b_ih + b_hh, same interleaved layout (f32)
    out_ref: (T*B, 2H)   per-timestep [h_forward | h_backward] (f32)
    xw_ref:  (T*B, 8H)   VMEM scratch, hoisted direction-mixed input projection (f32)
    """
    Hp2 = whh_ref.shape[0]          # 2H (padded)
    Hp = Hp2 // 2

    # (1) Hoisted, already direction-mixed input projection: one big lane-dense bf16 matmul
    #     off the serial dependency chain. Bias add in fp32.
    xw_ref[...] = (
        jnp.dot(x_ref[...], wih_ref[...], preferred_element_type=jnp.float32)
        + b_ref[...]
    )

    whh = whh_ref[...]              # bf16, resident for the whole recurrence

    # Fused hidden / cell state [forward | backward]; PyTorch zero init. Kept fp32.
    h = jnp.zeros((B, Hp2), jnp.float32)
    c = jnp.zeros((B, Hp2), jnp.float32)

    def step(off_t, off_rt, h, c):
        # --- serial critical path: one bf16 MXU matmul + gate elementwise ---
        rec = jnp.dot(h.astype(jnp.bfloat16), whh, preferred_element_type=jnp.float32)
        gates = rec + xw_ref[pl.ds(off_t, B), :]            # (B, 8H), no per-step select
        # Interleaved gate layout [i | f | g | o], each 2H wide = [fwd H | bwd H].
        # Only the g block needs tanh; i/f/o need sigmoid -> 10H transcendental lanes/step.
        i_g = jax.nn.sigmoid(gates[:, 0 * Hp2:1 * Hp2])
        f_g = jax.nn.sigmoid(gates[:, 1 * Hp2:2 * Hp2])
        g_g = jnp.tanh(gates[:, 2 * Hp2:3 * Hp2])
        o_g = jax.nn.sigmoid(gates[:, 3 * Hp2:4 * Hp2])
        c = f_g * c + i_g * g_g
        h = o_g * jnp.tanh(c)
        # Forward half belongs to timestep t, backward half to timestep T-1-t.
        out_ref[pl.ds(off_t, B), 0:Hp] = h[:, 0:Hp]
        out_ref[pl.ds(off_rt, B), Hp:Hp2] = h[:, Hp:Hp2]
        return h, c

    if T <= _UNROLL_T_MAX:
        # Static unroll: full LLO scheduling visibility across steps.
        for t in range(T):
            h, c = step(t * B, (T - 1 - t) * B, h, c)
    else:
        # Large T: modest unroll caps vreg pressure & compile time.
        def body(t, carry):
            h, c = carry
            off_t = pl.multiple_of(t * B, B)            # B is a multiple of 8 (padded)
            off_rt = pl.multiple_of((T - 1 - t) * B, B)
            return step(off_t, off_rt, h, c)

        h, c = lax.fori_loop(0, T, body, (h, c), unroll=4)


# ----------------------------- wrapper -----------------------------

@functools.partial(jax.jit, static_argnames=("hidden_size",))
def rnn_sequential_encoder(x, packed_params, hidden_size):
    """x: (seq, batch, feature) -> (seq, batch, 2*hidden_size)."""
    T, B, F = x.shape
    H = hidden_size
    wih2, whh_bd, b_cat = packed_params
    Hp = whh_bd.shape[0] // 2                     # padded hidden (multiple of 128)
    Bp = _round_up(B, _SUBLANE)                   # padded batch  (multiple of 8)

    # Sublane-dense batch padding + time-reversed feature concat so the kernel's single
    # projection matmul directly produces the direction-mixed gate buffer.
    xp = jnp.pad(x, ((0, 0), (0, Bp - B), (0, 0)))
    x_cat = jnp.concatenate([xp, xp[::-1]], axis=-1)                 # (T, Bp, 2F)
    x2d = x_cat.reshape(T * Bp, 2 * F).astype(jnp.bfloat16)

    # Explicit VMEM budget (defaults are 16/32 MiB scoped, far below physical).
    bytes_resident = (
        T * Bp * 2 * F * 2          # x_cat (bf16)
        + 2 * F * 8 * Hp * 2        # W_ih  (bf16)
        + 2 * Hp * 8 * Hp * 2       # W_hh  (bf16)
        + 8 * Hp * 4                # bias  (f32)
        + T * Bp * 2 * Hp * 4       # out   (f32)
        + T * Bp * 8 * Hp * 4       # xw scratch (f32)
    )
    vmem_limit = min(int(bytes_resident * 1.5) + (4 << 20), 100 << 20)

    out2d = pl.pallas_call(
        functools.partial(_bilstm_kernel, T=T, B=Bp),
        out_shape=jax.ShapeDtypeStruct((T * Bp, 2 * Hp), jnp.float32),
        in_specs=[pl.BlockSpec(memory_space=pltpu.MemorySpace.VMEM)] * 4,
        out_specs=pl.BlockSpec(memory_space=pltpu.MemorySpace.VMEM),
        scratch_shapes=[pltpu.VMEM((T * Bp, 8 * Hp), jnp.float32)],
        compiler_params=pltpu.CompilerParams(vmem_limit_bytes=vmem_limit),
    )(x2d, wih2, whh_bd, b_cat)

    out3 = out2d.reshape(T, Bp, 2 * Hp)
    # Strip batch / hidden padding; concatenate [forward | backward] real units.
    return jnp.concatenate([out3[:, :B, 0:H], out3[:, :B, Hp:Hp + H]], axis=-1)


# ----------------------------- parameter prep -----------------------------

def init_torch_params(key, feature_size, hidden_size):
    """PyTorch nn.LSTM-style init: U(-1/sqrt(H), 1/sqrt(H)) for every parameter."""
    H = hidden_size
    bound = 1.0 / np.sqrt(H)
    ks = jax.random.split(key, 8)

    def u(k, shape):
        return jax.random.uniform(k, shape, jnp.float32, -bound, bound)

    return dict(
        w_ih_f=u(ks[0], (4 * H, feature_size)), w_hh_f=u(ks[1], (4 * H, H)),
        b_ih_f=u(ks[2], (4 * H,)), b_hh_f=u(ks[3], (4 * H,)),
        w_ih_b=u(ks[4], (4 * H, feature_size)), w_hh_b=u(ks[5], (4 * H, H)),
        b_ih_b=u(ks[6], (4 * H,)), b_hh_b=u(ks[7], (4 * H,)),
    )


def pack_params(p, hidden_size):
    """Build the fused kernel layout from PyTorch-style per-direction LSTM parameters.

    Gate columns are padded to Hp = round_up(H, 128) (padded units are inert: zero weights
    and bias -> their g gate is tanh(0)=0 -> c, h stay 0 forever) and interleaved per gate
    as [a_i, b_i, a_f, b_f, a_g, b_g, a_o, b_o].
    """
    H = hidden_size
    Hp = _round_up(H, _LANE)

    def pad_gate_cols(w):                 # (rows, 4H) -> (rows, 4Hp), zero-padded per gate
        rows = w.shape[0]
        w4 = w.reshape(rows, 4, H)
        w4 = jnp.pad(w4, ((0, 0), (0, 0), (0, Hp - H)))
        return w4.reshape(rows, 4 * Hp)

    def interleave(a, b):                 # (rows,4Hp),(rows,4Hp) -> (rows,8Hp)
        rows = a.shape[0]
        return jnp.stack(
            [a.reshape(rows, 4, Hp), b.reshape(rows, 4, Hp)], axis=2
        ).reshape(rows, 8 * Hp)

    # Input->gates, block-structured for the [x_t | x_{T-1-t}] concat input:
    #   rows 0:F  -> forward gate columns only; rows F:2F -> backward gate columns only.
    wih_f = pad_gate_cols(p["w_ih_f"].T)                     # (F, 4Hp)
    wih_b = pad_gate_cols(p["w_ih_b"].T)                     # (F, 4Hp)
    zF = jnp.zeros_like(wih_f)
    wih2 = jnp.concatenate([interleave(wih_f, zF),
                            interleave(zF, wih_b)], axis=0)  # (2F, 8Hp)

    # Recurrent weights, block-diagonal over directions (rows ordered [h_fwd | h_bwd]).
    def pad_hh(w):                        # (H, 4H) -> (Hp, 4Hp)
        w = pad_gate_cols(w)
        return jnp.pad(w, ((0, Hp - H), (0, 0)))

    whh_f = pad_hh(p["w_hh_f"].T)
    whh_b = pad_hh(p["w_hh_b"].T)
    zH = jnp.zeros_like(whh_f)
    whh_bd = jnp.concatenate([interleave(whh_f, zH),
                              interleave(zH, whh_b)], axis=0)            # (2Hp, 8Hp)

    b_f = pad_gate_cols((p["b_ih_f"] + p["b_hh_f"])[None, :])            # (1, 4Hp)
    b_b = pad_gate_cols((p["b_ih_b"] + p["b_hh_b"])[None, :])
    b_cat = interleave(b_f, b_b)                                         # (1, 8Hp)

    return (wih2.astype(jnp.bfloat16),
            whh_bd.astype(jnp.bfloat16),
            b_cat.astype(jnp.float32))


# ----------------------------- pure-JAX reference -----------------------------

def _lstm_ref_dir(x, wih_t, whh_t, b, reverse):
    """Reference for one LSTM direction (time-major x), PyTorch gate order [i,f,g,o]."""
    T, B, F = x.shape
    H = whh_t.shape[0]

    def step(carry, x_t):
        h, c = carry
        gates = x_t @ wih_t + h @ whh_t + b
        i = jax.nn.sigmoid(gates[:, :H])
        f = jax.nn.sigmoid(gates[:, H:2 * H])
        g = jnp.tanh(gates[:, 2 * H:3 * H])
        o = jax.nn.sigmoid(gates[:, 3 * H:])
        c = f * c + i * g
        h = o * jnp.tanh(c)
        return (h, c), h

    xs = x[::-1] if reverse else x
    init = (jnp.zeros((B, H), jnp.float32), jnp.zeros((B, H), jnp.float32))
    _, hs = lax.scan(step, init, xs)
    return hs[::-1] if reverse else hs


def _reference(x, p):
    ref_f = _lstm_ref_dir(x, p["w_ih_f"].T, p["w_hh_f"].T,
                          (p["b_ih_f"] + p["b_hh_f"])[None, :], reverse=False)
    ref_b = _lstm_ref_dir(x, p["w_ih_b"].T, p["w_hh_b"].T,
                          (p["b_ih_b"] + p["b_hh_b"])[None, :], reverse=True)
    return jnp.concatenate([ref_f, ref_b], axis=-1)


if __name__ == "__main__":
    # Small shapes consistent with the module: seq=8, batch=4, feature=16, hidden=32.
    SEQ, BATCH, FEAT, HID = 8, 4, 16, 32

    key = jax.random.PRNGKey(0)
    k_x, k_p, k_x2 = jax.random.split(key, 3)

    raw = init_torch_params(k_p, FEAT, HID)
    packed = pack_params(raw, HID)

    # (1) small-T path (fully unrolled recurrence)
    x = jax.random.normal(k_x, (SEQ, BATCH, FEAT), jnp.float32)     # (seq, batch, feature)
    out = jax.block_until_ready(rnn_sequential_encoder(x, packed, HID))
    assert out.shape == (SEQ, BATCH, 2 * HID), out.shape
    ref = _reference(x, raw)
    # bf16 matmul operands -> loosened tolerances (fp32 reference), per perf review.
    np.testing.assert_allclose(np.asarray(out), np.asarray(ref), rtol=5e-2, atol=5e-2)

    # (2) longer sequence exercises the lax.fori_loop recurrence path
    SEQ2 = 40
    x2 = jax.random.normal(k_x2, (SEQ2, BATCH, FEAT), jnp.float32)
    out2 = jax.block_until_ready(rnn_sequential_encoder(x2, packed, HID))
    assert out2.shape == (SEQ2, BATCH, 2 * HID), out2.shape
    ref2 = _reference(x2, raw)
    np.testing.assert_allclose(np.asarray(out2), np.asarray(ref2), rtol=5e-2, atol=5e-2)

    print("KERNEL_OK")
</pallas_src>

<mosaic_0001>
module attributes {stable_mosaic.version = 11 : i64} {
  func.func @_bilstm_kernel(%arg0: memref<64x32xbf16, #tpu.memory_space<vmem>>, %arg1: memref<32x1024xbf16, #tpu.memory_space<vmem>>, %arg2: memref<256x1024xbf16, #tpu.memory_space<vmem>>, %arg3: memref<1x1024xf32, #tpu.memory_space<vmem>>, %arg4: memref<64x256xf32, #tpu.memory_space<vmem>>, %arg5: memref<64x1024xf32, #tpu.memory_space<vmem>>) attributes {dimension_semantics = [], scalar_prefetch = 0 : i64, scratch_operands = 1 : i64, tpu.core_type = #tpu.core_type<tc>} {
    %c0 = arith.constant 0 : index
    %c0_0 = arith.constant 0 : index
    %0 = vector.load %arg0[%c0, %c0_0] : memref<64x32xbf16, #tpu.memory_space<vmem>>, vector<64x32xbf16>
    %c0_1 = arith.constant 0 : index
    %c0_2 = arith.constant 0 : index
    %1 = vector.load %arg1[%c0_1, %c0_2] : memref<32x1024xbf16, #tpu.memory_space<vmem>>, vector<32x1024xbf16>
    %cst = arith.constant dense<0.000000e+00> : vector<64x1024xf32>
    %2 = tpu.matmul %0, %1, %cst {dimension_numbers = #tpu.dot_dimension_numbers<[1], [0], [0], [1], [0, 0, 1, 1], [], []>} : vector<64x32xbf16>, vector<32x1024xbf16>, vector<64x1024xf32> -> vector<64x1024xf32>
    %c0_3 = arith.constant 0 : index
    %c0_4 = arith.constant 0 : index
    %3 = vector.load %arg3[%c0_3, %c0_4] : memref<1x1024xf32, #tpu.memory_space<vmem>>, vector<1x1024xf32>
    %4 = vector.broadcast %3 : vector<1x1024xf32> to vector<64x1024xf32>
    %5 = arith.addf %2, %4 : vector<64x1024xf32>
    %c0_5 = arith.constant 0 : index
    %c0_6 = arith.constant 0 : index
    %6 = vector.load %arg5[%c0_5, %c0_6] : memref<64x1024xf32, #tpu.memory_space<vmem>>, vector<64x1024xf32>
    tpu.vector_store %arg5[%c0_5, %c0_6], %5 {strides = array<i32>} : memref<64x1024xf32, #tpu.memory_space<vmem>>, vector<64x1024xf32>,
    %c0_7 = arith.constant 0 : index
    %c0_8 = arith.constant 0 : index
    %7 = vector.load %arg2[%c0_7, %c0_8] : memref<256x1024xbf16, #tpu.memory_space<vmem>>, vector<256x1024xbf16>
    %cst_9 = arith.constant 0.000000e+00 : f32
    %8 = vector.broadcast %cst_9 : f32 to vector<8x256xf32>
    %cst_10 = arith.constant 0.000000e+00 : f32
    %9 = vector.broadcast %cst_10 : f32 to vector<8x256xf32>
    %10 = arith.truncf %8 : vector<8x256xf32> to vector<8x256xbf16>
    %cst_11 = arith.constant dense<0.000000e+00> : vector<8x1024xf32>
    %11 = tpu.matmul %10, %7, %cst_11 {dimension_numbers = #tpu.dot_dimension_numbers<[1], [0], [0], [1], [0, 0, 1, 1], [], []>} : vector<8x256xbf16>, vector<256x1024xbf16>, vector<8x1024xf32> -> vector<8x1024xf32>
    %c0_12 = arith.constant 0 : index
    %c0_13 = arith.constant 0 : index
    %12 = vector.load %arg5[%c0_12, %c0_13] : memref<64x1024xf32, #tpu.memory_space<vmem>>, vector<8x1024xf32>
    %13 = arith.addf %11, %12 : vector<8x1024xf32>
    %14 = vector.extract_strided_slice %13 {offsets = [0, 0], sizes = [8, 256], strides = [1, 1]} : vector<8x1024xf32> to vector<8x256xf32>
    %15 = arith.negf %14 : vector<8x256xf32>
    %16 = math.exp %15 : vector<8x256xf32>
    %cst_14 = arith.constant 1.000000e+00 : f32
    %17 = vector.broadcast %cst_14 : f32 to vector<8x256xf32>
    %18 = arith.addf %17, %16 : vector<8x256xf32>
    %19 = arith.divf %17, %18 : vector<8x256xf32>
    %20 = vector.extract_strided_slice %13 {offsets = [0, 256], sizes = [8, 256], strides = [1, 1]} : vector<8x1024xf32> to vector<8x256xf32>
    %21 = arith.negf %20 : vector<8x256xf32>
    %22 = math.exp %21 : vector<8x256xf32>
    %cst_15 = arith.constant 1.000000e+00 : f32
    %23 = vector.broadcast %cst_15 : f32 to vector<8x256xf32>
    %24 = arith.addf %23, %22 : vector<8x256xf32>
    %25 = arith.divf %23, %24 : vector<8x256xf32>
    %26 = vector.extract_strided_slice %13 {offsets = [0, 512], sizes = [8, 256], strides = [1, 1]} : vector<8x1024xf32> to vector<8x256xf32>
    %27 = math.tanh %26 : vector<8x256xf32>
    %28 = vector.extract_strided_slice %13 {offsets = [0, 768], sizes = [8, 256], strides = [1, 1]} : vector<8x1024xf32> to vector<8x256xf32>
    %29 = arith.negf %28 : vector<8x256xf32>
    %30 = math.exp %29 : vector<8x256xf32>
    %cst_16 = arith.constant 1.000000e+00 : f32
    %31 = vector.broadcast %cst_16 : f32 to vector<8x256xf32>
    %32 = arith.addf %31, %30 : vector<8x256xf32>
    %33 = arith.divf %31, %32 : vector<8x256xf32>
    %34 = arith.mulf %25, %9 : vector<8x256xf32>
    %35 = arith.mulf %19, %27 : vector<8x256xf32>
    %36 = arith.addf %34, %35 : vector<8x256xf32>
    %37 = math.tanh %36 : vector<8x256xf32>
    %38 = arith.mulf %33, %37 : vector<8x256xf32>
    %39 = vector.extract_strided_slice %38 {offsets = [0, 0], sizes = [8, 128], strides = [1, 1]} : vector<8x256xf32> to vector<8x128xf32>
    %c0_17 = arith.constant 0 : index
    %c0_18 = arith.constant 0 : index
    %40 = vector.load %arg4[%c0_17, %c0_18] : memref<64x256xf32, #tpu.memory_space<vmem>>, vector<8x128xf32>
    tpu.vector_store %arg4[%c0_17, %c0_18], %39 {strides = array<i32>} : memref<64x256xf32, #tpu.memory_space<vmem>>, vector<8x128xf32>,
    %41 = vector.extract_strided_slice %38 {offsets = [0, 128], sizes = [8, 128], strides = [1, 1]} : vector<8x256xf32> to vector<8x128xf32>
    %c56 = arith.constant 56 : index
    %c128 = arith.constant 128 : index
    %42 = vector.load %arg4[%c56, %c128] : memref<64x256xf32, #tpu.memory_space<vmem>>, vector<8x128xf32>
    tpu.vector_store %arg4[%c56, %c128], %41 {strides = array<i32>} : memref<64x256xf32, #tpu.memory_space<vmem>>, vector<8x128xf32>,
    %43 = arith.truncf %38 : vector<8x256xf32> to vector<8x256xbf16>
    %cst_19 = arith.constant dense<0.000000e+00> : vector<8x1024xf32>
    %44 = tpu.matmul %43, %7, %cst_19 {dimension_numbers = #tpu.dot_dimension_numbers<[1], [0], [0], [1], [0, 0, 1, 1], [], []>} : vector<8x256xbf16>, vector<256x1024xbf16>, vector<8x1024xf32> -> vector<8x1024xf32>
    %c8 = arith.constant 8 : index
    %c0_20 = arith.constant 0 : index
    %45 = vector.load %arg5[%c8, %c0_20] : memref<64x1024xf32, #tpu.memory_space<vmem>>, vector<8x1024xf32>
    %46 = arith.addf %44, %45 : vector<8x1024xf32>
    %47 = vector.extract_strided_slice %46 {offsets = [0, 0], sizes = [8, 256], strides = [1, 1]} : vector<8x1024xf32> to vector<8x256xf32>
    %48 = arith.negf %47 : vector<8x256xf32>
    %49 = math.exp %48 : vector<8x256xf32>
    %cst_21 = arith.constant 1.000000e+00 : f32
    %50 = vector.broadcast %cst_21 : f32 to vector<8x256xf32>
    %51 = arith.addf %50, %49 : vector<8x256xf32>
    %52 = arith.divf %50, %51 : vector<8x256xf32>
    %53 = vector.extract_strided_slice %46 {offsets = [0, 256], sizes = [8, 256], strides = [1, 1]} : vector<8x1024xf32> to vector<8x256xf32>
    %54 = arith.negf %53 : vector<8x256xf32>
    %55 = math.exp %54 : vector<8x256xf32>
    %cst_22 = arith.constant 1.000000e+00 : f32
    %56 = vector.broadcast %cst_22 : f32 to vector<8x256xf32>
    %57 = arith.addf %56, %55 : vector<8x256xf32>
    %58 = arith.divf %56, %57 : vector<8x256xf32>
    %59 = vector.extract_strided_slice %46 {offsets = [0, 512], sizes = [8, 256], strides = [1, 1]} : vector<8x1024xf32> to vector<8x256xf32>
    %60 = math.tanh %59 : vector<8x256xf32>
    %61 = vector.extract_strided_slice %46 {offsets = [0, 768], sizes = [8, 256], strides = [1, 1]} : vector<8x1024xf32> to vector<8x256xf32>
    %62 = arith.negf %61 : vector<8x256xf32>
    %63 = math.exp %62 : vector<8x256xf32>
    %cst_23 = arith.constant 1.000000e+00 : f32
    %64 = vector.broadcast %cst_23 : f32 to vector<8x256xf32>
    %65 = arith.addf %64, %63 : vector<8x256xf32>
    %66 = arith.divf %64, %65 : vector<8x256xf32>
    %67 = arith.mulf %58, %36 : vector<8x256xf32>
    %68 = arith.mulf %52, %60 : vector<8x256xf32>
    %69 = arith.addf %67, %68 : vector<8x256xf32>
    %70 = math.tanh %69 : vector<8x256xf32>
    %71 = arith.mulf %66, %70 : vector<8x256xf32>
    %72 = vector.extract_strided_slice %71 {offsets = [0, 0], sizes = [8, 128], strides = [1, 1]} : vector<8x256xf32> to vector<8x128xf32>
    %c8_24 = arith.constant 8 : index
    %c0_25 = arith.constant 0 : index
    %73 = vector.load %arg4[%c8_24, %c0_25] : memref<64x256xf32, #tpu.memory_space<vmem>>, vector<8x128xf32>
    tpu.vector_store %arg4[%c8_24, %c0_25], %72 {strides = array<i32>} : memref<64x256xf32, #tpu.memory_space<vmem>>, vector<8x128xf32>,
    %74 = vector.extract_strided_slice %71 {offsets = [0, 128], sizes = [8, 128], strides = [1, 1]} : vector<8x256xf32> to vector<8x128xf32>
    %c48 = arith.constant 48 : index
    %c128_26 = arith.constant 128 : index
    %75 = vector.load %arg4[%c48, %c128_26] : memref<64x256xf32, #tpu.memory_space<vmem>>, vector<8x128xf32>
    tpu.vector_store %arg4[%c48, %c128_26], %74 {strides = array<i32>} : memref<64x256xf32, #tpu.memory_space<vmem>>, vector<8x128xf32>,
    %76 = arith.truncf %71 : vector<8x256xf32> to vector<8x256xbf16>
    %cst_27 = arith.constant dense<0.000000e+00> : vector<8x1024xf32>
    %77 = tpu.matmul %76, %7, %cst_27 {dimension_numbers = #tpu.dot_dimension_numbers<[1], [0], [0], [1], [0, 0, 1, 1], [], []>} : vector<8x256xbf16>, vector<256x1024xbf16>, vector<8x1024xf32> -> vector<8x1024xf32>
    %c16 = arith.constant 16 : index
    %c0_28 = arith.constant 0 : index
    %78 = vector.load %arg5[%c16, %c0_28] : memref<64x1024xf32, #tpu.memory_space<vmem>>, vector<8x1024xf32>
    %79 = arith.addf %77, %78 : vector<8x1024xf32>
    %80 = vector.extract_strided_slice %79 {offsets = [0, 0], sizes = [8, 256], strides = [1, 1]} : vector<8x1024xf32> to vector<8x256xf32>
    %81 = arith.negf %80 : vector<8x256xf32>
    %82 = math.exp %81 : vector<8x256xf32>
    %cst_29 = arith.constant 1.000000e+00 : f32
    %83 = vector.broadcast %cst_29 : f32 to vector<8x256xf32>
    %84 = arith.addf %83, %82 : vector<8x256xf32>
    %85 = arith.divf %83, %84 : vector<8x256xf32>
    %86 = vector.extract_strided_slice %79 {offsets = [0, 256], sizes = [8, 256], strides = [1, 1]} : vector<8x1024xf32> to vector<8x256xf32>
    %87 = arith.negf %86 : vector<8x256xf32>
    %88 = math.exp %87 : vector<8x256xf32>
    %cst_30 = arith.constant 1.000000e+00 : f32
    %89 = vector.broadcast %cst_30 : f32 to vector<8x256xf32>
    %90 = arith.addf %89, %88 : vector<8x256xf32>
    %91 = arith.divf %89, %90 : vector<8x256xf32>
    %92 = vector.extract_strided_slice %79 {offsets = [0, 512], sizes = [8, 256], strides = [1, 1]} : vector<8x1024xf32> to vector<8x256xf32>
    %93 = math.tanh %92 : vector<8x256xf32>
    %94 = vector.extract_strided_slice %79 {offsets = [0, 768], sizes = [8, 256], strides = [1, 1]} : vector<8x1024xf32> to vector<8x256xf32>
    %95 = arith.negf %94 : vector<8x256xf32>
    %96 = math.exp %95 : vector<8x256xf32>
    %cst_31 = arith.constant 1.000000e+00 : f32
    %97 = vector.broadcast %cst_31 : f32 to vector<8x256xf32>
    %98 = arith.addf %97, %96 : vector<8x256xf32>
    %99 = arith.divf %97, %98 : vector<8x256xf32>
    %100 = arith.mulf %91, %69 : vector<8x256xf32>
    %101 = arith.mulf %85, %93 : vector<8x256xf32>
    %102 = arith.addf %100, %101 : vector<8x256xf32>
    %103 = math.tanh %102 : vector<8x256xf32>
    %104 = arith.mulf %99, %103 : vector<8x256xf32>
    %105 = vector.extract_strided_slice %104 {offsets = [0, 0], sizes = [8, 128], strides = [1, 1]} : vector<8x256xf32> to vector<8x128xf32>
    %c16_32 = arith.constant 16 : index
    %c0_33 = arith.constant 0 : index
    %106 = vector.load %arg4[%c16_32, %c0_33] : memref<64x256xf32, #tpu.memory_space<vmem>>, vector<8x128xf32>
    tpu.vector_store %arg4[%c16_32, %c0_33], %105 {strides = array<i32>} : memref<64x256xf32, #tpu.memory_space<vmem>>, vector<8x128xf32>,
    %107 = vector.extract_strided_slice %104 {offsets = [0, 128], sizes = [8, 128], strides = [1, 1]} : vector<8x256xf32> to vector<8x128xf32>
    %c40 = arith.constant 40 : index
    %c128_34 = arith.constant 128 : index
    %108 = vector.load %arg4[%c40, %c128_34] : memref<64x256xf32, #tpu.memory_space<vmem>>, vector<8x128xf32>
    tpu.vector_store %arg4[%c40, %c128_34], %107 {strides = array<i32>} : memref<64x256xf32, #tpu.memory_space<vmem>>, vector<8x128xf32>,
    %109 = arith.truncf %104 : vector<8x256xf32> to vector<8x256xbf16>
    %cst_35 = arith.constant dense<0.000000e+00> : vector<8x1024xf32>
    %110 = tpu.matmul %109, %7, %cst_35 {dimension_numbers = #tpu.dot_dimension_numbers<[1], [0], [0], [1], [0, 0, 1, 1], [], []>} : vector<8x256xbf16>, vector<256x1024xbf16>, vector<8x1024xf32> -> vector<8x1024xf32>
    %c24 = arith.constant 24 : index
    %c0_36 = arith.constant 0 : index
    %111 = vector.load %arg5[%c24, %c0_36] : memref<64x1024xf32, #tpu.memory_space<vmem>>, vector<8x1024xf32>
    %112 = arith.addf %110, %111 : vector<8x1024xf32>
    %113 = vector.extract_strided_slice %112 {offsets = [0, 0], sizes = [8, 256], strides = [1, 1]} : vector<8x1024xf32> to vector<8x256xf32>
    %114 = arith.negf %113 : vector<8x256xf32>
    %115 = math.exp %114 : vector<8x256xf32>
    %cst_37 = arith.constant 1.000000e+00 : f32
    %116 = vector.broadcast %cst_37 : f32 to vector<8x256xf32>
    %117 = arith.addf %116, %115 : vector<8x256xf32>
    %118 = arith.divf %116, %117 : vector<8x256xf32>
    %119 = vector.extract_strided_slice %112 {offsets = [0, 256], sizes = [8, 256], strides = [1, 1]} : vector<8x1024xf32> to vector<8x256xf32>
    %120 = arith.negf %119 : vector<8x256xf32>
    %121 = math.exp %120 : vector<8x256xf32>
    %cst_38 = arith.constant 1.000000e+00 : f32
    %122 = vector.broadcast %cst_38 : f32 to vector<8x256xf32>
    %123 = arith.addf %122, %121 : vector<8x256xf32>
    %124 = arith.divf %122, %123 : vector<8x256xf32>
    %125 = vector.extract_strided_slice %112 {offsets = [0, 512], sizes = [8, 256], strides = [1, 1]} : vector<8x1024xf32> to vector<8x256xf32>
    %126 = math.tanh %125 : vector<8x256xf32>
    %127 = vector.extract_strided_slice %112 {offsets = [0, 768], sizes = [8, 256], strides = [1, 1]} : vector<8x1024xf32> to vector<8x256xf32>
    %128 = arith.negf %127 : vector<8x256xf32>
    %129 = math.exp %128 : vector<8x256xf32>
    %cst_39 = arith.constant 1.000000e+00 : f32
    %130 = vector.broadcast %cst_39 : f32 to vector<8x256xf32>
    %131 = arith.addf %130, %129 : vector<8x256xf32>
    %132 = arith.divf %130, %131 : vector<8x256xf32>
    %133 = arith.mulf %124, %102 : vector<8x256xf32>
    %134 = arith.mulf %118, %126 : vector<8x256xf32>
    %135 = arith.addf %133, %134 : vector<8x256xf32>
    %136 = math.tanh %135 : vector<8x256xf32>
    %137 = arith.mulf %132, %136 : vector<8x256xf32>
    %138 = vector.extract_strided_slice %137 {offsets = [0, 0], sizes = [8, 128], strides = [1, 1]} : vector<8x256xf32> to vector<8x128xf32>
    %c24_40 = arith.constant 24 : index
    %c0_41 = arith.constant 0 : index
    %139 = vector.load %arg4[%c24_40, %c0_41] : memref<64x256xf32, #tpu.memory_space<vmem>>, vector<8x128xf32>
    tpu.vector_store %arg4[%c24_40, %c0_41], %138 {strides = array<i32>} : memref<64x256xf32, #tpu.memory_space<vmem>>, vector<8x128xf32>,
    %140 = vector.extract_strided_slice %137 {offsets = [0, 128], sizes = [8, 128], strides = [1, 1]} : vector<8x256xf32> to vector<8x128xf32>
    %c32 = arith.constant 32 : index
    %c128_42 = arith.constant 128 : index
    %141 = vector.load %arg4[%c32, %c128_42] : memref<64x256xf32, #tpu.memory_space<vmem>>, vector<8x128xf32>
    tpu.vector_store %arg4[%c32, %c128_42], %140 {strides = array<i32>} : memref<64x256xf32, #tpu.memory_space<vmem>>, vector<8x128xf32>,
    %142 = arith.truncf %137 : vector<8x256xf32> to vector<8x256xbf16>
    %cst_43 = arith.constant dense<0.000000e+00> : vector<8x1024xf32>
    %143 = tpu.matmul %142, %7, %cst_43 {dimension_numbers = #tpu.dot_dimension_numbers<[1], [0], [0], [1], [0, 0, 1, 1], [], []>} : vector<8x256xbf16>, vector<256x1024xbf16>, vector<8x1024xf32> -> vector<8x1024xf32>
    %c32_44 = arith.constant 32 : index
    %c0_45 = arith.constant 0 : index
    %144 = vector.load %arg5[%c32_44, %c0_45] : memref<64x1024xf32, #tpu.memory_space<vmem>>, vector<8x1024xf32>
    %145 = arith.addf %143, %144 : vector<8x1024xf32>
    %146 = vector.extract_strided_slice %145 {offsets = [0, 0], sizes = [8, 256], strides = [1, 1]} : vector<8x1024xf32> to vector<8x256xf32>
    %147 = arith.negf %146 : vector<8x256xf32>
    %148 = math.exp %147 : vector<8x256xf32>
    %cst_46 = arith.constant 1.000000e+00 : f32
    %149 = vector.broadcast %cst_46 : f32 to vector<8x256xf32>
    %150 = arith.addf %149, %148 : vector<8x256xf32>
    %151 = arith.divf %149, %150 : vector<8x256xf32>
    %152 = vector.extract_strided_slice %145 {offsets = [0, 256], sizes = [8, 256], strides = [1, 1]} : vector<8x1024xf32> to vector<8x256xf32>
    %153 = arith.negf %152 : vector<8x256xf32>
    %154 = math.exp %153 : vector<8x256xf32>
    %cst_47 = arith.constant 1.000000e+00 : f32
    %155 = vector.broadcast %cst_47 : f32 to vector<8x256xf32>
    %156 = arith.addf %155, %154 : vector<8x256xf32>
    %157 = arith.divf %155, %156 : vector<8x256xf32>
    %158 = vector.extract_strided_slice %145 {offsets = [0, 512], sizes = [8, 256], strides = [1, 1]} : vector<8x1024xf32> to vector<8x256xf32>
    %159 = math.tanh %158 : vector<8x256xf32>
    %160 = vector.extract_strided_slice %145 {offsets = [0, 768], sizes = [8, 256], strides = [1, 1]} : vector<8x1024xf32> to vector<8x256xf32>
    %161 = arith.negf %160 : vector<8x256xf32>
    %162 = math.exp %161 : vector<8x256xf32>
    %cst_48 = arith.constant 1.000000e+00 : f32
    %163 = vector.broadcast %cst_48 : f32 to vector<8x256xf32>
    %164 = arith.addf %163, %162 : vector<8x256xf32>
    %165 = arith.divf %163, %164 : vector<8x256xf32>
    %166 = arith.mulf %157, %135 : vector<8x256xf32>
    %167 = arith.mulf %151, %159 : vector<8x256xf32>
    %168 = arith.addf %166, %167 : vector<8x256xf32>
    %169 = math.tanh %168 : vector<8x256xf32>
    %170 = arith.mulf %165, %169 : vector<8x256xf32>
    %171 = vector.extract_strided_slice %170 {offsets = [0, 0], sizes = [8, 128], strides = [1, 1]} : vector<8x256xf32> to vector<8x128xf32>
    %c32_49 = arith.constant 32 : index
    %c0_50 = arith.constant 0 : index
    %172 = vector.load %arg4[%c32_49, %c0_50] : memref<64x256xf32, #tpu.memory_space<vmem>>, vector<8x128xf32>
    tpu.vector_store %arg4[%c32_49, %c0_50], %171 {strides = array<i32>} : memref<64x256xf32, #tpu.memory_space<vmem>>, vector<8x128xf32>,
    %173 = vector.extract_strided_slice %170 {offsets = [0, 128], sizes = [8, 128], strides = [1, 1]} : vector<8x256xf32> to vector<8x128xf32>
    %c24_51 = arith.constant 24 : index
    %c128_52 = arith.constant 128 : index
    %174 = vector.load %arg4[%c24_51, %c128_52] : memref<64x256xf32, #tpu.memory_space<vmem>>, vector<8x128xf32>
    tpu.vector_store %arg4[%c24_51, %c128_52], %173 {strides = array<i32>} : memref<64x256xf32, #tpu.memory_space<vmem>>, vector<8x128xf32>,
    %175 = arith.truncf %170 : vector<8x256xf32> to vector<8x256xbf16>
    %cst_53 = arith.constant dense<0.000000e+00> : vector<8x1024xf32>
    %176 = tpu.matmul %175, %7, %cst_53 {dimension_numbers = #tpu.dot_dimension_numbers<[1], [0], [0], [1], [0, 0, 1, 1], [], []>} : vector<8x256xbf16>, vector<256x1024xbf16>, vector<8x1024xf32> -> vector<8x1024xf32>
    %c40_54 = arith.constant 40 : index
    %c0_55 = arith.constant 0 : index
    %177 = vector.load %arg5[%c40_54, %c0_55] : memref<64x1024xf32, #tpu.memory_space<vmem>>, vector<8x1024xf32>
    %178 = arith.addf %176, %177 : vector<8x1024xf32>
    %179 = vector.extract_strided_slice %178 {offsets = [0, 0], sizes = [8, 256], strides = [1, 1]} : vector<8x1024xf32> to vector<8x256xf32>
    %180 = arith.negf %179 : vector<8x256xf32>
    %181 = math.exp %180 : vector<8x256xf32>
    %cst_56 = arith.constant 1.000000e+00 : f32
    %182 = vector.broadcast %cst_56 : f32 to vector<8x256xf32>
    %183 = arith.addf %182, %181 : vector<8x256xf32>
    %184 = arith.divf %182, %183 : vector<8x256xf32>
    %185 = vector.extract_strided_slice %178 {offsets = [0, 256], sizes = [8, 256], strides = [1, 1]} : vector<8x1024xf32> to vector<8x256xf32>
    %186 = arith.negf %185 : vector<8x256xf32>
    %187 = math.exp %186 : vector<8x256xf32>
    %cst_57 = arith.constant 1.000000e+00 : f32
    %188 = vector.broadcast %cst_57 : f32 to vector<8x256xf32>
    %189 = arith.addf %188, %187 : vector<8x256xf32>
    %190 = arith.divf %188, %189 : vector<8x256xf32>
    %191 = vector.extract_strided_slice %178 {offsets = [0, 512], sizes = [8, 256], strides = [1, 1]} : vector<8x1024xf32> to vector<8x256xf32>
    %192 = math.tanh %191 : vector<8x256xf32>
    %193 = vector.extract_strided_slice %178 {offsets = [0, 768], sizes = [8, 256], strides = [1, 1]} : vector<8x1024xf32> to vector<8x256xf32>
    %194 = arith.negf %193 : vector<8x256xf32>
    %195 = math.exp %194 : vector<8x256xf32>
    %cst_58 = arith.constant 1.000000e+00 : f32
    %196 = vector.broadcast %cst_58 : f32 to vector<8x256xf32>
    %197 = arith.addf %196, %195 : vector<8x256xf32>
    %198 = arith.divf %196, %197 : vector<8x256xf32>
    %199 = arith.mulf %190, %168 : vector<8x256xf32>
    %200 = arith.mulf %184, %192 : vector<8x256xf32>
    %201 = arith.addf %199, %200 : vector<8x256xf32>
    %202 = math.tanh %201 : vector<8x256xf32>
    %203 = arith.mulf %198, %202 : vector<8x256xf32>
    %204 = vector.extract_strided_slice %203 {offsets = [0, 0], sizes = [8, 128], strides = [1, 1]} : vector<8x256xf32> to vector<8x128xf32>
    %c40_59 = arith.constant 40 : index
    %c0_60 = arith.constant 0 : index
    %205 = vector.load %arg4[%c40_59, %c0_60] : memref<64x256xf32, #tpu.memory_space<vmem>>, vector<8x128xf32>
    tpu.vector_store %arg4[%c40_59, %c0_60], %204 {strides = array<i32>} : memref<64x256xf32, #tpu.memory_space<vmem>>, vector<8x128xf32>,
    %206 = vector.extract_strided_slice %203 {offsets = [0, 128], sizes = [8, 128], strides = [1, 1]} : vector<8x256xf32> to vector<8x128xf32>
    %c16_61 = arith.constant 16 : index
    %c128_62 = arith.constant 128 : index
    %207 = vector.load %arg4[%c16_61, %c128_62] : memref<64x256xf32, #tpu.memory_space<vmem>>, vector<8x128xf32>
    tpu.vector_store %arg4[%c16_61, %c128_62], %206 {strides = array<i32>} : memref<64x256xf32, #tpu.memory_space<vmem>>, vector<8x128xf32>,
    %208 = arith.truncf %203 : vector<8x256xf32> to vector<8x256xbf16>
    %cst_63 = arith.constant dense<0.000000e+00> : vector<8x1024xf32>
    %209 = tpu.matmul %208, %7, %cst_63 {dimension_numbers = #tpu.dot_dimension_numbers<[1], [0], [0], [1], [0, 0, 1, 1], [], []>} : vector<8x256xbf16>, vector<256x1024xbf16>, vector<8x1024xf32> -> vector<8x1024xf32>
    %c48_64 = arith.constant 48 : index
    %c0_65 = arith.constant 0 : index
    %210 = vector.load %arg5[%c48_64, %c0_65] : memref<64x1024xf32, #tpu.memory_space<vmem>>, vector<8x1024xf32>
    %211 = arith.addf %209, %210 : vector<8x1024xf32>
    %212 = vector.extract_strided_slice %211 {offsets = [0, 0], sizes = [8, 256], strides = [1, 1]} : vector<8x1024xf32> to vector<8x256xf32>
    %213 = arith.negf %212 : vector<8x256xf32>
    %214 = math.exp %213 : vector<8x256xf32>
    %cst_66 = arith.constant 1.000000e+00 : f32
    %215 = vector.broadcast %cst_66 : f32 to vector<8x256xf32>
    %216 = arith.addf %215, %214 : vector<8x256xf32>
    %217 = arith.divf %215, %216 : vector<8x256xf32>
    %218 = vector.extract_strided_slice %211 {offsets = [0, 256], sizes = [8, 256], strides = [1, 1]} : vector<8x1024xf32> to vector<8x256xf32>
    %219 = arith.negf %218 : vector<8x256xf32>
    %220 = math.exp %219 : vector<8x256xf32>
    %cst_67 = arith.constant 1.000000e+00 : f32
    %221 = vector.broadcast %cst_67 : f32 to vector<8x256xf32>
    %222 = arith.addf %221, %220 : vector<8x256xf32>
    %223 = arith.divf %221, %222 : vector<8x256xf32>
    %224 = vector.extract_strided_slice %211 {offsets = [0, 512], sizes = [8, 256], strides = [1, 1]} : vector<8x1024xf32> to vector<8x256xf32>
    %225 = math.tanh %224 : vector<8x256xf32>
    %226 = vector.extract_strided_slice %211 {offsets = [0, 768], sizes = [8, 256], strides = [1, 1]} : vector<8x1024xf32> to vector<8x256xf32>
    %227 = arith.negf %226 : vector<8x256xf32>
    %228 = math.exp %227 : vector<8x256xf32>
    %cst_68 = arith.constant 1.000000e+00 : f32
    %229 = vector.broadcast %cst_68 : f32 to vector<8x256xf32>
    %230 = arith.addf %229, %228 : vector<8x256xf32>
    %231 = arith.divf %229, %230 : vector<8x256xf32>
    %232 = arith.mulf %223, %201 : vector<8x256xf32>
    %233 = arith.mulf %217, %225 : vector<8x256xf32>
    %234 = arith.addf %232, %233 : vector<8x256xf32>
    %235 = math.tanh %234 : vector<8x256xf32>
    %236 = arith.mulf %231, %235 : vector<8x256xf32>
    %237 = vector.extract_strided_slice %236 {offsets = [0, 0], sizes = [8, 128], strides = [1, 1]} : vector<8x256xf32> to vector<8x128xf32>
    %c48_69 = arith.constant 48 : index
    %c0_70 = arith.constant 0 : index
    %238 = vector.load %arg4[%c48_69, %c0_70] : memref<64x256xf32, #tpu.memory_space<vmem>>, vector<8x128xf32>
    tpu.vector_store %arg4[%c48_69, %c0_70], %237 {strides = array<i32>} : memref<64x256xf32, #tpu.memory_space<vmem>>, vector<8x128xf32>,
    %239 = vector.extract_strided_slice %236 {offsets = [0, 128], sizes = [8, 128], strides = [1, 1]} : vector<8x256xf32> to vector<8x128xf32>
    %c8_71 = arith.constant 8 : index
    %c128_72 = arith.constant 128 : index
    %240 = vector.load %arg4[%c8_71, %c128_72] : memref<64x256xf32, #tpu.memory_space<vmem>>, vector<8x128xf32>
    tpu.vector_store %arg4[%c8_71, %c128_72], %239 {strides = array<i32>} : memref<64x256xf32, #tpu.memory_space<vmem>>, vector<8x128xf32>,
    %241 = arith.truncf %236 : vector<8x256xf32> to vector<8x256xbf16>
    %cst_73 = arith.constant dense<0.000000e+00> : vector<8x1024xf32>
    %242 = tpu.matmul %241, %7, %cst_73 {dimension_numbers = #tpu.dot_dimension_numbers<[1], [0], [0], [1], [0, 0, 1, 1], [], []>} : vector<8x256xbf16>, vector<256x1024xbf16>, vector<8x1024xf32> -> vector<8x1024xf32>
    %c56_74 = arith.constant 56 : index
    %c0_75 = arith.constant 0 : index
    %243 = vector.load %arg5[%c56_74, %c0_75] : memref<64x1024xf32, #tpu.memory_space<vmem>>, vector<8x1024xf32>
    %244 = arith.addf %242, %243 : vector<8x1024xf32>
    %245 = vector.extract_strided_slice %244 {offsets = [0, 0], sizes = [8, 256], strides = [1, 1]} : vector<8x1024xf32> to vector<8x256xf32>
    %246 = arith.negf %245 : vector<8x256xf32>
    %247 = math.exp %246 : vector<8x256xf32>
    %cst_76 = arith.constant 1.000000e+00 : f32
    %248 = vector.broadcast %cst_76 : f32 to vector<8x256xf32>
    %249 = arith.addf %248, %247 : vector<8x256xf32>
    %250 = arith.divf %248, %249 : vector<8x256xf32>
    %251 = vector.extract_strided_slice %244 {offsets = [0, 256], sizes = [8, 256], strides = [1, 1]} : vector<8x1024xf32> to vector<8x256xf32>
    %252 = arith.negf %251 : vector<8x256xf32>
    %253 = math.exp %252 : vector<8x256xf32>
    %cst_77 = arith.constant 1.000000e+00 : f32
    %254 = vector.broadcast %cst_77 : f32 to vector<8x256xf32>
    %255 = arith.addf %254, %253 : vector<8x256xf32>
    %256 = arith.divf %254, %255 : vector<8x256xf32>
    %257 = vector.extract_strided_slice %244 {offsets = [0, 512], sizes = [8, 256], strides = [1, 1]} : vector<8x1024xf32> to vector<8x256xf32>
    %258 = math.tanh %257 : vector<8x256xf32>
    %259 = vector.extract_strided_slice %244 {offsets = [0, 768], sizes = [8, 256], strides = [1, 1]} : vector<8x1024xf32> to vector<8x256xf32>
    %260 = arith.negf %259 : vector<8x256xf32>
    %261 = math.exp %260 : vector<8x256xf32>
    %cst_78 = arith.constant 1.000000e+00 : f32
    %262 = vector.broadcast %cst_78 : f32 to vector<8x256xf32>
    %263 = arith.addf %262, %261 : vector<8x256xf32>
    %264 = arith.divf %262, %263 : vector<8x256xf32>
    %265 = arith.mulf %256, %234 : vector<8x256xf32>
    %266 = arith.mulf %250, %258 : vector<8x256xf32>
    %267 = arith.addf %265, %266 : vector<8x256xf32>
    %268 = math.tanh %267 : vector<8x256xf32>
    %269 = arith.mulf %264, %268 : vector<8x256xf32>
    %270 = vector.extract_strided_slice %269 {offsets = [0, 0], sizes = [8, 128], strides = [1, 1]} : vector<8x256xf32> to vector<8x128xf32>
    %c56_79 = arith.constant 56 : index
    %c0_80 = arith.constant 0 : index
    %271 = vector.load %arg4[%c56_79, %c0_80] : memref<64x256xf32, #tpu.memory_space<vmem>>, vector<8x128xf32>
    tpu.vector_store %arg4[%c56_79, %c0_80], %270 {strides = array<i32>} : memref<64x256xf32, #tpu.memory_space<vmem>>, vector<8x128xf32>,
    %272 = vector.extract_strided_slice %269 {offsets = [0, 128], sizes = [8, 128], strides = [1, 1]} : vector<8x256xf32> to vector<8x128xf32>
    %c0_81 = arith.constant 0 : index
    %c128_82 = arith.constant 128 : index
    %273 = vector.load %arg4[%c0_81, %c128_82] : memref<64x256xf32, #tpu.memory_space<vmem>>, vector<8x128xf32>
    tpu.vector_store %arg4[%c0_81, %c128_82], %272 {strides = array<i32>} : memref<64x256xf32, #tpu.memory_space<vmem>>, vector<8x128xf32>,
    return
  }
}

</mosaic_0001>

<llo_original>
// kernel: rnn_sequential_encoder.1
$region0: #{rnn_sequential_encoder.1}
  #allocation0 [shape = 'u32[]', space=smem, size = 0x4, offset = 0x4, fixed_abs, tag = 'smem constant byte address 0x4 - core index']
  #allocation1 [shape = 'u32[144,128]{1,0:T(1,128)}', space=vmem, size = 0x12000, scoped, tag = 'internal scratch']
  #allocation2 [shape = 'f32[64,1024]{1,0:T(8,128)}', space=vmem, size = 0x40000, scoped, tag = 'scratch operand']
  %s0 = inlined_call_operand.vmem [shape: bf16[64,32], index: 0, kind: input, shape index: {}]
  %s1 = inlined_call_operand.vmem [shape: bf16[32,1024], index: 1, kind: input, shape index: {}]
  %s2 = inlined_call_operand.hbm [shape: bf16[256,1024], index: 2, kind: input, shape index: {}]
  %s3 = inlined_call_operand.vmem [shape: f32[1,1024], index: 3, kind: input, shape index: {}]
  %s4 = inlined_call_operand.vmem [shape: f32[64,256], index: 4, kind: output, shape index: {}]
  %s5 = sld [smem:[#allocation0]]
  $region30: #{rnn_sequential_encoder.1} parent=0
    _
  %s7 = ssub.s32 1, %s5
  %s8 = scalar_select 0, %s7, %s5
  $region1: #{rnn_sequential_encoder.1} parent=0
    #allocation3 [shape = 'u8[524288]{0}', space=vmem, size = 0x80000, scoped, tag = 'input window, operand 2, single buffered']
    #allocation4 [shape = 's32[1]{0}', space=sflag, size = 0x4, scoped, tag = 'scoped memory for rnn_sequential_encoder.1']
    %9 = vsyncpa [#allocation4], 0
    // Predicated region
    $region2: #{rnn_sequential_encoder.1} parent=1 // pred_check
      _
    $region3: #{rnn_sequential_encoder.1} parent=1 // pred_check_branch
      %11 = sbr.rel (0) target = $region5
    $region4: #{rnn_sequential_encoder.1} parent=1 // pred_region
      _
    $region5: #{rnn_sequential_encoder.1} parent=1 // pred_fallthru
      _
    // Predicated region
    $region6: #{rnn_sequential_encoder.1} parent=1 // pred_check
      _
    $region7: #{rnn_sequential_encoder.1} parent=1 // pred_check_branch
      %13 = sbr.rel (0) target = $region9
    $region8: #{rnn_sequential_encoder.1} parent=1 // pred_region
      _
    $region9: #{rnn_sequential_encoder.1} parent=1 // pred_fallthru
      _
    // Predicated region
    $region10: #{rnn_sequential_encoder.1} parent=1 // pred_check
      _
    $region11: #{rnn_sequential_encoder.1} parent=1 // pred_check_branch
      %15 = sbr.rel (0) target = $region13
    $region12: #{rnn_sequential_encoder.1} parent=1 // pred_region
      %s17 = ssub.s32 16384, 16384
      %18 = vsyncadd [#allocation4], %s17
      %s19 = sshll.u32 [#allocation3], 4
      %s20 = int_to_ptr.vmem [resolvable:$true] %s19
      %25 = dma.hbm_to_vmem [thread:$0]  %s2, 16384, %s20, [#allocation4], 512, 512, 32
    $region13: #{rnn_sequential_encoder.1} parent=1 // pred_fallthru
      _
    // Predicated region
    $region14: #{rnn_sequential_encoder.1} parent=1 // pred_check
      _
    $region15: #{rnn_sequential_encoder.1} parent=1 // pred_check_branch
      %27 = sbr.rel (0) target = $region17
    $region16: #{rnn_sequential_encoder.1} parent=1 // pred_region
      _
    $region17: #{rnn_sequential_encoder.1} parent=1 // pred_fallthru
      _
    // Predicated region
    $region18: #{rnn_sequential_encoder.1} parent=1 // pred_check
      _
    $region19: #{rnn_sequential_encoder.1} parent=1 // pred_check_branch
      %29 = sbr.rel (0) target = $region21
    $region20: #{rnn_sequential_encoder.1} parent=1 // pred_region
      %30 = dma.done [#allocation4], 16384
    $region21: #{rnn_sequential_encoder.1} parent=1 // pred_fallthru
      _
    %v32 = vld [vmem:[%s0] sm:$0xf]
    %v33 = vld [vmem:[%s0 + $0x4] sm:$0xf]
    %v34 = vld [vmem:[%s0 + $0x8] sm:$0xf]
    %v35 = vld [vmem:[%s0 + $0xc] sm:$0xf]
    %v36 = vld [vmem:[%s0 + $0x10] sm:$0xf]
    %v37 = vld [vmem:[%s0 + $0x14] sm:$0xf]
    %v38 = vld [vmem:[%s0 + $0x18] sm:$0xf]
    %v39 = vld [vmem:[%s0 + $0x1c] sm:$0xf]
    %v40 = vld [vmem:[%s1] sm:$0xff]
    %v41 = vld [vmem:[%s1 + $0x8] sm:$0xff]
    %v42 = vld [vmem:[%s1 + $0x10] sm:$0xff]
    %v43 = vld [vmem:[%s1 + $0x18] sm:$0xff]
    %v44 = vld [vmem:[%s1 + $0x20] sm:$0xff]
    %v45 = vld [vmem:[%s1 + $0x28] sm:$0xff]
    %v46 = vld [vmem:[%s1 + $0x30] sm:$0xff]
    %v47 = vld [vmem:[%s1 + $0x38] sm:$0xff]
    %v48 = vld [vmem:[%s1 + $0x40] sm:$0xff]
    %v49 = vld [vmem:[%s1 + $0x48] sm:$0xff]
    %v50 = vld [vmem:[%s1 + $0x50] sm:$0xff]
    %v51 = vld [vmem:[%s1 + $0x58] sm:$0xff]
    %v52 = vld [vmem:[%s1 + $0x60] sm:$0xff]
    %v53 = vld [vmem:[%s1 + $0x68] sm:$0xff]
    %v54 = vld [vmem:[%s1 + $0x70] sm:$0xff]
    %v55 = vld [vmem:[%s1 + $0x78] sm:$0xff]
    %v56 = vld [vmem:[%s3] sm:$0xff]
    %v58 = vlaneseq
    %v59 = vshrl.u32 %v58, 7
    %v60 = vsub.s32 0, %v59
    %v61 = vrot.slane %v56, %v60
    %v62 = vlaneseq
    %v63 = vshrl.u32 %v62, 7
    %v64 = vsub.s32 1, %v63
    %v65 = vrot.slane %v56, %v64
    %v66 = vlaneseq
    %v67 = vshrl.u32 %v66, 7
    %v68 = vsub.s32 2, %v67
    %v69 = vrot.slane %v56, %v68
    %v70 = vlaneseq
    %v71 = vshrl.u32 %v70, 7
    %v72 = vsub.s32 3, %v71
    %v73 = vrot.slane %v56, %v72
    %v74 = vlaneseq
    %v75 = vshrl.u32 %v74, 7
    %v76 = vsub.s32 4, %v75
    %v77 = vrot.slane %v56, %v76
    %v78 = vlaneseq
    %v79 = vshrl.u32 %v78, 7
    %v80 = vsub.s32 5, %v79
    %v81 = vrot.slane %v56, %v80
    %v82 = vlaneseq
    %v83 = vshrl.u32 %v82, 7
    %v84 = vsub.s32 6, %v83
    %v85 = vrot.slane %v56, %v84
    %v86 = vlaneseq
    %v87 = vshrl.u32 %v86, 7
    %v88 = vsub.s32 7, %v87
    %v89 = vrot.slane %v56, %v88
    %v106 = vunpack.c.l.b16 %v32
    %v107 = vunpack.c.l.b16 %v33
    %v108 = vunpack.c.l.b16 %v34
    %v109 = vunpack.c.l.b16 %v35
    %v110 = vunpack.c.l.b16 %v36
    %v111 = vunpack.c.l.b16 %v37
    %v112 = vunpack.c.l.b16 %v38
    %v113 = vunpack.c.l.b16 %v39
    %v114 = vpack.c.b16 %v107, %v106
    %v115 = vpack.c.b16 %v109, %v108
    %v116 = vpack.c.b16 %v111, %v110
    %v117 = vpack.c.b16 %v113, %v112
    %v134 = vunpack.c.l.b16 %v40
    %v135 = vunpack.c.h.b16 %v40
    %v136 = vunpack.c.l.b16 %v41
    %v137 = vunpack.c.h.b16 %v41
    %v138 = vunpack.c.l.b16 %v42
    %v139 = vunpack.c.h.b16 %v42
    %v140 = vunpack.c.l.b16 %v43
    %v141 = vunpack.c.h.b16 %v43
    %v142 = vunpack.c.l.b16 %v44
    %v143 = vunpack.c.h.b16 %v44
    %v144 = vunpack.c.l.b16 %v45
    %v145 = vunpack.c.h.b16 %v45
    %v146 = vunpack.c.l.b16 %v46
    %v147 = vunpack.c.h.b16 %v46
    %v148 = vunpack.c.l.b16 %v47
    %v149 = vunpack.c.h.b16 %v47
    %v150 = vunpack.c.l.b16 %v48
    %v151 = vunpack.c.h.b16 %v48
    %v152 = vunpack.c.l.b16 %v49
    %v153 = vunpack.c.h.b16 %v49
    %v154 = vunpack.c.l.b16 %v50
    %v155 = vunpack.c.h.b16 %v50
    %v156 = vunpack.c.l.b16 %v51
    %v157 = vunpack.c.h.b16 %v51
    %v158 = vunpack.c.l.b16 %v52
    %v159 = vunpack.c.h.b16 %v52
    %v160 = vunpack.c.l.b16 %v53
    %v161 = vunpack.c.h.b16 %v53
    %v162 = vunpack.c.l.b16 %v54
    %v163 = vunpack.c.h.b16 %v54
    %v164 = vunpack.c.l.b16 %v55
    %v165 = vunpack.c.h.b16 %v55
    %v166 = vpack.c.b16 %v142, %v134
    %v167 = vpack.c.b16 %v143, %v135
    %v168 = vpack.c.b16 %v144, %v136
    %v169 = vpack.c.b16 %v145, %v137
    %v170 = vpack.c.b16 %v146, %v138
    %v171 = vpack.c.b16 %v147, %v139
    %v172 = vpack.c.b16 %v148, %v140
    %v173 = vpack.c.b16 %v149, %v141
    %v174 = vpack.c.b16 %v158, %v150
    %v175 = vpack.c.b16 %v159, %v151
    %v176 = vpack.c.b16 %v160, %v152
    %v177 = vpack.c.b16 %v161, %v153
    %v178 = vpack.c.b16 %v162, %v154
    %v179 = vpack.c.b16 %v163, %v155
    %v180 = vpack.c.b16 %v164, %v156
    %v181 = vpack.c.b16 %v165, %v157
    %vm198 = vcmask 261120
    %v200 = vsel %vm198, %v114, 0
    %v203 = vsel %vm198, %v115, 0
    %v206 = vsel %vm198, %v116, 0
    %v209 = vsel %vm198, %v117, 0
    %211 = vmatprep.subr.bf16.mxu0 %v167
    %212 = vmatpush1.bf16.msra.mxu0 %v166
    %213 = vmatprep.subr.bf16.mxu0 %v175
    %214 = vmatpush1.bf16.msra.mxu0 %v174
    %215 = vmatprep.subr.bf16.mxu0 0
    %216 = vmatpush1.bf16.msra.mxu0 0
    %217 = vmatprep.subr.bf16.mxu0 0
    %218 = vmatpush1.bf16.msra.mxu0 0
    %219 = vmatprep.subr.bf16.mxu0 0
    %220 = vmatpush1.bf16.msra.mxu0 0
    %221 = vmatprep.subr.bf16.mxu0 0
    %222 = vmatpush1.bf16.msra.mxu0 0
    %223 = vmatprep.subr.bf16.mxu0 0
    %224 = vmatpush1.bf16.msra.mxu0 0
    %225 = vmatprep.subr.bf16.mxu0 0
    %226 = vmatpush1.bf16.msra.mxu0 0
    %227 = vmatprep.subr.bf16.mxu0 0
    %228 = vmatpush1.bf16.msra.mxu0 0
    %229 = vmatprep.subr.bf16.mxu0 0
    %230 = vmatpush1.bf16.msra.mxu0 0
    %231 = vmatprep.subr.bf16.mxu0 0
    %232 = vmatpush1.bf16.msra.mxu0 0
    %233 = vmatprep.subr.bf16.mxu0 0
    %234 = vmatpush1.bf16.msra.mxu0 0
    %235 = vmatprep.subr.bf16.mxu0 0
    %236 = vmatpush1.bf16.msra.mxu0 0
    %237 = vmatprep.subr.bf16.mxu0 0
    %238 = vmatpush1.bf16.msra.mxu0 0
    %239 = vmatprep.subr.bf16.mxu0 0
    %240 = vmatpush1.bf16.msra.mxu0 0
    %241 = vmatprep.subr.bf16.mxu0 0
    %242 = vmatpush1.bf16.msra.mxu0 0
    %243 = vmatprep.mubr.bf16.mxu0 0
    %244 = vmatmul.mubr.bf16.gmra.mrb[0].mxu0 %v200
    %v245 = vpop.f32.mrb[0].mxu0
    %v246 = vadd.f32 %v61, %v245
    %v247 = vpop.f32.mrb[0].mxu0
    %v248 = vadd.f32 %v65, %v247
    %v249 = vpop.f32.mrb[0].mxu0
    %v250 = vadd.f32 %v61, %v249
    %v251 = vpop.f32.mrb[0].mxu0
    %v252 = vadd.f32 %v65, %v251
    %253 = vmatprep.mubr.bf16.mxu0 0
    %254 = vmatmul.mubr.bf16.gmra.mrb[0].mxu0 %v203
    %v255 = vpop.f32.mrb[0].mxu0
    %v256 = vadd.f32 %v61, %v255
    %v257 = vpop.f32.mrb[0].mxu0
    %v258 = vadd.f32 %v65, %v257
    %v259 = vpop.f32.mrb[0].mxu0
    %v260 = vadd.f32 %v61, %v259
    %v261 = vpop.f32.mrb[0].mxu0
    %v262 = vadd.f32 %v65, %v261
    %263 = vmatprep.mubr.bf16.mxu0 0
    %264 = vmatmul.mubr.bf16.gmra.mrb[0].mxu0 %v206
    %v265 = vpop.f32.mrb[0].mxu0
    %v266 = vadd.f32 %v61, %v265
    %v267 = vpop.f32.mrb[0].mxu0
    %v268 = vadd.f32 %v65, %v267
    %v269 = vpop.f32.mrb[0].mxu0
    %v270 = vadd.f32 %v61, %v269
    %v271 = vpop.f32.mrb[0].mxu0
    %v272 = vadd.f32 %v65, %v271
    %273 = vmatprep.mubr.bf16.mxu0 0
    %274 = vmatmul.mubr.bf16.gmra.mrb[0].mxu0 %v209
    %v275 = vpop.f32.mrb[0].mxu0
    %v276 = vadd.f32 %v61, %v275
    %v277 = vpop.f32.mrb[0].mxu0
    %v278 = vadd.f32 %v65, %v277
    %v279 = vpop.f32.mrb[0].mxu0
    %v280 = vadd.f32 %v61, %v279
    %v281 = vpop.f32.mrb[0].mxu0
    %v282 = vadd.f32 %v65, %v281
    %283 = vdwg.mxu0
    %284 = vmatprep.subr.bf16.mxu0 %v169
    %285 = vmatpush1.bf16.msra.mxu0 %v168
    %286 = vmatprep.subr.bf16.mxu0 %v177
    %287 = vmatpush1.bf16.msra.mxu0 %v176
    %288 = vmatprep.subr.bf16.mxu0 0
    %289 = vmatpush1.bf16.msra.mxu0 0
    %290 = vmatprep.subr.bf16.mxu0 0
    %291 = vmatpush1.bf16.msra.mxu0 0
    %292 = vmatprep.subr.bf16.mxu0 0
    %293 = vmatpush1.bf16.msra.mxu0 0
    %294 = vmatprep.subr.bf16.mxu0 0
    %295 = vmatpush1.bf16.msra.mxu0 0
    %296 = vmatprep.subr.bf16.mxu0 0
    %297 = vmatpush1.bf16.msra.mxu0 0
    %298 = vmatprep.subr.bf16.mxu0 0
    %299 = vmatpush1.bf16.msra.mxu0 0
    %300 = vmatprep.subr.bf16.mxu0 0
    %301 = vmatpush1.bf16.msra.mxu0 0
    %302 = vmatprep.subr.bf16.mxu0 0
    %303 = vmatpush1.bf16.msra.mxu0 0
    %304 = vmatprep.subr.bf16.mxu0 0
    %305 = vmatpush1.bf16.msra.mxu0 0
    %306 = vmatprep.subr.bf16.mxu0 0
    %307 = vmatpush1.bf16.msra.mxu0 0
    %308 = vmatprep.subr.bf16.mxu0 0
    %309 = vmatpush1.bf16.msra.mxu0 0
    %310 = vmatprep.subr.bf16.mxu0 0
    %311 = vmatpush1.bf16.msra.mxu0 0
    %312 = vmatprep.subr.bf16.mxu0 0
    %313 = vmatpush1.bf16.msra.mxu0 0
    %314 = vmatprep.subr.bf16.mxu0 0
    %315 = vmatpush1.bf16.msra.mxu0 0
    %316 = vmatprep.mubr.bf16.mxu0 0
    %317 = vmatmul.mubr.bf16.gmra.mrb[0].mxu0 %v200
    %v318 = vpop.f32.mrb[0].mxu0
    %v319 = vadd.f32 %v69, %v318
    %v320 = vpop.f32.mrb[0].mxu0
    %v321 = vadd.f32 %v73, %v320
    %v322 = vpop.f32.mrb[0].mxu0
    %v323 = vadd.f32 %v69, %v322
    %v324 = vpop.f32.mrb[0].mxu0
    %v325 = vadd.f32 %v73, %v324
    %326 = vmatprep.mubr.bf16.mxu0 0
    %327 = vmatmul.mubr.bf16.gmra.mrb[0].mxu0 %v203
    %v328 = vpop.f32.mrb[0].mxu0
    %v329 = vadd.f32 %v69, %v328
    %v330 = vpop.f32.mrb[0].mxu0
    %v331 = vadd.f32 %v73, %v330
    %v332 = vpop.f32.mrb[0].mxu0
    %v333 = vadd.f32 %v69, %v332
    %v334 = vpop.f32.mrb[0].mxu0
    %v335 = vadd.f32 %v73, %v334
    %336 = vmatprep.mubr.bf16.mxu0 0
    %337 = vmatmul.mubr.bf16.gmra.mrb[0].mxu0 %v206
    %v338 = vpop.f32.mrb[0].mxu0
    %v339 = vadd.f32 %v69, %v338
    %v340 = vpop.f32.mrb[0].mxu0
    %v341 = vadd.f32 %v73, %v340
    %v342 = vpop.f32.mrb[0].mxu0
    %v343 = vadd.f32 %v69, %v342
    %v344 = vpop.f32.mrb[0].mxu0
    %v345 = vadd.f32 %v73, %v344
    %346 = vmatprep.mubr.bf16.mxu0 0
    %347 = vmatmul.mubr.bf16.gmra.mrb[0].mxu0 %v209
    %v348 = vpop.f32.mrb[0].mxu0
    %v349 = vadd.f32 %v69, %v348
    %v350 = vpop.f32.mrb[0].mxu0
    %v351 = vadd.f32 %v73, %v350
    %v352 = vpop.f32.mrb[0].mxu0
    %v353 = vadd.f32 %v69, %v352
    %v354 = vpop.f32.mrb[0].mxu0
    %v355 = vadd.f32 %v73, %v354
    %356 = vdwg.mxu0
    %357 = vmatprep.subr.bf16.mxu0 %v171
    %358 = vmatpush1.bf16.msra.mxu0 %v170
    %359 = vmatprep.subr.bf16.mxu0 %v179
    %360 = vmatpush1.bf16.msra.mxu0 %v178
    %361 = vmatprep.subr.bf16.mxu0 0
    %362 = vmatpush1.bf16.msra.mxu0 0
    %363 = vmatprep.subr.bf16.mxu0 0
    %364 = vmatpush1.bf16.msra.mxu0 0
    %365 = vmatprep.subr.bf16.mxu0 0
    %366 = vmatpush1.bf16.msra.mxu0 0
    %367 = vmatprep.subr.bf16.mxu0 0
    %368 = vmatpush1.bf16.msra.mxu0 0
    %369 = vmatprep.subr.bf16.mxu0 0
    %370 = vmatpush1.bf16.msra.mxu0 0
    %371 = vmatprep.subr.bf16.mxu0 0
    %372 = vmatpush1.bf16.msra.mxu0 0
    %373 = vmatprep.subr.bf16.mxu0 0
    %374 = vmatpush1.bf16.msra.mxu0 0
    %375 = vmatprep.subr.bf16.mxu0 0
    %376 = vmatpush1.bf16.msra.mxu0 0
    %377 = vmatprep.subr.bf16.mxu0 0
    %378 = vmatpush1.bf16.msra.mxu0 0
    %379 = vmatprep.subr.bf16.mxu0 0
    %380 = vmatpush1.bf16.msra.mxu0 0
    %381 = vmatprep.subr.bf16.mxu0 0
    %382 = vmatpush1.bf16.msra.mxu0 0
    %383 = vmatprep.subr.bf16.mxu0 0
    %384 = vmatpush1.bf16.msra.mxu0 0
    %385 = vmatprep.subr.bf16.mxu0 0
    %386 = vmatpush1.bf16.msra.mxu0 0
    %387 = vmatprep.subr.bf16.mxu0 0
    %388 = vmatpush1.bf16.msra.mxu0 0
    %389 = vmatprep.mubr.bf16.mxu0 0
    %390 = vmatmul.mubr.bf16.gmra.mrb[0].mxu0 %v200
    %v391 = vpop.f32.mrb[0].mxu0
    %v392 = vadd.f32 %v77, %v391
    %v393 = vpop.f32.mrb[0].mxu0
    %v394 = vadd.f32 %v81, %v393
    %v395 = vpop.f32.mrb[0].mxu0
    %v396 = vadd.f32 %v77, %v395
    %v397 = vpop.f32.mrb[0].mxu0
    %v398 = vadd.f32 %v81, %v397
    %399 = vmatprep.mubr.bf16.mxu0 0
    %400 = vmatmul.mubr.bf16.gmra.mrb[0].mxu0 %v203
    %v401 = vpop.f32.mrb[0].mxu0
    %v402 = vadd.f32 %v77, %v401
    %v403 = vpop.f32.mrb[0].mxu0
    %v404 = vadd.f32 %v81, %v403
    %v405 = vpop.f32.mrb[0].mxu0
    %v406 = vadd.f32 %v77, %v405
    %v407 = vpop.f32.mrb[0].mxu0
    %v408 = vadd.f32 %v81, %v407
    %409 = vmatprep.mubr.bf16.mxu0 0
    %410 = vmatmul.mubr.bf16.gmra.mrb[0].mxu0 %v206
    %v411 = vpop.f32.mrb[0].mxu0
    %v412 = vadd.f32 %v77, %v411
    %v413 = vpop.f32.mrb[0].mxu0
    %v414 = vadd.f32 %v81, %v413
    %v415 = vpop.f32.mrb[0].mxu0
    %v416 = vadd.f32 %v77, %v415
    %v417 = vpop.f32.mrb[0].mxu0
    %v418 = vadd.f32 %v81, %v417
    %419 = vmatprep.mubr.bf16.mxu0 0
    %420 = vmatmul.mubr.bf16.gmra.mrb[0].mxu0 %v209
    %v421 = vpop.f32.mrb[0].mxu0
    %v422 = vadd.f32 %v77, %v421
    %v423 = vpop.f32.mrb[0].mxu0
    %v424 = vadd.f32 %v81, %v423
    %v425 = vpop.f32.mrb[0].mxu0
    %v426 = vadd.f32 %v77, %v425
    %v427 = vpop.f32.mrb[0].mxu0
    %v428 = vadd.f32 %v81, %v427
    %429 = vdwg.mxu0
    %430 = vmatprep.subr.bf16.mxu0 %v173
    %431 = vmatpush1.bf16.msra.mxu0 %v172
    %432 = vmatprep.subr.bf16.mxu0 %v181
    %433 = vmatpush1.bf16.msra.mxu0 %v180
    %434 = vmatprep.subr.bf16.mxu0 0
    %435 = vmatpush1.bf16.msra.mxu0 0
    %436 = vmatprep.subr.bf16.mxu0 0
    %437 = vmatpush1.bf16.msra.mxu0 0
    %438 = vmatprep.subr.bf16.mxu0 0
    %439 = vmatpush1.bf16.msra.mxu0 0
    %440 = vmatprep.subr.bf16.mxu0 0
    %441 = vmatpush1.bf16.msra.mxu0 0
    %442 = vmatprep.subr.bf16.mxu0 0
    %443 = vmatpush1.bf16.msra.mxu0 0
    %444 = vmatprep.subr.bf16.mxu0 0
    %445 = vmatpush1.bf16.msra.mxu0 0
    %446 = vmatprep.subr.bf16.mxu0 0
    %447 = vmatpush1.bf16.msra.mxu0 0
    %448 = vmatprep.subr.bf16.mxu0 0
    %449 = vmatpush1.bf16.msra.mxu0 0
    %450 = vmatprep.subr.bf16.mxu0 0
    %451 = vmatpush1.bf16.msra.mxu0 0
    %452 = vmatprep.subr.bf16.mxu0 0
    %453 = vmatpush1.bf16.msra.mxu0 0
    %454 = vmatprep.subr.bf16.mxu0 0
    %455 = vmatpush1.bf16.msra.mxu0 0
    %456 = vmatprep.subr.bf16.mxu0 0
    %457 = vmatpush1.bf16.msra.mxu0 0
    %458 = vmatprep.subr.bf16.mxu0 0
    %459 = vmatpush1.bf16.msra.mxu0 0
    %460 = vmatprep.subr.bf16.mxu0 0
    %461 = vmatpush1.bf16.msra.mxu0 0
    %462 = vmatprep.mubr.bf16.mxu0 0
    %463 = vmatmul.mubr.bf16.gmra.mrb[0].mxu0 %v200
    %v464 = vpop.f32.mrb[0].mxu0
    %v465 = vadd.f32 %v85, %v464
    %v466 = vpop.f32.mrb[0].mxu0
    %v467 = vadd.f32 %v89, %v466
    %v468 = vpop.f32.mrb[0].mxu0
    %v469 = vadd.f32 %v85, %v468
    %v470 = vpop.f32.mrb[0].mxu0
    %v471 = vadd.f32 %v89, %v470
    %472 = vmatprep.mubr.bf16.mxu0 0
    %473 = vmatmul.mubr.bf16.gmra.mrb[0].mxu0 %v203
    %v474 = vpop.f32.mrb[0].mxu0
    %v475 = vadd.f32 %v85, %v474
    %v476 = vpop.f32.mrb[0].mxu0
    %v477 = vadd.f32 %v89, %v476
    %v478 = vpop.f32.mrb[0].mxu0
    %v479 = vadd.f32 %v85, %v478
    %v480 = vpop.f32.mrb[0].mxu0
    %v481 = vadd.f32 %v89, %v480
    %482 = vmatprep.mubr.bf16.mxu0 0
    %483 = vmatmul.mubr.bf16.gmra.mrb[0].mxu0 %v206
    %v484 = vpop.f32.mrb[0].mxu0
    %v485 = vadd.f32 %v85, %v484
    %v486 = vpop.f32.mrb[0].mxu0
    %v487 = vadd.f32 %v89, %v486
    %v488 = vpop.f32.mrb[0].mxu0
    %v489 = vadd.f32 %v85, %v488
    %v490 = vpop.f32.mrb[0].mxu0
    %v491 = vadd.f32 %v89, %v490
    %492 = vmatprep.mubr.bf16.mxu0 0
    %493 = vmatmul.mubr.bf16.gmra.mrb[0].mxu0 %v209
    %v494 = vpop.f32.mrb[0].mxu0
    %v495 = vadd.f32 %v85, %v494
    %v496 = vpop.f32.mrb[0].mxu0
    %v497 = vadd.f32 %v89, %v496
    %v498 = vpop.f32.mrb[0].mxu0
    %v499 = vadd.f32 %v85, %v498
    %v500 = vpop.f32.mrb[0].mxu0
    %v501 = vadd.f32 %v89, %v500
    %502 = vdwg.mxu0
    %503 = vst [vmem:[#allocation2] sm:$0xff] %v246
    %504 = vst [vmem:[#allocation2 + $0x8] sm:$0xff] %v248
    %505 = vst [vmem:[#allocation2 + $0x10] sm:$0xff] %v319
    %506 = vst [vmem:[#allocation2 + $0x18] sm:$0xff] %v321
    %507 = vst [vmem:[#allocation2 + $0x20] sm:$0xff] %v392
    %508 = vst [vmem:[#allocation2 + $0x28] sm:$0xff] %v394
    %509 = vst [vmem:[#allocation2 + $0x30] sm:$0xff] %v465
    %510 = vst [vmem:[#allocation2 + $0x38] sm:$0xff] %v467
    %511 = vst [vmem:[#allocation2 + $0x40] sm:$0xff] %v250
    %512 = vst [vmem:[#allocation2 + $0x48] sm:$0xff] %v252
    %513 = vst [vmem:[#allocation2 + $0x50] sm:$0xff] %v323
    %514 = vst [vmem:[#allocation2 + $0x58] sm:$0xff] %v325
    %515 = vst [vmem:[#allocation2 + $0x60] sm:$0xff] %v396
    %516 = vst [vmem:[#allocation2 + $0x68] sm:$0xff] %v398
    %517 = vst [vmem:[#allocation2 + $0x70] sm:$0xff] %v469
    %518 = vst [vmem:[#allocation2 + $0x78] sm:$0xff] %v471
    %519 = vst [vmem:[#allocation2 + $0x80] sm:$0xff] %v256
    %520 = vst [vmem:[#allocation2 + $0x88] sm:$0xff] %v258
    %521 = vst [vmem:[#allocation2 + $0x90] sm:$0xff] %v329
    %522 = vst [vmem:[#allocation2 + $0x98] sm:$0xff] %v331
    %523 = vst [vmem:[#allocation2 + $0xa0] sm:$0xff] %v402
    %524 = vst [vmem:[#allocation2 + $0xa8] sm:$0xff] %v404
    %525 = vst [vmem:[#allocation2 + $0xb0] sm:$0xff] %v475
    %526 = vst [vmem:[#allocation2 + $0xb8] sm:$0xff] %v477
    %527 = vst [vmem:[#allocation2 + $0xc0] sm:$0xff] %v260
    %528 = vst [vmem:[#allocation2 + $0xc8] sm:$0xff] %v262
    %529 = vst [vmem:[#allocation2 + $0xd0] sm:$0xff] %v333
    %530 = vst [vmem:[#allocation2 + $0xd8] sm:$0xff] %v335
    %531 = vst [vmem:[#allocation2 + $0xe0] sm:$0xff] %v406
    %532 = vst [vmem:[#allocation2 + $0xe8] sm:$0xff] %v408
    %533 = vst [vmem:[#allocation2 + $0xf0] sm:$0xff] %v479
    %534 = vst [vmem:[#allocation2 + $0xf8] sm:$0xff] %v481
    %535 = vst [vmem:[#allocation2 + $0x100] sm:$0xff] %v266
    %536 = vst [vmem:[#allocation2 + $0x108] sm:$0xff] %v268
    %537 = vst [vmem:[#allocation2 + $0x110] sm:$0xff] %v339
    %538 = vst [vmem:[#allocation2 + $0x118] sm:$0xff] %v341
    %539 = vst [vmem:[#allocation2 + $0x120] sm:$0xff] %v412
    %540 = vst [vmem:[#allocation2 + $0x128] sm:$0xff] %v414
    %541 = vst [vmem:[#allocation2 + $0x130] sm:$0xff] %v485
    %542 = vst [vmem:[#allocation2 + $0x138] sm:$0xff] %v487
    %543 = vst [vmem:[#allocation2 + $0x140] sm:$0xff] %v270
    %544 = vst [vmem:[#allocation2 + $0x148] sm:$0xff] %v272
    %545 = vst [vmem:[#allocation2 + $0x150] sm:$0xff] %v343
    %546 = vst [vmem:[#allocation2 + $0x158] sm:$0xff] %v345
    %547 = vst [vmem:[#allocation2 + $0x160] sm:$0xff] %v416
    %548 = vst [vmem:[#allocation2 + $0x168] sm:$0xff] %v418
    %549 = vst [vmem:[#allocation2 + $0x170] sm:$0xff] %v489
    %550 = vst [vmem:[#allocation2 + $0x178] sm:$0xff] %v491
    %551 = vst [vmem:[#allocation2 + $0x180] sm:$0xff] %v276
    %552 = vst [vmem:[#allocation2 + $0x188] sm:$0xff] %v278
    %553 = vst [vmem:[#allocation2 + $0x190] sm:$0xff] %v349
    %554 = vst [vmem:[#allocation2 + $0x198] sm:$0xff] %v351
    %555 = vst [vmem:[#allocation2 + $0x1a0] sm:$0xff] %v422
    %556 = vst [vmem:[#allocation2 + $0x1a8] sm:$0xff] %v424
    %557 = vst [vmem:[#allocation2 + $0x1b0] sm:$0xff] %v495
    %558 = vst [vmem:[#allocation2 + $0x1b8] sm:$0xff] %v497
    %559 = vst [vmem:[#allocation2 + $0x1c0] sm:$0xff] %v280
    %560 = vst [vmem:[#allocation2 + $0x1c8] sm:$0xff] %v282
    %561 = vst [vmem:[#allocation2 + $0x1d0] sm:$0xff] %v353
    %562 = vst [vmem:[#allocation2 + $0x1d8] sm:$0xff] %v355
    %563 = vst [vmem:[#allocation2 + $0x1e0] sm:$0xff] %v426
    %564 = vst [vmem:[#allocation2 + $0x1e8] sm:$0xff] %v428
    %565 = vst [vmem:[#allocation2 + $0x1f0] sm:$0xff] %v499
    %566 = vst [vmem:[#allocation2 + $0x1f8] sm:$0xff] %v501
    %v567 = vld [vmem:[#allocation3] sm:$0xff]
    %v568 = vld [vmem:[#allocation3 + $0x8] sm:$0xff]
    %v569 = vld [vmem:[#allocation3 + $0x10] sm:$0xff]
    %v570 = vld [vmem:[#allocation3 + $0x18] sm:$0xff]
    %v571 = vld [vmem:[#allocation3 + $0x20] sm:$0xff]
    %v572 = vld [vmem:[#allocation3 + $0x28] sm:$0xff]
    %v573 = vld [vmem:[#allocation3 + $0x30] sm:$0xff]
    %v574 = vld [vmem:[#allocation3 + $0x38] sm:$0xff]
    %v575 = vld [vmem:[#allocation3 + $0x40] sm:$0xff]
    %v576 = vld [vmem:[#allocation3 + $0x48] sm:$0xff]
    %v577 = vld [vmem:[#allocation3 + $0x50] sm:$0xff]
    %v578 = vld [vmem:[#allocation3 + $0x58] sm:$0xff]
    %v579 = vld [vmem:[#allocation3 + $0x60] sm:$0xff]
    %v580 = vld [vmem:[#allocation3 + $0x68] sm:$0xff]
    %v581 = vld [vmem:[#allocation3 + $0x70] sm:$0xff]
    %v582 = vld [vmem:[#allocation3 + $0x78] sm:$0xff]
    %v583 = vld [vmem:[#allocation3 + $0x80] sm:$0xff]
    %v584 = vld [vmem:[#allocation3 + $0x88] sm:$0xff]
    %v585 = vld [vmem:[#allocation3 + $0x90] sm:$0xff]
    %v586 = vld [vmem:[#allocation3 + $0x98] sm:$0xff]
    %v587 = vld [vmem:[#allocation3 + $0xa0] sm:$0xff]
    %v588 = vld [vmem:[#allocation3 + $0xa8] sm:$0xff]
    %v589 = vld [vmem:[#allocation3 + $0xb0] sm:$0xff]
    %v590 = vld [vmem:[#allocation3 + $0xb8] sm:$0xff]
    %v591 = vld [vmem:[#allocation3 + $0xc0] sm:$0xff]
    %v592 = vld [vmem:[#allocation3 + $0xc8] sm:$0xff]
    %v593 = vld [vmem:[#allocation3 + $0xd0] sm:$0xff]
    %v594 = vld [vmem:[#allocation3 + $0xd8] sm:$0xff]
    %v595 = vld [vmem:[#allocation3 + $0xe0] sm:$0xff]
    %v596 = vld [vmem:[#allocation3 + $0xe8] sm:$0xff]
    %v597 = vld [vmem:[#allocation3 + $0xf0] sm:$0xff]
    %v598 = vld [vmem:[#allocation3 + $0xf8] sm:$0xff]
    %v599 = vld [vmem:[#allocation3 + $0x100] sm:$0xff]
    %v600 = vld [vmem:[#allocation3 + $0x108] sm:$0xff]
    %v601 = vld [vmem:[#allocation3 + $0x110] sm:$0xff]
    %v602 = vld [vmem:[#allocation3 + $0x118] sm:$0xff]
    %v603 = vld [vmem:[#allocation3 + $0x120] sm:$0xff]
    %v604 = vld [vmem:[#allocation3 + $0x128] sm:$0xff]
    %v605 = vld [vmem:[#allocation3 + $0x130] sm:$0xff]
    %v606 = vld [vmem:[#allocation3 + $0x138] sm:$0xff]
    %v607 = vld [vmem:[#allocation3 + $0x140] sm:$0xff]
    %v608 = vld [vmem:[#allocation3 + $0x148] sm:$0xff]
    %v609 = vld [vmem:[#allocation3 + $0x150] sm:$0xff]
    %v610 = vld [vmem:[#allocation3 + $0x158] sm:$0xff]
    %v611 = vld [vmem:[#allocation3 + $0x160] sm:$0xff]
    %v612 = vld [vmem:[#allocation3 + $0x168] sm:$0xff]
    %v613 = vld [vmem:[#allocation3 + $0x170] sm:$0xff]
    %v614 = vld [vmem:[#allocation3 + $0x178] sm:$0xff]
    %v615 = vld [vmem:[#allocation3 + $0x180] sm:$0xff]
    %v616 = vld [vmem:[#allocation3 + $0x188] sm:$0xff]
    %v617 = vld [vmem:[#allocation3 + $0x190] sm:$0xff]
    %v618 = vld [vmem:[#allocation3 + $0x198] sm:$0xff]
    %v619 = vld [vmem:[#allocation3 + $0x1a0] sm:$0xff]
    %v620 = vld [vmem:[#allocation3 + $0x1a8] sm:$0xff]
    %v621 = vld [vmem:[#allocation3 + $0x1b0] sm:$0xff]
    %v622 = vld [vmem:[#allocation3 + $0x1b8] sm:$0xff]
    %v623 = vld [vmem:[#allocation3 + $0x1c0] sm:$0xff]
    %v624 = vld [vmem:[#allocation3 + $0x1c8] sm:$0xff]
    %v625 = vld [vmem:[#allocation3 + $0x1d0] sm:$0xff]
    %v626 = vld [vmem:[#allocation3 + $0x1d8] sm:$0xff]
    %v627 = vld [vmem:[#allocation3 + $0x1e0] sm:$0xff]
    %v628 = vld [vmem:[#allocation3 + $0x1e8] sm:$0xff]
    %v629 = vld [vmem:[#allocation3 + $0x1f0] sm:$0xff]
    %v630 = vld [vmem:[#allocation3 + $0x1f8] sm:$0xff]
    %v631 = vld [vmem:[#allocation3 + $0x200] sm:$0xff]
    %v632 = vld [vmem:[#allocation3 + $0x208] sm:$0xff]
    %v633 = vld [vmem:[#allocation3 + $0x210] sm:$0xff]
    %v634 = vld [vmem:[#allocation3 + $0x218] sm:$0xff]
    %v635 = vld [vmem:[#allocation3 + $0x220] sm:$0xff]
    %v636 = vld [vmem:[#allocation3 + $0x228] sm:$0xff]
    %v637 = vld [vmem:[#allocation3 + $0x230] sm:$0xff]
    %v638 = vld [vmem:[#allocation3 + $0x238] sm:$0xff]
    %v639 = vld [vmem:[#allocation3 + $0x240] sm:$0xff]
    %v640 = vld [vmem:[#allocation3 + $0x248] sm:$0xff]
    %v641 = vld [vmem:[#allocation3 + $0x250] sm:$0xff]
    %v642 = vld [vmem:[#allocation3 + $0x258] sm:$0xff]
    %v643 = vld [vmem:[#allocation3 + $0x260] sm:$0xff]
    %v644 = vld [vmem:[#allocation3 + $0x268] sm:$0xff]
    %v645 = vld [vmem:[#allocation3 + $0x270] sm:$0xff]
    %v646 = vld [vmem:[#allocation3 + $0x278] sm:$0xff]
    %v647 = vld [vmem:[#allocation3 + $0x280] sm:$0xff]
    %v648 = vld [vmem:[#allocation3 + $0x288] sm:$0xff]
    %v649 = vld [vmem:[#allocation3 + $0x290] sm:$0xff]
    %v650 = vld [vmem:[#allocation3 + $0x298] sm:$0xff]
    %v651 = vld [vmem:[#allocation3 + $0x2a0] sm:$0xff]
    %v652 = vld [vmem:[#allocation3 + $0x2a8] sm:$0xff]
    %v653 = vld [vmem:[#allocation3 + $0x2b0] sm:$0xff]
    %v654 = vld [vmem:[#allocation3 + $0x2b8] sm:$0xff]
    %v655 = vld [vmem:[#allocation3 + $0x2c0] sm:$0xff]
    %v656 = vld [vmem:[#allocation3 + $0x2c8] sm:$0xff]
    %v657 = vld [vmem:[#allocation3 + $0x2d0] sm:$0xff]
    %v658 = vld [vmem:[#allocation3 + $0x2d8] sm:$0xff]
    %v659 = vld [vmem:[#allocation3 + $0x2e0] sm:$0xff]
    %v660 = vld [vmem:[#allocation3 + $0x2e8] sm:$0xff]
    %v661 = vld [vmem:[#allocation3 + $0x2f0] sm:$0xff]
    %v662 = vld [vmem:[#allocation3 + $0x2f8] sm:$0xff]
    %v663 = vld [vmem:[#allocation3 + $0x300] sm:$0xff]
    %v664 = vld [vmem:[#allocation3 + $0x308] sm:$0xff]
    %v665 = vld [vmem:[#allocation3 + $0x310] sm:$0xff]
    %v666 = vld [vmem:[#allocation3 + $0x318] sm:$0xff]
    %v667 = vld [vmem:[#allocation3 + $0x320] sm:$0xff]
    %v668 = vld [vmem:[#allocation3 + $0x328] sm:$0xff]
    %v669 = vld [vmem:[#allocation3 + $0x330] sm:$0xff]
    %v670 = vld [vmem:[#allocation3 + $0x338] sm:$0xff]
    %v671 = vld [vmem:[#allocation3 + $0x340] sm:$0xff]
    %v672 = vld [vmem:[#allocation3 + $0x348] sm:$0xff]
    %v673 = vld [vmem:[#allocation3 + $0x350] sm:$0xff]
    %v674 = vld [vmem:[#allocation3 + $0x358] sm:$0xff]
    %v675 = vld [vmem:[#allocation3 + $0x360] sm:$0xff]
    %v676 = vld [vmem:[#allocation3 + $0x368] sm:$0xff]
    %v677 = vld [vmem:[#allocation3 + $0x370] sm:$0xff]
    %v678 = vld [vmem:[#allocation3 + $0x378] sm:$0xff]
    %v679 = vld [vmem:[#allocation3 + $0x380] sm:$0xff]
    %v680 = vld [vmem:[#allocation3 + $0x388] sm:$0xff]
    %v681 = vld [vmem:[#allocation3 + $0x390] sm:$0xff]
    %v682 = vld [vmem:[#allocation3 + $0x398] sm:$0xff]
    %v683 = vld [vmem:[#allocation3 + $0x3a0] sm:$0xff]
    %v684 = vld [vmem:[#allocation3 + $0x3a8] sm:$0xff]
    %v685 = vld [vmem:[#allocation3 + $0x3b0] sm:$0xff]
    %v686 = vld [vmem:[#allocation3 + $0x3b8] sm:$0xff]
    %v687 = vld [vmem:[#allocation3 + $0x3c0] sm:$0xff]
    %v688 = vld [vmem:[#allocation3 + $0x3c8] sm:$0xff]
    %v689 = vld [vmem:[#allocation3 + $0x3d0] sm:$0xff]
    %v690 = vld [vmem:[#allocation3 + $0x3d8] sm:$0xff]
    %v691 = vld [vmem:[#allocation3 + $0x3e0] sm:$0xff]
    %v692 = vld [vmem:[#allocation3 + $0x3e8] sm:$0xff]
    %v693 = vld [vmem:[#allocation3 + $0x3f0] sm:$0xff]
    %v694 = vld [vmem:[#allocation3 + $0x3f8] sm:$0xff]
    %v695 = vld [vmem:[#allocation2] sm:$0xff]
    %v696 = vld [vmem:[#allocation2 + $0x8] sm:$0xff]
    %v697 = vld [vmem:[#allocation2 + $0x10] sm:$0xff]
    %v698 = vld [vmem:[#allocation2 + $0x18] sm:$0xff]
    %v699 = vld [vmem:[#allocation2 + $0x20] sm:$0xff]
    %v700 = vld [vmem:[#allocation2 + $0x28] sm:$0xff]
    %v701 = vld [vmem:[#allocation2 + $0x30] sm:$0xff]
    %v702 = vld [vmem:[#allocation2 + $0x38] sm:$0xff]
    %v831 = vunpack.c.l.b16 %v567
    %v832 = vunpack.c.h.b16 %v567
    %v833 = vunpack.c.l.b16 %v568
    %v834 = vunpack.c.h.b16 %v568
    %v835 = vunpack.c.l.b16 %v569
    %v836 = vunpack.c.h.b16 %v569
    %v837 = vunpack.c.l.b16 %v570
    %v838 = vunpack.c.h.b16 %v570
    %v839 = vunpack.c.l.b16 %v571
    %v840 = vunpack.c.h.b16 %v571
    %v841 = vunpack.c.l.b16 %v572
    %v842 = vunpack.c.h.b16 %v572
    %v843 = vunpack.c.l.b16 %v573
    %v844 = vunpack.c.h.b16 %v573
    %v845 = vunpack.c.l.b16 %v574
    %v846 = vunpack.c.h.b16 %v574
    %v847 = vunpack.c.l.b16 %v575
    %v848 = vunpack.c.h.b16 %v575
    %v849 = vunpack.c.l.b16 %v576
    %v850 = vunpack.c.h.b16 %v576
    %v851 = vunpack.c.l.b16 %v577
    %v852 = vunpack.c.h.b16 %v577
    %v853 = vunpack.c.l.b16 %v578
    %v854 = vunpack.c.h.b16 %v578
    %v855 = vunpack.c.l.b16 %v579
    %v856 = vunpack.c.h.b16 %v579
    %v857 = vunpack.c.l.b16 %v580
    %v858 = vunpack.c.h.b16 %v580
    %v859 = vunpack.c.l.b16 %v581
    %v860 = vunpack.c.h.b16 %v581
    %v861 = vunpack.c.l.b16 %v582
    %v862 = vunpack.c.h.b16 %v582
    %v863 = vunpack.c.l.b16 %v583
    %v864 = vunpack.c.h.b16 %v583
    %v865 = vunpack.c.l.b16 %v584
    %v866 = vunpack.c.h.b16 %v584
    %v867 = vunpack.c.l.b16 %v585
    %v868 = vunpack.c.h.b16 %v585
    %v869 = vunpack.c.l.b16 %v586
    %v870 = vunpack.c.h.b16 %v586
    %v871 = vunpack.c.l.b16 %v587
    %v872 = vunpack.c.h.b16 %v587
    %v873 = vunpack.c.l.b16 %v588
    %v874 = vunpack.c.h.b16 %v588
    %v875 = vunpack.c.l.b16 %v589
    %v876 = vunpack.c.h.b16 %v589
    %v877 = vunpack.c.l.b16 %v590
    %v878 = vunpack.c.h.b16 %v590
    %v879 = vunpack.c.l.b16 %v591
    %v880 = vunpack.c.h.b16 %v591
    %v881 = vunpack.c.l.b16 %v592
    %v882 = vunpack.c.h.b16 %v592
    %v883 = vunpack.c.l.b16 %v593
    %v884 = vunpack.c.h.b16 %v593
    %v885 = vunpack.c.l.b16 %v594
    %v886 = vunpack.c.h.b16 %v594
    %v887 = vunpack.c.l.b16 %v595
    %v888 = vunpack.c.h.b16 %v595
    %v889 = vunpack.c.l.b16 %v596
    %v890 = vunpack.c.h.b16 %v596
    %v891 = vunpack.c.l.b16 %v597
    %v892 = vunpack.c.h.b16 %v597
    %v893 = vunpack.c.l.b16 %v598
    %v894 = vunpack.c.h.b16 %v598
    %v895 = vunpack.c.l.b16 %v599
    %v896 = vunpack.c.h.b16 %v599
    %v897 = vunpack.c.l.b16 %v600
    %v898 = vunpack.c.h.b16 %v600
    %v899 = vunpack.c.l.b16 %v601
    %v900 = vunpack.c.h.b16 %v601
    %v901 = vunpack.c.l.b16 %v602
    %v902 = vunpack.c.h.b16 %v602
    %v903 = vunpack.c.l.b16 %v603
    %v904 = vunpack.c.h.b16 %v603
    %v905 = vunpack.c.l.b16 %v604
    %v906 = vunpack.c.h.b16 %v604
    %v907 = vunpack.c.l.b16 %v605
    %v908 = vunpack.c.h.b16 %v605
    %v909 = vunpack.c.l.b16 %v606
    %v910 = vunpack.c.h.b16 %v606
    %v911 = vunpack.c.l.b16 %v607
    %v912 = vunpack.c.h.b16 %v607
    %v913 = vunpack.c.l.b16 %v608
    %v914 = vunpack.c.h.b16 %v608
    %v915 = vunpack.c.l.b16 %v609
    %v916 = vunpack.c.h.b16 %v609
    %v917 = vunpack.c.l.b16 %v610
    %v918 = vunpack.c.h.b16 %v610
    %v919 = vunpack.c.l.b16 %v611
    %v920 = vunpack.c.h.b16 %v611
    %v921 = vunpack.c.l.b16 %v612
    %v922 = vunpack.c.h.b16 %v612
    %v923 = vunpack.c.l.b16 %v613
    %v924 = vunpack.c.h.b16 %v613
    %v925 = vunpack.c.l.b16 %v614
    %v926 = vunpack.c.h.b16 %v614
    %v927 = vunpack.c.l.b16 %v615
    %v928 = vunpack.c.h.b16 %v615
    %v929 = vunpack.c.l.b16 %v616
    %v930 = vunpack.c.h.b16 %v616
    %v931 = vunpack.c.l.b16 %v617
    %v932 = vunpack.c.h.b16 %v617
    %v933 = vunpack.c.l.b16 %v618
    %v934 = vunpack.c.h.b16 %v618
    %v935 = vunpack.c.l.b16 %v619
    %v936 = vunpack.c.h.b16 %v619
    %v937 = vunpack.c.l.b16 %v620
    %v938 = vunpack.c.h.b16 %v620
    %v939 = vunpack.c.l.b16 %v621
    %v940 = vunpack.c.h.b16 %v621
    %v941 = vunpack.c.l.b16 %v622
    %v942 = vunpack.c.h.b16 %v622
    %v943 = vunpack.c.l.b16 %v623
    %v944 = vunpack.c.h.b16 %v623
    %v945 = vunpack.c.l.b16 %v624
    %v946 = vunpack.c.h.b16 %v624
    %v947 = vunpack.c.l.b16 %v625
    %v948 = vunpack.c.h.b16 %v625
    %v949 = vunpack.c.l.b16 %v626
    %v950 = vunpack.c.h.b16 %v626
    %v951 = vunpack.c.l.b16 %v627
    %v952 = vunpack.c.h.b16 %v627
    %v953 = vunpack.c.l.b16 %v628
    %v954 = vunpack.c.h.b16 %v628
    %v955 = vunpack.c.l.b16 %v629
    %v956 = vunpack.c.h.b16 %v629
    %v957 = vunpack.c.l.b16 %v630
    %v958 = vunpack.c.h.b16 %v630
    %v959 = vunpack.c.l.b16 %v631
    %v960 = vunpack.c.h.b16 %v631
    %v961 = vunpack.c.l.b16 %v632
    %v962 = vunpack.c.h.b16 %v632
    %v963 = vunpack.c.l.b16 %v633
    %v964 = vunpack.c.h.b16 %v633
    %v965 = vunpack.c.l.b16 %v634
    %v966 = vunpack.c.h.b16 %v634
    %v967 = vunpack.c.l.b16 %v635
    %v968 = vunpack.c.h.b16 %v635
    %v969 = vunpack.c.l.b16 %v636
    %v970 = vunpack.c.h.b16 %v636
    %v971 = vunpack.c.l.b16 %v637
    %v972 = vunpack.c.h.b16 %v637
    %v973 = vunpack.c.l.b16 %v638
    %v974 = vunpack.c.h.b16 %v638
    %v975 = vunpack.c.l.b16 %v639
    %v976 = vunpack.c.h.b16 %v639
    %v977 = vunpack.c.l.b16 %v640
    %v978 = vunpack.c.h.b16 %v640
    %v979 = vunpack.c.l.b16 %v641
    %v980 = vunpack.c.h.b16 %v641
    %v981 = vunpack.c.l.b16 %v642
    %v982 = vunpack.c.h.b16 %v642
    %v983 = vunpack.c.l.b16 %v643
    %v984 = vunpack.c.h.b16 %v643
    %v985 = vunpack.c.l.b16 %v644
    %v986 = vunpack.c.h.b16 %v644
    %v987 = vunpack.c.l.b16 %v645
    %v988 = vunpack.c.h.b16 %v645
    %v989 = vunpack.c.l.b16 %v646
    %v990 = vunpack.c.h.b16 %v646
    %v991 = vunpack.c.l.b16 %v647
    %v992 = vunpack.c.h.b16 %v647
    %v993 = vunpack.c.l.b16 %v648
    %v994 = vunpack.c.h.b16 %v648
    %v995 = vunpack.c.l.b16 %v649
    %v996 = vunpack.c.h.b16 %v649
    %v997 = vunpack.c.l.b16 %v650
    %v998 = vunpack.c.h.b16 %v650
    %v999 = vunpack.c.l.b16 %v651
    %v1000 = vunpack.c.h.b16 %v651
    %v1001 = vunpack.c.l.b16 %v652
    %v1002 = vunpack.c.h.b16 %v652
    %v1003 = vunpack.c.l.b16 %v653
    %v1004 = vunpack.c.h.b16 %v653
    %v1005 = vunpack.c.l.b16 %v654
    %v1006 = vunpack.c.h.b16 %v654
    %v1007 = vunpack.c.l.b16 %v655
    %v1008 = vunpack.c.h.b16 %v655
    %v1009 = vunpack.c.l.b16 %v656
    %v1010 = vunpack.c.h.b16 %v656
    %v1011 = vunpack.c.l.b16 %v657
    %v1012 = vunpack.c.h.b16 %v657
    %v1013 = vunpack.c.l.b16 %v658
    %v1014 = vunpack.c.h.b16 %v658
    %v1015 = vunpack.c.l.b16 %v659
    %v1016 = vunpack.c.h.b16 %v659
    %v1017 = vunpack.c.l.b16 %v660
    %v1018 = vunpack.c.h.b16 %v660
    %v1019 = vunpack.c.l.b16 %v661
    %v1020 = vunpack.c.h.b16 %v661
    %v1021 = vunpack.c.l.b16 %v662
    %v1022 = vunpack.c.h.b16 %v662
    %v1023 = vunpack.c.l.b16 %v663
    %v1024 = vunpack.c.h.b16 %v663
    %v1025 = vunpack.c.l.b16 %v664
    %v1026 = vunpack.c.h.b16 %v664
    %v1027 = vunpack.c.l.b16 %v665
    %v1028 = vunpack.c.h.b16 %v665
    %v1029 = vunpack.c.l.b16 %v666
    %v1030 = vunpack.c.h.b16 %v666
    %v1031 = vunpack.c.l.b16 %v667
    %v1032 = vunpack.c.h.b16 %v667
    %v1033 = vunpack.c.l.b16 %v668
    %v1034 = vunpack.c.h.b16 %v668
    %v1035 = vunpack.c.l.b16 %v669
    %v1036 = vunpack.c.h.b16 %v669
    %v1037 = vunpack.c.l.b16 %v670
    %v1038 = vunpack.c.h.b16 %v670
    %v1039 = vunpack.c.l.b16 %v671
    %v1040 = vunpack.c.h.b16 %v671
    %v1041 = vunpack.c.l.b16 %v672
    %v1042 = vunpack.c.h.b16 %v672
    %v1043 = vunpack.c.l.b16 %v673
    %v1044 = vunpack.c.h.b16 %v673
    %v1045 = vunpack.c.l.b16 %v674
    %v1046 = vunpack.c.h.b16 %v674
    %v1047 = vunpack.c.l.b16 %v675
    %v1048 = vunpack.c.h.b16 %v675
    %v1049 = vunpack.c.l.b16 %v676
    %v1050 = vunpack.c.h.b16 %v676
    %v1051 = vunpack.c.l.b16 %v677
    %v1052 = vunpack.c.h.b16 %v677
    %v1053 = vunpack.c.l.b16 %v678
    %v1054 = vunpack.c.h.b16 %v678
    %v1055 = vunpack.c.l.b16 %v679
    %v1056 = vunpack.c.h.b16 %v679
    %v1057 = vunpack.c.l.b16 %v680
    %v1058 = vunpack.c.h.b16 %v680
    %v1059 = vunpack.c.l.b16 %v681
    %v1060 = vunpack.c.h.b16 %v681
    %v1061 = vunpack.c.l.b16 %v682
    %v1062 = vunpack.c.h.b16 %v682
    %v1063 = vunpack.c.l.b16 %v683
    %v1064 = vunpack.c.h.b16 %v683
    %v1065 = vunpack.c.l.b16 %v684
    %v1066 = vunpack.c.h.b16 %v684
    %v1067 = vunpack.c.l.b16 %v685
    %v1068 = vunpack.c.h.b16 %v685
    %v1069 = vunpack.c.l.b16 %v686
    %v1070 = vunpack.c.h.b16 %v686
    %v1071 = vunpack.c.l.b16 %v687
    %v1072 = vunpack.c.h.b16 %v687
    %v1073 = vunpack.c.l.b16 %v688
    %v1074 = vunpack.c.h.b16 %v688
    %v1075 = vunpack.c.l.b16 %v689
    %v1076 = vunpack.c.h.b16 %v689
    %v1077 = vunpack.c.l.b16 %v690
    %v1078 = vunpack.c.h.b16 %v690
    %v1079 = vunpack.c.l.b16 %v691
    %v1080 = vunpack.c.h.b16 %v691
    %v1081 = vunpack.c.l.b16 %v692
    %v1082 = vunpack.c.h.b16 %v692
    %v1083 = vunpack.c.l.b16 %v693
    %v1084 = vunpack.c.h.b16 %v693
    %v1085 = vunpack.c.l.b16 %v694
    %v1086 = vunpack.c.h.b16 %v694
    %v1087 = vpack.c.b16 %v839, %v831
    %v1088 = vpack.c.b16 %v840, %v832
    %v1089 = vpack.c.b16 %v841, %v833
    %v1090 = vpack.c.b16 %v842, %v834
    %v1091 = vpack.c.b16 %v843, %v835
    %v1092 = vpack.c.b16 %v844, %v836
    %v1093 = vpack.c.b16 %v845, %v837
    %v1094 = vpack.c.b16 %v846, %v838
    %v1095 = vpack.c.b16 %v855, %v847
    %v1096 = vpack.c.b16 %v856, %v848
    %v1097 = vpack.c.b16 %v857, %v849
    %v1098 = vpack.c.b16 %v858, %v850
    %v1099 = vpack.c.b16 %v859, %v851
    %v1100 = vpack.c.b16 %v860, %v852
    %v1101 = vpack.c.b16 %v861, %v853
    %v1102 = vpack.c.b16 %v862, %v854
    %v1103 = vpack.c.b16 %v871, %v863
    %v1104 = vpack.c.b16 %v872, %v864
    %v1105 = vpack.c.b16 %v873, %v865
    %v1106 = vpack.c.b16 %v874, %v866
    %v1107 = vpack.c.b16 %v875, %v867
    %v1108 = vpack.c.b16 %v876, %v868
    %v1109 = vpack.c.b16 %v877, %v869
    %v1110 = vpack.c.b16 %v878, %v870
    %v1111 = vpack.c.b16 %v887, %v879
    %v1112 = vpack.c.b16 %v888, %v880
    %v1113 = vpack.c.b16 %v889, %v881
    %v1114 = vpack.c.b16 %v890, %v882
    %v1115 = vpack.c.b16 %v891, %v883
    %v1116 = vpack.c.b16 %v892, %v884
    %v1117 = vpack.c.b16 %v893, %v885
    %v1118 = vpack.c.b16 %v894, %v886
    %v1119 = vpack.c.b16 %v903, %v895
    %v1120 = vpack.c.b16 %v904, %v896
    %v1121 = vpack.c.b16 %v905, %v897
    %v1122 = vpack.c.b16 %v906, %v898
    %v1123 = vpack.c.b16 %v907, %v899
    %v1124 = vpack.c.b16 %v908, %v900
    %v1125 = vpack.c.b16 %v909, %v901
    %v1126 = vpack.c.b16 %v910, %v902
    %v1127 = vpack.c.b16 %v919, %v911
    %v1128 = vpack.c.b16 %v920, %v912
    %v1129 = vpack.c.b16 %v921, %v913
    %v1130 = vpack.c.b16 %v922, %v914
    %v1131 = vpack.c.b16 %v923, %v915
    %v1132 = vpack.c.b16 %v924, %v916
    %v1133 = vpack.c.b16 %v925, %v917
    %v1134 = vpack.c.b16 %v926, %v918
    %v1135 = vpack.c.b16 %v935, %v927
    %v1136 = vpack.c.b16 %v936, %v928
    %v1137 = vpack.c.b16 %v937, %v929
    %v1138 = vpack.c.b16 %v938, %v930
    %v1139 = vpack.c.b16 %v939, %v931
    %v1140 = vpack.c.b16 %v940, %v932
    %v1141 = vpack.c.b16 %v941, %v933
    %v1142 = vpack.c.b16 %v942, %v934
    %v1143 = vpack.c.b16 %v951, %v943
    %v1144 = vpack.c.b16 %v952, %v944
    %v1145 = vpack.c.b16 %v953, %v945
    %v1146 = vpack.c.b16 %v954, %v946
    %v1147 = vpack.c.b16 %v955, %v947
    %v1148 = vpack.c.b16 %v956, %v948
    %v1149 = vpack.c.b16 %v957, %v949
    %v1150 = vpack.c.b16 %v958, %v950
    %v1151 = vpack.c.b16 %v967, %v959
    %v1152 = vpack.c.b16 %v968, %v960
    %v1153 = vpack.c.b16 %v969, %v961
    %v1154 = vpack.c.b16 %v970, %v962
    %v1155 = vpack.c.b16 %v971, %v963
    %v1156 = vpack.c.b16 %v972, %v964
    %v1157 = vpack.c.b16 %v973, %v965
    %v1158 = vpack.c.b16 %v974, %v966
    %v1159 = vpack.c.b16 %v983, %v975
    %v1160 = vpack.c.b16 %v984, %v976
    %v1161 = vpack.c.b16 %v985, %v977
    %v1162 = vpack.c.b16 %v986, %v978
    %v1163 = vpack.c.b16 %v987, %v979
    %v1164 = vpack.c.b16 %v988, %v980
    %v1165 = vpack.c.b16 %v989, %v981
    %v1166 = vpack.c.b16 %v990, %v982
    %v1167 = vpack.c.b16 %v999, %v991
    %v1168 = vpack.c.b16 %v1000, %v992
    %v1169 = vpack.c.b16 %v1001, %v993
    %v1170 = vpack.c.b16 %v1002, %v994
    %v1171 = vpack.c.b16 %v1003, %v995
    %v1172 = vpack.c.b16 %v1004, %v996
    %v1173 = vpack.c.b16 %v1005, %v997
    %v1174 = vpack.c.b16 %v1006, %v998
    %v1175 = vpack.c.b16 %v1015, %v1007
    %v1176 = vpack.c.b16 %v1016, %v1008
    %v1177 = vpack.c.b16 %v1017, %v1009
    %v1178 = vpack.c.b16 %v1018, %v1010
    %v1179 = vpack.c.b16 %v1019, %v1011
    %v1180 = vpack.c.b16 %v1020, %v1012
    %v1181 = vpack.c.b16 %v1021, %v1013
    %v1182 = vpack.c.b16 %v1022, %v1014
    %v1183 = vpack.c.b16 %v1031, %v1023
    %v1184 = vpack.c.b16 %v1032, %v1024
    %v1185 = vpack.c.b16 %v1033, %v1025
    %v1186 = vpack.c.b16 %v1034, %v1026
    %v1187 = vpack.c.b16 %v1035, %v1027
    %v1188 = vpack.c.b16 %v1036, %v1028
    %v1189 = vpack.c.b16 %v1037, %v1029
    %v1190 = vpack.c.b16 %v1038, %v1030
    %v1191 = vpack.c.b16 %v1047, %v1039
    %v1192 = vpack.c.b16 %v1048, %v1040
    %v1193 = vpack.c.b16 %v1049, %v1041
    %v1194 = vpack.c.b16 %v1050, %v1042
    %v1195 = vpack.c.b16 %v1051, %v1043
    %v1196 = vpack.c.b16 %v1052, %v1044
    %v1197 = vpack.c.b16 %v1053, %v1045
    %v1198 = vpack.c.b16 %v1054, %v1046
    %v1199 = vpack.c.b16 %v1063, %v1055
    %v1200 = vpack.c.b16 %v1064, %v1056
    %v1201 = vpack.c.b16 %v1065, %v1057
    %v1202 = vpack.c.b16 %v1066, %v1058
    %v1203 = vpack.c.b16 %v1067, %v1059
    %v1204 = vpack.c.b16 %v1068, %v1060
    %v1205 = vpack.c.b16 %v1069, %v1061
    %v1206 = vpack.c.b16 %v1070, %v1062
    %v1207 = vpack.c.b16 %v1079, %v1071
    %v1208 = vpack.c.b16 %v1080, %v1072
    %v1209 = vpack.c.b16 %v1081, %v1073
    %v1210 = vpack.c.b16 %v1082, %v1074
    %v1211 = vpack.c.b16 %v1083, %v1075
    %v1212 = vpack.c.b16 %v1084, %v1076
    %v1213 = vpack.c.b16 %v1085, %v1077
    %v1214 = vpack.c.b16 %v1086, %v1078
    %1343 = vmatprep.subr.bf16.mxu0 %v1088
    %1344 = vmatpush1.bf16.msra.mxu0 %v1087
    %1345 = vmatprep.subr.bf16.mxu0 %v1096
    %1346 = vmatpush1.bf16.msra.mxu0 %v1095
    %1347 = vmatprep.subr.bf16.mxu0 %v1104
    %1348 = vmatpush1.bf16.msra.mxu0 %v1103
    %1349 = vmatprep.subr.bf16.mxu0 %v1112
    %1350 = vmatpush1.bf16.msra.mxu0 %v1111
    %1351 = vmatprep.subr.bf16.mxu0 %v1120
    %1352 = vmatpush1.bf16.msra.mxu0 %v1119
    %1353 = vmatprep.subr.bf16.mxu0 %v1128
    %1354 = vmatpush1.bf16.msra.mxu0 %v1127
    %1355 = vmatprep.subr.bf16.mxu0 %v1136
    %1356 = vmatpush1.bf16.msra.mxu0 %v1135
    %1357 = vmatprep.subr.bf16.mxu0 %v1144
    %1358 = vmatpush1.bf16.msra.mxu0 %v1143
    %1359 = vmatprep.subr.bf16.mxu0 %v1152
    %1360 = vmatpush1.bf16.msra.mxu0 %v1151
    %1361 = vmatprep.subr.bf16.mxu0 %v1160
    %1362 = vmatpush1.bf16.msra.mxu0 %v1159
    %1363 = vmatprep.subr.bf16.mxu0 %v1168
    %1364 = vmatpush1.bf16.msra.mxu0 %v1167
    %1365 = vmatprep.subr.bf16.mxu0 %v1176
    %1366 = vmatpush1.bf16.msra.mxu0 %v1175
    %1367 = vmatprep.subr.bf16.mxu0 %v1184
    %1368 = vmatpush1.bf16.msra.mxu0 %v1183
    %1369 = vmatprep.subr.bf16.mxu0 %v1192
    %1370 = vmatpush1.bf16.msra.mxu0 %v1191
    %1371 = vmatprep.subr.bf16.mxu0 %v1200
    %1372 = vmatpush1.bf16.msra.mxu0 %v1199
    %1373 = vmatprep.subr.bf16.mxu0 %v1208
    %1374 = vmatpush1.bf16.msra.mxu0 %v1207
    %1375 = vmatprep.mubr.bf16.mxu0 0
    %1376 = vmatmul.mubr.bf16.gmra.mrb[0].mxu0 0
    %v1377 = vpop.f32.mrb[0].mxu0
    %v1378 = vadd.f32 %v695, %v1377
    %v1379 = vpop.f32.mrb[0].mxu0
    %v1380 = vadd.f32 %v696, %v1379
    %v1381 = vpop.f32.mrb[0].mxu0
    %v1382 = vpop.f32.mrb[0].mxu0
    %1383 = vdwg.mxu0
    %1384 = vmatprep.subr.bf16.mxu0 %v1090
    %1385 = vmatpush1.bf16.msra.mxu0 %v1089
    %1386 = vmatprep.subr.bf16.mxu0 %v1098
    %1387 = vmatpush1.bf16.msra.mxu0 %v1097
    %1388 = vmatprep.subr.bf16.mxu0 %v1106
    %1389 = vmatpush1.bf16.msra.mxu0 %v1105
    %1390 = vmatprep.subr.bf16.mxu0 %v1114
    %1391 = vmatpush1.bf16.msra.mxu0 %v1113
    %1392 = vmatprep.subr.bf16.mxu0 %v1122
    %1393 = vmatpush1.bf16.msra.mxu0 %v1121
    %1394 = vmatprep.subr.bf16.mxu0 %v1130
    %1395 = vmatpush1.bf16.msra.mxu0 %v1129
    %1396 = vmatprep.subr.bf16.mxu0 %v1138
    %1397 = vmatpush1.bf16.msra.mxu0 %v1137
    %1398 = vmatprep.subr.bf16.mxu0 %v1146
    %1399 = vmatpush1.bf16.msra.mxu0 %v1145
    %1400 = vmatprep.subr.bf16.mxu0 %v1154
    %1401 = vmatpush1.bf16.msra.mxu0 %v1153
    %1402 = vmatprep.subr.bf16.mxu0 %v1162
    %1403 = vmatpush1.bf16.msra.mxu0 %v1161
    %1404 = vmatprep.subr.bf16.mxu0 %v1170
    %1405 = vmatpush1.bf16.msra.mxu0 %v1169
    %1406 = vmatprep.subr.bf16.mxu0 %v1178
    %1407 = vmatpush1.bf16.msra.mxu0 %v1177
    %1408 = vmatprep.subr.bf16.mxu0 %v1186
    %1409 = vmatpush1.bf16.msra.mxu0 %v1185
    %1410 = vmatprep.subr.bf16.mxu0 %v1194
    %1411 = vmatpush1.bf16.msra.mxu0 %v1193
    %1412 = vmatprep.subr.bf16.mxu0 %v1202
    %1413 = vmatpush1.bf16.msra.mxu0 %v1201
    %1414 = vmatprep.subr.bf16.mxu0 %v1210
    %1415 = vmatpush1.bf16.msra.mxu0 %v1209
    %1416 = vmatprep.mubr.bf16.mxu0 0
    %1417 = vmatmul.mubr.bf16.gmra.mrb[0].mxu0 0
    %v1418 = vpop.f32.mrb[0].mxu0
    %v1419 = vadd.f32 %v697, %v1418
    %v1420 = vpop.f32.mrb[0].mxu0
    %v1421 = vadd.f32 %v698, %v1420
    %v1422 = vpop.f32.mrb[0].mxu0
    %v1423 = vpop.f32.mrb[0].mxu0
    %1424 = vdwg.mxu0
    %1425 = vmatprep.subr.bf16.mxu0 %v1092
    %1426 = vmatpush1.bf16.msra.mxu0 %v1091
    %1427 = vmatprep.subr.bf16.mxu0 %v1100
    %1428 = vmatpush1.bf16.msra.mxu0 %v1099
    %1429 = vmatprep.subr.bf16.mxu0 %v1108
    %1430 = vmatpush1.bf16.msra.mxu0 %v1107
    %1431 = vmatprep.subr.bf16.mxu0 %v1116
    %1432 = vmatpush1.bf16.msra.mxu0 %v1115
    %1433 = vmatprep.subr.bf16.mxu0 %v1124
    %1434 = vmatpush1.bf16.msra.mxu0 %v1123
    %1435 = vmatprep.subr.bf16.mxu0 %v1132
    %1436 = vmatpush1.bf16.msra.mxu0 %v1131
    %1437 = vmatprep.subr.bf16.mxu0 %v1140
    %1438 = vmatpush1.bf16.msra.mxu0 %v1139
    %1439 = vmatprep.subr.bf16.mxu0 %v1148
    %1440 = vmatpush1.bf16.msra.mxu0 %v1147
    %1441 = vmatprep.subr.bf16.mxu0 %v1156
    %1442 = vmatpush1.bf16.msra.mxu0 %v1155
    %1443 = vmatprep.subr.bf16.mxu0 %v1164
    %1444 = vmatpush1.bf16.msra.mxu0 %v1163
    %1445 = vmatprep.subr.bf16.mxu0 %v1172
    %1446 = vmatpush1.bf16.msra.mxu0 %v1171
    %1447 = vmatprep.subr.bf16.mxu0 %v1180
    %1448 = vmatpush1.bf16.msra.mxu0 %v1179
    %1449 = vmatprep.subr.bf16.mxu0 %v1188
    %1450 = vmatpush1.bf16.msra.mxu0 %v1187
    %1451 = vmatprep.subr.bf16.mxu0 %v1196
    %1452 = vmatpush1.bf16.msra.mxu0 %v1195
    %1453 = vmatprep.subr.bf16.mxu0 %v1204
    %1454 = vmatpush1.bf16.msra.mxu0 %v1203
    %1455 = vmatprep.subr.bf16.mxu0 %v1212
    %1456 = vmatpush1.bf16.msra.mxu0 %v1211
    %1457 = vmatprep.mubr.bf16.mxu0 0
    %1458 = vmatmul.mubr.bf16.gmra.mrb[0].mxu0 0
    %v1459 = vpop.f32.mrb[0].mxu0
    %v1460 = vadd.f32 %v699, %v1459
    %v1461 = vpop.f32.mrb[0].mxu0
    %v1462 = vadd.f32 %v700, %v1461
    %v1463 = vpop.f32.mrb[0].mxu0
    %v1464 = vpop.f32.mrb[0].mxu0
    %1465 = vdwg.mxu0
    %1466 = vmatprep.subr.bf16.mxu0 %v1094
    %1467 = vmatpush1.bf16.msra.mxu0 %v1093
    %1468 = vmatprep.subr.bf16.mxu0 %v1102
    %1469 = vmatpush1.bf16.msra.mxu0 %v1101
    %1470 = vmatprep.subr.bf16.mxu0 %v1110
    %1471 = vmatpush1.bf16.msra.mxu0 %v1109
    %1472 = vmatprep.subr.bf16.mxu0 %v1118
    %1473 = vmatpush1.bf16.msra.mxu0 %v1117
    %1474 = vmatprep.subr.bf16.mxu0 %v1126
    %1475 = vmatpush1.bf16.msra.mxu0 %v1125
    %1476 = vmatprep.subr.bf16.mxu0 %v1134
    %1477 = vmatpush1.bf16.msra.mxu0 %v1133
    %1478 = vmatprep.subr.bf16.mxu0 %v1142
    %1479 = vmatpush1.bf16.msra.mxu0 %v1141
    %1480 = vmatprep.subr.bf16.mxu0 %v1150
    %1481 = vmatpush1.bf16.msra.mxu0 %v1149
    %1482 = vmatprep.subr.bf16.mxu0 %v1158
    %1483 = vmatpush1.bf16.msra.mxu0 %v1157
    %1484 = vmatprep.subr.bf16.mxu0 %v1166
    %1485 = vmatpush1.bf16.msra.mxu0 %v1165
    %1486 = vmatprep.subr.bf16.mxu0 %v1174
    %1487 = vmatpush1.bf16.msra.mxu0 %v1173
    %1488 = vmatprep.subr.bf16.mxu0 %v1182
    %1489 = vmatpush1.bf16.msra.mxu0 %v1181
    %1490 = vmatprep.subr.bf16.mxu0 %v1190
    %1491 = vmatpush1.bf16.msra.mxu0 %v1189
    %1492 = vmatprep.subr.bf16.mxu0 %v1198
    %1493 = vmatpush1.bf16.msra.mxu0 %v1197
    %1494 = vmatprep.subr.bf16.mxu0 %v1206
    %1495 = vmatpush1.bf16.msra.mxu0 %v1205
    %1496 = vmatprep.subr.bf16.mxu0 %v1214
    %1497 = vmatpush1.bf16.msra.mxu0 %v1213
    %1498 = vmatprep.mubr.bf16.mxu0 0
    %1499 = vmatmul.mubr.bf16.gmra.mrb[0].mxu0 0
    %v1500 = vpop.f32.mrb[0].mxu0
    %v1501 = vadd.f32 %v701, %v1500
    %v1502 = vpop.f32.mrb[0].mxu0
    %v1503 = vadd.f32 %v702, %v1502
    %v1504 = vpop.f32.mrb[0].mxu0
    %v1505 = vpop.f32.mrb[0].mxu0
    %1506 = vdwg.mxu0
    %v1507 = vxor.u32 %v1378, 2147483648
    %v1508 = vxor.u32 %v1380, 2147483648
    %v1509 = vmul.f32 %v1507, 1.442695
    %v1510 = vpow.pop %v1509
    %v1511 = vmul.f32 %v1508, 1.442695
    %v1512 = vpow.pop %v1511
    %v1513 = vadd.f32 %v1510, 1.0
    %v1514 = vadd.f32 %v1512, 1.0
    %v1515 = vrcp.pop %v1513
    %v1516 = vmul.f32 1.0, %v1515
    %v1517 = vrcp.pop %v1514
    %v1518 = vmul.f32 1.0, %v1517
    %v1519 = vxor.u32 %v1419, 2147483648
    %v1520 = vxor.u32 %v1421, 2147483648
    %v1521 = vmul.f32 %v1519, 1.442695
    %v1522 = vpow.pop %v1521
    %v1523 = vmul.f32 %v1520, 1.442695
    %v1524 = vpow.pop %v1523
    %v1525 = vadd.f32 %v1522, 1.0
    %v1526 = vadd.f32 %v1524, 1.0
    %v1527 = vrcp.pop %v1525
    %v1528 = vmul.f32 1.0, %v1527
    %v1529 = vrcp.pop %v1526
    %v1530 = vmul.f32 1.0, %v1529
    %v1531 = vtanh.pop %v1460
    %v1532 = vtanh.pop %v1462
    %v1533 = vxor.u32 %v1501, 2147483648
    %v1534 = vxor.u32 %v1503, 2147483648
    %v1535 = vmul.f32 %v1533, 1.442695
    %v1536 = vpow.pop %v1535
    %v1537 = vmul.f32 %v1534, 1.442695
    %v1538 = vpow.pop %v1537
    %v1539 = vadd.f32 %v1536, 1.0
    %v1540 = vadd.f32 %v1538, 1.0
    %v1541 = vrcp.pop %v1539
    %v1542 = vmul.f32 1.0, %v1541
    %v1543 = vrcp.pop %v1540
    %v1544 = vmul.f32 1.0, %v1543
    %v1545 = vmul.f32 %v1528, 0.0
    %v1546 = vmul.f32 %v1530, 0.0
    %v1547 = vmul.f32 %v1516, %v1531
    %v1548 = vmul.f32 %v1518, %v1532
    %v1549 = vadd.f32 %v1545, %v1547
    %v1550 = vadd.f32 %v1546, %v1548
    %v1551 = vtanh.pop %v1549
    %v1552 = vtanh.pop %v1550
    %v1553 = vmul.f32 %v1542, %v1551
    %v1554 = vmul.f32 %v1544, %v1552
    %1555 = vst [vmem:[%s4] sm:$0xff] %v1553
    %1556 = vst [vmem:[%s4 + $0x78] sm:$0xff] %v1554
    %v1557 = vpack.c.bf16 %v1553, %v1553
    %v1558 = vpack.c.bf16 %v1554, %v1554
    %v1559 = vld [vmem:[#allocation2 + $0x40] sm:$0xff]
    %v1560 = vld [vmem:[#allocation2 + $0x48] sm:$0xff]
    %v1561 = vld [vmem:[#allocation2 + $0x50] sm:$0xff]
    %v1562 = vld [vmem:[#allocation2 + $0x58] sm:$0xff]
    %v1563 = vld [vmem:[#allocation2 + $0x60] sm:$0xff]
    %v1564 = vld [vmem:[#allocation2 + $0x68] sm:$0xff]
    %v1565 = vld [vmem:[#allocation2 + $0x70] sm:$0xff]
    %v1566 = vld [vmem:[#allocation2 + $0x78] sm:$0xff]
    %1567 = vmatprep.subr.bf16.mxu0 %v1088
    %1568 = vmatpush1.bf16.msra.mxu0 %v1087
    %1569 = vmatprep.subr.bf16.mxu0 %v1096
    %1570 = vmatpush1.bf16.msra.mxu0 %v1095
    %1571 = vmatprep.subr.bf16.mxu0 %v1104
    %1572 = vmatpush1.bf16.msra.mxu0 %v1103
    %1573 = vmatprep.subr.bf16.mxu0 %v1112
    %1574 = vmatpush1.bf16.msra.mxu0 %v1111
    %1575 = vmatprep.subr.bf16.mxu0 %v1120
    %1576 = vmatpush1.bf16.msra.mxu0 %v1119
    %1577 = vmatprep.subr.bf16.mxu0 %v1128
    %1578 = vmatpush1.bf16.msra.mxu0 %v1127
    %1579 = vmatprep.subr.bf16.mxu0 %v1136
    %1580 = vmatpush1.bf16.msra.mxu0 %v1135
    %1581 = vmatprep.subr.bf16.mxu0 %v1144
    %1582 = vmatpush1.bf16.msra.mxu0 %v1143
    %1583 = vmatprep.subr.bf16.mxu0 %v1152
    %1584 = vmatpush1.bf16.msra.mxu0 %v1151
    %1585 = vmatprep.subr.bf16.mxu0 %v1160
    %1586 = vmatpush1.bf16.msra.mxu0 %v1159
    %1587 = vmatprep.subr.bf16.mxu0 %v1168
    %1588 = vmatpush1.bf16.msra.mxu0 %v1167
    %1589 = vmatprep.subr.bf16.mxu0 %v1176
    %1590 = vmatpush1.bf16.msra.mxu0 %v1175
    %1591 = vmatprep.subr.bf16.mxu0 %v1184
    %1592 = vmatpush1.bf16.msra.mxu0 %v1183
    %1593 = vmatprep.subr.bf16.mxu0 %v1192
    %1594 = vmatpush1.bf16.msra.mxu0 %v1191
    %1595 = vmatprep.subr.bf16.mxu0 %v1200
    %1596 = vmatpush1.bf16.msra.mxu0 %v1199
    %1597 = vmatprep.subr.bf16.mxu0 %v1208
    %1598 = vmatpush1.bf16.msra.mxu0 %v1207
    %1599 = vmatprep.mubr.bf16.mxu0 %v1558
    %1600 = vmatmul.mubr.bf16.gmra.mrb[0].mxu0 %v1557
    %v1601 = vpop.f32.mrb[0].mxu0
    %v1602 = vadd.f32 %v1559, %v1601
    %v1603 = vpop.f32.mrb[0].mxu0
    %v1604 = vadd.f32 %v1560, %v1603
    %v1605 = vpop.f32.mrb[0].mxu0
    %v1606 = vpop.f32.mrb[0].mxu0
    %1607 = vdwg.mxu0
    %1608 = vmatprep.subr.bf16.mxu0 %v1090
    %1609 = vmatpush1.bf16.msra.mxu0 %v1089
    %1610 = vmatprep.subr.bf16.mxu0 %v1098
    %1611 = vmatpush1.bf16.msra.mxu0 %v1097
    %1612 = vmatprep.subr.bf16.mxu0 %v1106
    %1613 = vmatpush1.bf16.msra.mxu0 %v1105
    %1614 = vmatprep.subr.bf16.mxu0 %v1114
    %1615 = vmatpush1.bf16.msra.mxu0 %v1113
    %1616 = vmatprep.subr.bf16.mxu0 %v1122
    %1617 = vmatpush1.bf16.msra.mxu0 %v1121
    %1618 = vmatprep.subr.bf16.mxu0 %v1130
    %1619 = vmatpush1.bf16.msra.mxu0 %v1129
    %1620 = vmatprep.subr.bf16.mxu0 %v1138
    %1621 = vmatpush1.bf16.msra.mxu0 %v1137
    %1622 = vmatprep.subr.bf16.mxu0 %v1146
    %1623 = vmatpush1.bf16.msra.mxu0 %v1145
    %1624 = vmatprep.subr.bf16.mxu0 %v1154
    %1625 = vmatpush1.bf16.msra.mxu0 %v1153
    %1626 = vmatprep.subr.bf16.mxu0 %v1162
    %1627 = vmatpush1.bf16.msra.mxu0 %v1161
    %1628 = vmatprep.subr.bf16.mxu0 %v1170
    %1629 = vmatpush1.bf16.msra.mxu0 %v1169
    %1630 = vmatprep.subr.bf16.mxu0 %v1178
    %1631 = vmatpush1.bf16.msra.mxu0 %v1177
    %1632 = vmatprep.subr.bf16.mxu0 %v1186
    %1633 = vmatpush1.bf16.msra.mxu0 %v1185
    %1634 = vmatprep.subr.bf16.mxu0 %v1194
    %1635 = vmatpush1.bf16.msra.mxu0 %v1193
    %1636 = vmatprep.subr.bf16.mxu0 %v1202
    %1637 = vmatpush1.bf16.msra.mxu0 %v1201
    %1638 = vmatprep.subr.bf16.mxu0 %v1210
    %1639 = vmatpush1.bf16.msra.mxu0 %v1209
    %1640 = vmatprep.mubr.bf16.mxu0 %v1558
    %1641 = vmatmul.mubr.bf16.gmra.mrb[0].mxu0 %v1557
    %v1642 = vpop.f32.mrb[0].mxu0
    %v1643 = vadd.f32 %v1561, %v1642
    %v1644 = vpop.f32.mrb[0].mxu0
    %v1645 = vadd.f32 %v1562, %v1644
    %v1646 = vpop.f32.mrb[0].mxu0
    %v1647 = vpop.f32.mrb[0].mxu0
    %1648 = vdwg.mxu0
    %1649 = vmatprep.subr.bf16.mxu0 %v1092
    %1650 = vmatpush1.bf16.msra.mxu0 %v1091
    %1651 = vmatprep.subr.bf16.mxu0 %v1100
    %1652 = vmatpush1.bf16.msra.mxu0 %v1099
    %1653 = vmatprep.subr.bf16.mxu0 %v1108
    %1654 = vmatpush1.bf16.msra.mxu0 %v1107
    %1655 = vmatprep.subr.bf16.mxu0 %v1116
    %1656 = vmatpush1.bf16.msra.mxu0 %v1115
    %1657 = vmatprep.subr.bf16.mxu0 %v1124
    %1658 = vmatpush1.bf16.msra.mxu0 %v1123
    %1659 = vmatprep.subr.bf16.mxu0 %v1132
    %1660 = vmatpush1.bf16.msra.mxu0 %v1131
    %1661 = vmatprep.subr.bf16.mxu0 %v1140
    %1662 = vmatpush1.bf16.msra.mxu0 %v1139
    %1663 = vmatprep.subr.bf16.mxu0 %v1148
    %1664 = vmatpush1.bf16.msra.mxu0 %v1147
    %1665 = vmatprep.subr.bf16.mxu0 %v1156
    %1666 = vmatpush1.bf16.msra.mxu0 %v1155
    %1667 = vmatprep.subr.bf16.mxu0 %v1164
    %1668 = vmatpush1.bf16.msra.mxu0 %v1163
    %1669 = vmatprep.subr.bf16.mxu0 %v1172
    %1670 = vmatpush1.bf16.msra.mxu0 %v1171
    %1671 = vmatprep.subr.bf16.mxu0 %v1180
    %1672 = vmatpush1.bf16.msra.mxu0 %v1179
    %1673 = vmatprep.subr.bf16.mxu0 %v1188
    %1674 = vmatpush1.bf16.msra.mxu0 %v1187
    %1675 = vmatprep.subr.bf16.mxu0 %v1196
    %1676 = vmatpush1.bf16.msra.mxu0 %v1195
    %1677 = vmatprep.subr.bf16.mxu0 %v1204
    %1678 = vmatpush1.bf16.msra.mxu0 %v1203
    %1679 = vmatprep.subr.bf16.mxu0 %v1212
    %1680 = vmatpush1.bf16.msra.mxu0 %v1211
    %1681 = vmatprep.mubr.bf16.mxu0 %v1558
    %1682 = vmatmul.mubr.bf16.gmra.mrb[0].mxu0 %v1557
    %v1683 = vpop.f32.mrb[0].mxu0
    %v1684 = vadd.f32 %v1563, %v1683
    %v1685 = vpop.f32.mrb[0].mxu0
    %v1686 = vadd.f32 %v1564, %v1685
    %v1687 = vpop.f32.mrb[0].mxu0
    %v1688 = vpop.f32.mrb[0].mxu0
    %1689 = vdwg.mxu0
    %1690 = vmatprep.subr.bf16.mxu0 %v1094
    %1691 = vmatpush1.bf16.msra.mxu0 %v1093
    %1692 = vmatprep.subr.bf16.mxu0 %v1102
    %1693 = vmatpush1.bf16.msra.mxu0 %v1101
    %1694 = vmatprep.subr.bf16.mxu0 %v1110
    %1695 = vmatpush1.bf16.msra.mxu0 %v1109
    %1696 = vmatprep.subr.bf16.mxu0 %v1118
    %1697 = vmatpush1.bf16.msra.mxu0 %v1117
    %1698 = vmatprep.subr.bf16.mxu0 %v1126
    %1699 = vmatpush1.bf16.msra.mxu0 %v1125
    %1700 = vmatprep.subr.bf16.mxu0 %v1134
    %1701 = vmatpush1.bf16.msra.mxu0 %v1133
    %1702 = vmatprep.subr.bf16.mxu0 %v1142
    %1703 = vmatpush1.bf16.msra.mxu0 %v1141
    %1704 = vmatprep.subr.bf16.mxu0 %v1150
    %1705 = vmatpush1.bf16.msra.mxu0 %v1149
    %1706 = vmatprep.subr.bf16.mxu0 %v1158
    %1707 = vmatpush1.bf16.msra.mxu0 %v1157
    %1708 = vmatprep.subr.bf16.mxu0 %v1166
    %1709 = vmatpush1.bf16.msra.mxu0 %v1165
    %1710 = vmatprep.subr.bf16.mxu0 %v1174
    %1711 = vmatpush1.bf16.msra.mxu0 %v1173
    %1712 = vmatprep.subr.bf16.mxu0 %v1182
    %1713 = vmatpush1.bf16.msra.mxu0 %v1181
    %1714 = vmatprep.subr.bf16.mxu0 %v1190
    %1715 = vmatpush1.bf16.msra.mxu0 %v1189
    %1716 = vmatprep.subr.bf16.mxu0 %v1198
    %1717 = vmatpush1.bf16.msra.mxu0 %v1197
    %1718 = vmatprep.subr.bf16.mxu0 %v1206
    %1719 = vmatpush1.bf16.msra.mxu0 %v1205
    %1720 = vmatprep.subr.bf16.mxu0 %v1214
    %1721 = vmatpush1.bf16.msra.mxu0 %v1213
    %1722 = vmatprep.mubr.bf16.mxu0 %v1558
    %1723 = vmatmul.mubr.bf16.gmra.mrb[0].mxu0 %v1557
    %v1724 = vpop.f32.mrb[0].mxu0
    %v1725 = vadd.f32 %v1565, %v1724
    %v1726 = vpop.f32.mrb[0].mxu0
    %v1727 = vadd.f32 %v1566, %v1726
    %v1728 = vpop.f32.mrb[0].mxu0
    %v1729 = vpop.f32.mrb[0].mxu0
    %1730 = vdwg.mxu0
    %v1731 = vxor.u32 %v1602, 2147483648
    %v1732 = vxor.u32 %v1604, 2147483648
    %v1733 = vmul.f32 %v1731, 1.442695
    %v1734 = vpow.pop %v1733
    %v1735 = vmul.f32 %v1732, 1.442695
    %v1736 = vpow.pop %v1735
    %v1737 = vadd.f32 %v1734, 1.0
    %v1738 = vadd.f32 %v1736, 1.0
    %v1739 = vrcp.pop %v1737
    %v1740 = vmul.f32 1.0, %v1739
    %v1741 = vrcp.pop %v1738
    %v1742 = vmul.f32 1.0, %v1741
    %v1743 = vxor.u32 %v1643, 2147483648
    %v1744 = vxor.u32 %v1645, 2147483648
    %v1745 = vmul.f32 %v1743, 1.442695
    %v1746 = vpow.pop %v1745
    %v1747 = vmul.f32 %v1744, 1.442695
    %v1748 = vpow.pop %v1747
    %v1749 = vadd.f32 %v1746, 1.0
    %v1750 = vadd.f32 %v1748, 1.0
    %v1751 = vrcp.pop %v1749
    %v1752 = vmul.f32 1.0, %v1751
    %v1753 = vrcp.pop %v1750
    %v1754 = vmul.f32 1.0, %v1753
    %v1755 = vtanh.pop %v1684
    %v1756 = vtanh.pop %v1686
    %v1757 = vxor.u32 %v1725, 2147483648
    %v1758 = vxor.u32 %v1727, 2147483648
    %v1759 = vmul.f32 %v1757, 1.442695
    %v1760 = vpow.pop %v1759
    %v1761 = vmul.f32 %v1758, 1.442695
    %v1762 = vpow.pop %v1761
    %v1763 = vadd.f32 %v1760, 1.0
    %v1764 = vadd.f32 %v1762, 1.0
    %v1765 = vrcp.pop %v1763
    %v1766 = vmul.f32 1.0, %v1765
    %v1767 = vrcp.pop %v1764
    %v1768 = vmul.f32 1.0, %v1767
    %v1769 = vmul.f32 %v1752, %v1549
    %v1770 = vmul.f32 %v1754, %v1550
    %v1771 = vmul.f32 %v1740, %v1755
    %v1772 = vmul.f32 %v1742, %v1756
    %v1773 = vadd.f32 %v1769, %v1771
    %v1774 = vadd.f32 %v1770, %v1772
    %v1775 = vtanh.pop %v1773
    %v1776 = vtanh.pop %v1774
    %v1777 = vmul.f32 %v1766, %v1775
    %v1778 = vmul.f32 %v1768, %v1776
    %1779 = vst [vmem:[%s4 + $0x10] sm:$0xff] %v1777
    %1780 = vst [vmem:[%s4 + $0x68] sm:$0xff] %v1778
    %v1781 = vpack.c.bf16 %v1777, %v1777
    %v1782 = vpack.c.bf16 %v1778, %v1778
    %v1783 = vld [vmem:[#allocation2 + $0x80] sm:$0xff]
    %v1784 = vld [vmem:[#allocation2 + $0x88] sm:$0xff]
    %v1785 = vld [vmem:[#allocation2 + $0x90] sm:$0xff]
    %v1786 = vld [vmem:[#allocation2 + $0x98] sm:$0xff]
    %v1787 = vld [vmem:[#allocation2 + $0xa0] sm:$0xff]
    %v1788 = vld [vmem:[#allocation2 + $0xa8] sm:$0xff]
    %v1789 = vld [vmem:[#allocation2 + $0xb0] sm:$0xff]
    %v1790 = vld [vmem:[#allocation2 + $0xb8] sm:$0xff]
    %1791 = vmatprep.subr.bf16.mxu0 %v1088
    %1792 = vmatpush1.bf16.msra.mxu0 %v1087
    %1793 = vmatprep.subr.bf16.mxu0 %v1096
    %1794 = vmatpush1.bf16.msra.mxu0 %v1095
    %1795 = vmatprep.subr.bf16.mxu0 %v1104
    %1796 = vmatpush1.bf16.msra.mxu0 %v1103
    %1797 = vmatprep.subr.bf16.mxu0 %v1112
    %1798 = vmatpush1.bf16.msra.mxu0 %v1111
    %1799 = vmatprep.subr.bf16.mxu0 %v1120
    %1800 = vmatpush1.bf16.msra.mxu0 %v1119
    %1801 = vmatprep.subr.bf16.mxu0 %v1128
    %1802 = vmatpush1.bf16.msra.mxu0 %v1127
    %1803 = vmatprep.subr.bf16.mxu0 %v1136
    %1804 = vmatpush1.bf16.msra.mxu0 %v1135
    %1805 = vmatprep.subr.bf16.mxu0 %v1144
    %1806 = vmatpush1.bf16.msra.mxu0 %v1143
    %1807 = vmatprep.subr.bf16.mxu0 %v1152
    %1808 = vmatpush1.bf16.msra.mxu0 %v1151
    %1809 = vmatprep.subr.bf16.mxu0 %v1160
    %1810 = vmatpush1.bf16.msra.mxu0 %v1159
    %1811 = vmatprep.subr.bf16.mxu0 %v1168
    %1812 = vmatpush1.bf16.msra.mxu0 %v1167
    %1813 = vmatprep.subr.bf16.mxu0 %v1176
    %1814 = vmatpush1.bf16.msra.mxu0 %v1175
    %1815 = vmatprep.subr.bf16.mxu0 %v1184
    %1816 = vmatpush1.bf16.msra.mxu0 %v1183
    %1817 = vmatprep.subr.bf16.mxu0 %v1192
    %1818 = vmatpush1.bf16.msra.mxu0 %v1191
    %1819 = vmatprep.subr.bf16.mxu0 %v1200
    %1820 = vmatpush1.bf16.msra.mxu0 %v1199
    %1821 = vmatprep.subr.bf16.mxu0 %v1208
    %1822 = vmatpush1.bf16.msra.mxu0 %v1207
    %1823 = vmatprep.mubr.bf16.mxu0 %v1782
    %1824 = vmatmul.mubr.bf16.gmra.mrb[0].mxu0 %v1781
    %v1825 = vpop.f32.mrb[0].mxu0
    %v1826 = vadd.f32 %v1783, %v1825
    %v1827 = vpop.f32.mrb[0].mxu0
    %v1828 = vadd.f32 %v1784, %v1827
    %v1829 = vpop.f32.mrb[0].mxu0
    %v1830 = vpop.f32.mrb[0].mxu0
    %1831 = vdwg.mxu0
    %1832 = vmatprep.subr.bf16.mxu0 %v1090
    %1833 = vmatpush1.bf16.msra.mxu0 %v1089
    %1834 = vmatprep.subr.bf16.mxu0 %v1098
    %1835 = vmatpush1.bf16.msra.mxu0 %v1097
    %1836 = vmatprep.subr.bf16.mxu0 %v1106
    %1837 = vmatpush1.bf16.msra.mxu0 %v1105
    %1838 = vmatprep.subr.bf16.mxu0 %v1114
    %1839 = vmatpush1.bf16.msra.mxu0 %v1113
    %1840 = vmatprep.subr.bf16.mxu0 %v1122
    %1841 = vmatpush1.bf16.msra.mxu0 %v1121
    %1842 = vmatprep.subr.bf16.mxu0 %v1130
    %1843 = vmatpush1.bf16.msra.mxu0 %v1129
    %1844 = vmatprep.subr.bf16.mxu0 %v1138
    %1845 = vmatpush1.bf16.msra.mxu0 %v1137
    %1846 = vmatprep.subr.bf16.mxu0 %v1146
    %1847 = vmatpush1.bf16.msra.mxu0 %v1145
    %1848 = vmatprep.subr.bf16.mxu0 %v1154
    %1849 = vmatpush1.bf16.msra.mxu0 %v1153
    %1850 = vmatprep.subr.bf16.mxu0 %v1162
    %1851 = vmatpush1.bf16.msra.mxu0 %v1161
    %1852 = vmatprep.subr.bf16.mxu0 %v1170
    %1853 = vmatpush1.bf16.msra.mxu0 %v1169
    %1854 = vmatprep.subr.bf16.mxu0 %v1178
    %1855 = vmatpush1.bf16.msra.mxu0 %v1177
    %1856 = vmatprep.subr.bf16.mxu0 %v1186
    %1857 = vmatpush1.bf16.msra.mxu0 %v1185
    %1858 = vmatprep.subr.bf16.mxu0 %v1194
    %1859 = vmatpush1.bf16.msra.mxu0 %v1193
    %1860 = vmatprep.subr.bf16.mxu0 %v1202
    %1861 = vmatpush1.bf16.msra.mxu0 %v1201
    %1862 = vmatprep.subr.bf16.mxu0 %v1210
    %1863 = vmatpush1.bf16.msra.mxu0 %v1209
    %1864 = vmatprep.mubr.bf16.mxu0 %v1782
    %1865 = vmatmul.mubr.bf16.gmra.mrb[0].mxu0 %v1781
    %v1866 = vpop.f32.mrb[0].mxu0
    %v1867 = vadd.f32 %v1785, %v1866
    %v1868 = vpop.f32.mrb[0].mxu0
    %v1869 = vadd.f32 %v1786, %v1868
    %v1870 = vpop.f32.mrb[0].mxu0
    %v1871 = vpop.f32.mrb[0].mxu0
    %1872 = vdwg.mxu0
    %1873 = vmatprep.subr.bf16.mxu0 %v1092
    %1874 = vmatpush1.bf16.msra.mxu0 %v1091
    %1875 = vmatprep.subr.bf16.mxu0 %v1100
    %1876 = vmatpush1.bf16.msra.mxu0 %v1099
    %1877 = vmatprep.subr.bf16.mxu0 %v1108
    %1878 = vmatpush1.bf16.msra.mxu0 %v1107
    %1879 = vmatprep.subr.bf16.mxu0 %v1116
    %1880 = vmatpush1.bf16.msra.mxu0 %v1115
    %1881 = vmatprep.subr.bf16.mxu0 %v1124
    %1882 = vmatpush1.bf16.msra.mxu0 %v1123
    %1883 = vmatprep.subr.bf16.mxu0 %v1132
    %1884 = vmatpush1.bf16.msra.mxu0 %v1131
    %1885 = vmatprep.subr.bf16.mxu0 %v1140
    %1886 = vmatpush1.bf16.msra.mxu0 %v1139
    %1887 = vmatprep.subr.bf16.mxu0 %v1148
    %1888 = vmatpush1.bf16.msra.mxu0 %v1147
    %1889 = vmatprep.subr.bf16.mxu0 %v1156
    %1890 = vmatpush1.bf16.msra.mxu0 %v1155
    %1891 = vmatprep.subr.bf16.mxu0 %v1164
    %1892 = vmatpush1.bf16.msra.mxu0 %v1163
    %1893 = vmatprep.subr.bf16.mxu0 %v1172
    %1894 = vmatpush1.bf16.msra.mxu0 %v1171
    %1895 = vmatprep.subr.bf16.mxu0 %v1180
    %1896 = vmatpush1.bf16.msra.mxu0 %v1179
    %1897 = vmatprep.subr.bf16.mxu0 %v1188
    %1898 = vmatpush1.bf16.msra.mxu0 %v1187
    %1899 = vmatprep.subr.bf16.mxu0 %v1196
    %1900 = vmatpush1.bf16.msra.mxu0 %v1195
    %1901 = vmatprep.subr.bf16.mxu0 %v1204
    %1902 = vmatpush1.bf16.msra.mxu0 %v1203
    %1903 = vmatprep.subr.bf16.mxu0 %v1212
    %1904 = vmatpush1.bf16.msra.mxu0 %v1211
    %1905 = vmatprep.mubr.bf16.mxu0 %v1782
    %1906 = vmatmul.mubr.bf16.gmra.mrb[0].mxu0 %v1781
    %v1907 = vpop.f32.mrb[0].mxu0
    %v1908 = vadd.f32 %v1787, %v1907
    %v1909 = vpop.f32.mrb[0].mxu0
    %v1910 = vadd.f32 %v1788, %v1909
    %v1911 = vpop.f32.mrb[0].mxu0
    %v1912 = vpop.f32.mrb[0].mxu0
    %1913 = vdwg.mxu0
    %1914 = vmatprep.subr.bf16.mxu0 %v1094
    %1915 = vmatpush1.bf16.msra.mxu0 %v1093
    %1916 = vmatprep.subr.bf16.mxu0 %v1102
    %1917 = vmatpush1.bf16.msra.mxu0 %v1101
    %1918 = vmatprep.subr.bf16.mxu0 %v1110
    %1919 = vmatpush1.bf16.msra.mxu0 %v1109
    %1920 = vmatprep.subr.bf16.mxu0 %v1118
    %1921 = vmatpush1.bf16.msra.mxu0 %v1117
    %1922 = vmatprep.subr.bf16.mxu0 %v1126
    %1923 = vmatpush1.bf16.msra.mxu0 %v1125
    %1924 = vmatprep.subr.bf16.mxu0 %v1134
    %1925 = vmatpush1.bf16.msra.mxu0 %v1133
    %1926 = vmatprep.subr.bf16.mxu0 %v1142
    %1927 = vmatpush1.bf16.msra.mxu0 %v1141
    %1928 = vmatprep.subr.bf16.mxu0 %v1150
    %1929 = vmatpush1.bf16.msra.mxu0 %v1149
    %1930 = vmatprep.subr.bf16.mxu0 %v1158
    %1931 = vmatpush1.bf16.msra.mxu0 %v1157
    %1932 = vmatprep.subr.bf16.mxu0 %v1166
    %1933 = vmatpush1.bf16.msra.mxu0 %v1165
    %1934 = vmatprep.subr.bf16.mxu0 %v1174
    %1935 = vmatpush1.bf16.msra.mxu0 %v1173
    %1936 = vmatprep.subr.bf16.mxu0 %v1182
    %1937 = vmatpush1.bf16.msra.mxu0 %v1181
    %1938 = vmatprep.subr.bf16.mxu0 %v1190
    %1939 = vmatpush1.bf16.msra.mxu0 %v1189
    %1940 = vmatprep.subr.bf16.mxu0 %v1198
    %1941 = vmatpush1.bf16.msra.mxu0 %v1197
    %1942 = vmatprep.subr.bf16.mxu0 %v1206
    %1943 = vmatpush1.bf16.msra.mxu0 %v1205
    %1944 = vmatprep.subr.bf16.mxu0 %v1214
    %1945 = vmatpush1.bf16.msra.mxu0 %v1213
    %1946 = vmatprep.mubr.bf16.mxu0 %v1782
    %1947 = vmatmul.mubr.bf16.gmra.mrb[0].mxu0 %v1781
    %v1948 = vpop.f32.mrb[0].mxu0
    %v1949 = vadd.f32 %v1789, %v1948
    %v1950 = vpop.f32.mrb[0].mxu0
    %v1951 = vadd.f32 %v1790, %v1950
    %v1952 = vpop.f32.mrb[0].mxu0
    %v1953 = vpop.f32.mrb[0].mxu0
    %1954 = vdwg.mxu0
    %v1955 = vxor.u32 %v1826, 2147483648
    %v1956 = vxor.u32 %v1828, 2147483648
    %v1957 = vmul.f32 %v1955, 1.442695
    %v1958 = vpow.pop %v1957
    %v1959 = vmul.f32 %v1956, 1.442695
    %v1960 = vpow.pop %v1959
    %v1961 = vadd.f32 %v1958, 1.0
    %v1962 = vadd.f32 %v1960, 1.0
    %v1963 = vrcp.pop %v1961
    %v1964 = vmul.f32 1.0, %v1963
    %v1965 = vrcp.pop %v1962
    %v1966 = vmul.f32 1.0, %v1965
    %v1967 = vxor.u32 %v1867, 2147483648
    %v1968 = vxor.u32 %v1869, 2147483648
    %v1969 = vmul.f32 %v1967, 1.442695
    %v1970 = vpow.pop %v1969
    %v1971 = vmul.f32 %v1968, 1.442695
    %v1972 = vpow.pop %v1971
    %v1973 = vadd.f32 %v1970, 1.0
    %v1974 = vadd.f32 %v1972, 1.0
    %v1975 = vrcp.pop %v1973
    %v1976 = vmul.f32 1.0, %v1975
    %v1977 = vrcp.pop %v1974
    %v1978 = vmul.f32 1.0, %v1977
    %v1979 = vtanh.pop %v1908
    %v1980 = vtanh.pop %v1910
    %v1981 = vxor.u32 %v1949, 2147483648
    %v1982 = vxor.u32 %v1951, 2147483648
    %v1983 = vmul.f32 %v1981, 1.442695
    %v1984 = vpow.pop %v1983
    %v1985 = vmul.f32 %v1982, 1.442695
    %v1986 = vpow.pop %v1985
    %v1987 = vadd.f32 %v1984, 1.0
    %v1988 = vadd.f32 %v1986, 1.0
    %v1989 = vrcp.pop %v1987
    %v1990 = vmul.f32 1.0, %v1989
    %v1991 = vrcp.pop %v1988
    %v1992 = vmul.f32 1.0, %v1991
    %v1993 = vmul.f32 %v1976, %v1773
    %v1994 = vmul.f32 %v1978, %v1774
    %v1995 = vmul.f32 %v1964, %v1979
    %v1996 = vmul.f32 %v1966, %v1980
    %v1997 = vadd.f32 %v1993, %v1995
    %v1998 = vadd.f32 %v1994, %v1996
    %v1999 = vtanh.pop %v1997
    %v2000 = vtanh.pop %v1998
    %v2001 = vmul.f32 %v1990, %v1999
    %v2002 = vmul.f32 %v1992, %v2000
    %2003 = vst [vmem:[%s4 + $0x20] sm:$0xff] %v2001
    %2004 = vst [vmem:[%s4 + $0x58] sm:$0xff] %v2002
    %v2005 = vpack.c.bf16 %v2001, %v2001
    %v2006 = vpack.c.bf16 %v2002, %v2002
    %v2007 = vld [vmem:[#allocation2 + $0xc0] sm:$0xff]
    %v2008 = vld [vmem:[#allocation2 + $0xc8] sm:$0xff]
    %v2009 = vld [vmem:[#allocation2 + $0xd0] sm:$0xff]
    %v2010 = vld [vmem:[#allocation2 + $0xd8] sm:$0xff]
    %v2011 = vld [vmem:[#allocation2 + $0xe0] sm:$0xff]
    %v2012 = vld [vmem:[#allocation2 + $0xe8] sm:$0xff]
    %v2013 = vld [vmem:[#allocation2 + $0xf0] sm:$0xff]
    %v2014 = vld [vmem:[#allocation2 + $0xf8] sm:$0xff]
    %2015 = vmatprep.subr.bf16.mxu0 %v1088
    %2016 = vmatpush1.bf16.msra.mxu0 %v1087
    %2017 = vmatprep.subr.bf16.mxu0 %v1096
    %2018 = vmatpush1.bf16.msra.mxu0 %v1095
    %2019 = vmatprep.subr.bf16.mxu0 %v1104
    %2020 = vmatpush1.bf16.msra.mxu0 %v1103
    %2021 = vmatprep.subr.bf16.mxu0 %v1112
    %2022 = vmatpush1.bf16.msra.mxu0 %v1111
    %2023 = vmatprep.subr.bf16.mxu0 %v1120
    %2024 = vmatpush1.bf16.msra.mxu0 %v1119
    %2025 = vmatprep.subr.bf16.mxu0 %v1128
    %2026 = vmatpush1.bf16.msra.mxu0 %v1127
    %2027 = vmatprep.subr.bf16.mxu0 %v1136
    %2028 = vmatpush1.bf16.msra.mxu0 %v1135
    %2029 = vmatprep.subr.bf16.mxu0 %v1144
    %2030 = vmatpush1.bf16.msra.mxu0 %v1143
    %2031 = vmatprep.subr.bf16.mxu0 %v1152
    %2032 = vmatpush1.bf16.msra.mxu0 %v1151
    %2033 = vmatprep.subr.bf16.mxu0 %v1160
    %2034 = vmatpush1.bf16.msra.mxu0 %v1159
    %2035 = vmatprep.subr.bf16.mxu0 %v1168
    %2036 = vmatpush1.bf16.msra.mxu0 %v1167
    %2037 = vmatprep.subr.bf16.mxu0 %v1176
    %2038 = vmatpush1.bf16.msra.mxu0 %v1175
    %2039 = vmatprep.subr.bf16.mxu0 %v1184
    %2040 = vmatpush1.bf16.msra.mxu0 %v1183
    %2041 = vmatprep.subr.bf16.mxu0 %v1192
    %2042 = vmatpush1.bf16.msra.mxu0 %v1191
    %2043 = vmatprep.subr.bf16.mxu0 %v1200
    %2044 = vmatpush1.bf16.msra.mxu0 %v1199
    %2045 = vmatprep.subr.bf16.mxu0 %v1208
    %2046 = vmatpush1.bf16.msra.mxu0 %v1207
    %2047 = vmatprep.mubr.bf16.mxu0 %v2006
    %2048 = vmatmul.mubr.bf16.gmra.mrb[0].mxu0 %v2005
    %v2049 = vpop.f32.mrb[0].mxu0
    %v2050 = vadd.f32 %v2007, %v2049
    %v2051 = vpop.f32.mrb[0].mxu0
    %v2052 = vadd.f32 %v2008, %v2051
    %v2053 = vpop.f32.mrb[0].mxu0
    %v2054 = vpop.f32.mrb[0].mxu0
    %2055 = vdwg.mxu0
    %2056 = vmatprep.subr.bf16.mxu0 %v1090
    %2057 = vmatpush1.bf16.msra.mxu0 %v1089
    %2058 = vmatprep.subr.bf16.mxu0 %v1098
    %2059 = vmatpush1.bf16.msra.mxu0 %v1097
    %2060 = vmatprep.subr.bf16.mxu0 %v1106
    %2061 = vmatpush1.bf16.msra.mxu0 %v1105
    %2062 = vmatprep.subr.bf16.mxu0 %v1114
    %2063 = vmatpush1.bf16.msra.mxu0 %v1113
    %2064 = vmatprep.subr.bf16.mxu0 %v1122
    %2065 = vmatpush1.bf16.msra.mxu0 %v1121
    %2066 = vmatprep.subr.bf16.mxu0 %v1130
    %2067 = vmatpush1.bf16.msra.mxu0 %v1129
    %2068 = vmatprep.subr.bf16.mxu0 %v1138
    %2069 = vmatpush1.bf16.msra.mxu0 %v1137
    %2070 = vmatprep.subr.bf16.mxu0 %v1146
    %2071 = vmatpush1.bf16.msra.mxu0 %v1145
    %2072 = vmatprep.subr.bf16.mxu0 %v1154
    %2073 = vmatpush1.bf16.msra.mxu0 %v1153
    %2074 = vmatprep.subr.bf16.mxu0 %v1162
    %2075 = vmatpush1.bf16.msra.mxu0 %v1161
    %2076 = vmatprep.subr.bf16.mxu0 %v1170
    %2077 = vmatpush1.bf16.msra.mxu0 %v1169
    %2078 = vmatprep.subr.bf16.mxu0 %v1178
    %2079 = vmatpush1.bf16.msra.mxu0 %v1177
    %2080 = vmatprep.subr.bf16.mxu0 %v1186
    %2081 = vmatpush1.bf16.msra.mxu0 %v1185
    %2082 = vmatprep.subr.bf16.mxu0 %v1194
    %2083 = vmatpush1.bf16.msra.mxu0 %v1193
    %2084 = vmatprep.subr.bf16.mxu0 %v1202
    %2085 = vmatpush1.bf16.msra.mxu0 %v1201
    %2086 = vmatprep.subr.bf16.mxu0 %v1210
    %2087 = vmatpush1.bf16.msra.mxu0 %v1209
    %2088 = vmatprep.mubr.bf16.mxu0 %v2006
    %2089 = vmatmul.mubr.bf16.gmra.mrb[0].mxu0 %v2005
    %v2090 = vpop.f32.mrb[0].mxu0
    %v2091 = vadd.f32 %v2009, %v2090
    %v2092 = vpop.f32.mrb[0].mxu0
    %v2093 = vadd.f32 %v2010, %v2092
    %v2094 = vpop.f32.mrb[0].mxu0
    %v2095 = vpop.f32.mrb[0].mxu0
    %2096 = vdwg.mxu0
    %2097 = vmatprep.subr.bf16.mxu0 %v1092
    %2098 = vmatpush1.bf16.msra.mxu0 %v1091
    %2099 = vmatprep.subr.bf16.mxu0 %v1100
    %2100 = vmatpush1.bf16.msra.mxu0 %v1099
    %2101 = vmatprep.subr.bf16.mxu0 %v1108
    %2102 = vmatpush1.bf16.msra.mxu0 %v1107
    %2103 = vmatprep.subr.bf16.mxu0 %v1116
    %2104 = vmatpush1.bf16.msra.mxu0 %v1115
    %2105 = vmatprep.subr.bf16.mxu0 %v1124
    %2106 = vmatpush1.bf16.msra.mxu0 %v1123
    %2107 = vmatprep.subr.bf16.mxu0 %v1132
    %2108 = vmatpush1.bf16.msra.mxu0 %v1131
    %2109 = vmatprep.subr.bf16.mxu0 %v1140
    %2110 = vmatpush1.bf16.msra.mxu0 %v1139
    %2111 = vmatprep.subr.bf16.mxu0 %v1148
    %2112 = vmatpush1.bf16.msra.mxu0 %v1147
    %2113 = vmatprep.subr.bf16.mxu0 %v1156
    %2114 = vmatpush1.bf16.msra.mxu0 %v1155
    %2115 = vmatprep.subr.bf16.mxu0 %v1164
    %2116 = vmatpush1.bf16.msra.mxu0 %v1163
    %2117 = vmatprep.subr.bf16.mxu0 %v1172
    %2118 = vmatpush1.bf16.msra.mxu0 %v1171
    %2119 = vmatprep.subr.bf16.mxu0 %v1180
    %2120 = vmatpush1.bf16.msra.mxu0 %v1179
    %2121 = vmatprep.subr.bf16.mxu0 %v1188
    %2122 = vmatpush1.bf16.msra.mxu0 %v1187
    %2123 = vmatprep.subr.bf16.mxu0 %v1196
    %2124 = vmatpush1.bf16.msra.mxu0 %v1195
    %2125 = vmatprep.subr.bf16.mxu0 %v1204
    %2126 = vmatpush1.bf16.msra.mxu0 %v1203
    %2127 = vmatprep.subr.bf16.mxu0 %v1212
    %2128 = vmatpush1.bf16.msra.mxu0 %v1211
    %2129 = vmatprep.mubr.bf16.mxu0 %v2006
    %2130 = vmatmul.mubr.bf16.gmra.mrb[0].mxu0 %v2005
    %v2131 = vpop.f32.mrb[0].mxu0
    %v2132 = vadd.f32 %v2011, %v2131
    %v2133 = vpop.f32.mrb[0].mxu0
    %v2134 = vadd.f32 %v2012, %v2133
    %v2135 = vpop.f32.mrb[0].mxu0
    %v2136 = vpop.f32.mrb[0].mxu0
    %2137 = vdwg.mxu0
    %2138 = vmatprep.subr.bf16.mxu0 %v1094
    %2139 = vmatpush1.bf16.msra.mxu0 %v1093
    %2140 = vmatprep.subr.bf16.mxu0 %v1102
    %2141 = vmatpush1.bf16.msra.mxu0 %v1101
    %2142 = vmatprep.subr.bf16.mxu0 %v1110
    %2143 = vmatpush1.bf16.msra.mxu0 %v1109
    %2144 = vmatprep.subr.bf16.mxu0 %v1118
    %2145 = vmatpush1.bf16.msra.mxu0 %v1117
    %2146 = vmatprep.subr.bf16.mxu0 %v1126
    %2147 = vmatpush1.bf16.msra.mxu0 %v1125
    %2148 = vmatprep.subr.bf16.mxu0 %v1134
    %2149 = vmatpush1.bf16.msra.mxu0 %v1133
    %2150 = vmatprep.subr.bf16.mxu0 %v1142
    %2151 = vmatpush1.bf16.msra.mxu0 %v1141
    %2152 = vmatprep.subr.bf16.mxu0 %v1150
    %2153 = vmatpush1.bf16.msra.mxu0 %v1149
    %2154 = vmatprep.subr.bf16.mxu0 %v1158
    %2155 = vmatpush1.bf16.msra.mxu0 %v1157
    %2156 = vmatprep.subr.bf16.mxu0 %v1166
    %2157 = vmatpush1.bf16.msra.mxu0 %v1165
    %2158 = vmatprep.subr.bf16.mxu0 %v1174
    %2159 = vmatpush1.bf16.msra.mxu0 %v1173
    %2160 = vmatprep.subr.bf16.mxu0 %v1182
    %2161 = vmatpush1.bf16.msra.mxu0 %v1181
    %2162 = vmatprep.subr.bf16.mxu0 %v1190
    %2163 = vmatpush1.bf16.msra.mxu0 %v1189
    %2164 = vmatprep.subr.bf16.mxu0 %v1198
    %2165 = vmatpush1.bf16.msra.mxu0 %v1197
    %2166 = vmatprep.subr.bf16.mxu0 %v1206
    %2167 = vmatpush1.bf16.msra.mxu0 %v1205
    %2168 = vmatprep.subr.bf16.mxu0 %v1214
    %2169 = vmatpush1.bf16.msra.mxu0 %v1213
    %2170 = vmatprep.mubr.bf16.mxu0 %v2006
    %2171 = vmatmul.mubr.bf16.gmra.mrb[0].mxu0 %v2005
    %v2172 = vpop.f32.mrb[0].mxu0
    %v2173 = vadd.f32 %v2013, %v2172
    %v2174 = vpop.f32.mrb[0].mxu0
    %v2175 = vadd.f32 %v2014, %v2174
    %v2176 = vpop.f32.mrb[0].mxu0
    %v2177 = vpop.f32.mrb[0].mxu0
    %2178 = vdwg.mxu0
    %v2179 = vxor.u32 %v2050, 2147483648
    %v2180 = vxor.u32 %v2052, 2147483648
    %v2181 = vmul.f32 %v2179, 1.442695
    %v2182 = vpow.pop %v2181
    %v2183 = vmul.f32 %v2180, 1.442695
    %v2184 = vpow.pop %v2183
    %v2185 = vadd.f32 %v2182, 1.0
    %v2186 = vadd.f32 %v2184, 1.0
    %v2187 = vrcp.pop %v2185
    %v2188 = vmul.f32 1.0, %v2187
    %v2189 = vrcp.pop %v2186
    %v2190 = vmul.f32 1.0, %v2189
    %v2191 = vxor.u32 %v2091, 2147483648
    %v2192 = vxor.u32 %v2093, 2147483648
    %v2193 = vmul.f32 %v2191, 1.442695
    %v2194 = vpow.pop %v2193
    %v2195 = vmul.f32 %v2192, 1.442695
    %v2196 = vpow.pop %v2195
    %v2197 = vadd.f32 %v2194, 1.0
    %v2198 = vadd.f32 %v2196, 1.0
    %v2199 = vrcp.pop %v2197
    %v2200 = vmul.f32 1.0, %v2199
    %v2201 = vrcp.pop %v2198
    %v2202 = vmul.f32 1.0, %v2201
    %v2203 = vtanh.pop %v2132
    %v2204 = vtanh.pop %v2134
    %v2205 = vxor.u32 %v2173, 2147483648
    %v2206 = vxor.u32 %v2175, 2147483648
    %v2207 = vmul.f32 %v2205, 1.442695
    %v2208 = vpow.pop %v2207
    %v2209 = vmul.f32 %v2206, 1.442695
    %v2210 = vpow.pop %v2209
    %v2211 = vadd.f32 %v2208, 1.0
    %v2212 = vadd.f32 %v2210, 1.0
    %v2213 = vrcp.pop %v2211
    %v2214 = vmul.f32 1.0, %v2213
    %v2215 = vrcp.pop %v2212
    %v2216 = vmul.f32 1.0, %v2215
    %v2217 = vmul.f32 %v2200, %v1997
    %v2218 = vmul.f32 %v2202, %v1998
    %v2219 = vmul.f32 %v2188, %v2203
    %v2220 = vmul.f32 %v2190, %v2204
    %v2221 = vadd.f32 %v2217, %v2219
    %v2222 = vadd.f32 %v2218, %v2220
    %v2223 = vtanh.pop %v2221
    %v2224 = vtanh.pop %v2222
    %v2225 = vmul.f32 %v2214, %v2223
    %v2226 = vmul.f32 %v2216, %v2224
    %2227 = vst [vmem:[%s4 + $0x30] sm:$0xff] %v2225
    %2228 = vst [vmem:[%s4 + $0x48] sm:$0xff] %v2226
    %v2229 = vpack.c.bf16 %v2225, %v2225
    %v2230 = vpack.c.bf16 %v2226, %v2226
    %v2231 = vld [vmem:[#allocation2 + $0x100] sm:$0xff]
    %v2232 = vld [vmem:[#allocation2 + $0x108] sm:$0xff]
    %v2233 = vld [vmem:[#allocation2 + $0x110] sm:$0xff]
    %v2234 = vld [vmem:[#allocation2 + $0x118] sm:$0xff]
    %v2235 = vld [vmem:[#allocation2 + $0x120] sm:$0xff]
    %v2236 = vld [vmem:[#allocation2 + $0x128] sm:$0xff]
    %v2237 = vld [vmem:[#allocation2 + $0x130] sm:$0xff]
    %v2238 = vld [vmem:[#allocation2 + $0x138] sm:$0xff]
    %2239 = vmatprep.subr.bf16.mxu0 %v1088
    %2240 = vmatpush1.bf16.msra.mxu0 %v1087
    %2241 = vmatprep.subr.bf16.mxu0 %v1096
    %2242 = vmatpush1.bf16.msra.mxu0 %v1095
    %2243 = vmatprep.subr.bf16.mxu0 %v1104
    %2244 = vmatpush1.bf16.msra.mxu0 %v1103
    %2245 = vmatprep.subr.bf16.mxu0 %v1112
    %2246 = vmatpush1.bf16.msra.mxu0 %v1111
    %2247 = vmatprep.subr.bf16.mxu0 %v1120
    %2248 = vmatpush1.bf16.msra.mxu0 %v1119
    %2249 = vmatprep.subr.bf16.mxu0 %v1128
    %2250 = vmatpush1.bf16.msra.mxu0 %v1127
    %2251 = vmatprep.subr.bf16.mxu0 %v1136
    %2252 = vmatpush1.bf16.msra.mxu0 %v1135
    %2253 = vmatprep.subr.bf16.mxu0 %v1144
    %2254 = vmatpush1.bf16.msra.mxu0 %v1143
    %2255 = vmatprep.subr.bf16.mxu0 %v1152
    %2256 = vmatpush1.bf16.msra.mxu0 %v1151
    %2257 = vmatprep.subr.bf16.mxu0 %v1160
    %2258 = vmatpush1.bf16.msra.mxu0 %v1159
    %2259 = vmatprep.subr.bf16.mxu0 %v1168
    %2260 = vmatpush1.bf16.msra.mxu0 %v1167
    %2261 = vmatprep.subr.bf16.mxu0 %v1176
    %2262 = vmatpush1.bf16.msra.mxu0 %v1175
    %2263 = vmatprep.subr.bf16.mxu0 %v1184
    %2264 = vmatpush1.bf16.msra.mxu0 %v1183
    %2265 = vmatprep.subr.bf16.mxu0 %v1192
    %2266 = vmatpush1.bf16.msra.mxu0 %v1191
    %2267 = vmatprep.subr.bf16.mxu0 %v1200
    %2268 = vmatpush1.bf16.msra.mxu0 %v1199
    %2269 = vmatprep.subr.bf16.mxu0 %v1208
    %2270 = vmatpush1.bf16.msra.mxu0 %v1207
    %2271 = vmatprep.mubr.bf16.mxu0 %v2230
    %2272 = vmatmul.mubr.bf16.gmra.mrb[0].mxu0 %v2229
    %v2273 = vpop.f32.mrb[0].mxu0
    %v2274 = vadd.f32 %v2231, %v2273
    %v2275 = vpop.f32.mrb[0].mxu0
    %v2276 = vadd.f32 %v2232, %v2275
    %v2277 = vpop.f32.mrb[0].mxu0
    %v2278 = vpop.f32.mrb[0].mxu0
    %2279 = vdwg.mxu0
    %2280 = vmatprep.subr.bf16.mxu0 %v1090
    %2281 = vmatpush1.bf16.msra.mxu0 %v1089
    %2282 = vmatprep.subr.bf16.mxu0 %v1098
    %2283 = vmatpush1.bf16.msra.mxu0 %v1097
    %2284 = vmatprep.subr.bf16.mxu0 %v1106
    %2285 = vmatpush1.bf16.msra.mxu0 %v1105
    %2286 = vmatprep.subr.bf16.mxu0 %v1114
    %2287 = vmatpush1.bf16.msra.mxu0 %v1113
    %2288 = vmatprep.subr.bf16.mxu0 %v1122
    %2289 = vmatpush1.bf16.msra.mxu0 %v1121
    %2290 = vmatprep.subr.bf16.mxu0 %v1130
    %2291 = vmatpush1.bf16.msra.mxu0 %v1129
    %2292 = vmatprep.subr.bf16.mxu0 %v1138
    %2293 = vmatpush1.bf16.msra.mxu0 %v1137
    %2294 = vmatprep.subr.bf16.mxu0 %v1146
    %2295 = vmatpush1.bf16.msra.mxu0 %v1145
    %2296 = vmatprep.subr.bf16.mxu0 %v1154
    %2297 = vmatpush1.bf16.msra.mxu0 %v1153
    %2298 = vmatprep.subr.bf16.mxu0 %v1162
    %2299 = vmatpush1.bf16.msra.mxu0 %v1161
    %2300 = vmatprep.subr.bf16.mxu0 %v1170
    %2301 = vmatpush1.bf16.msra.mxu0 %v1169
    %2302 = vmatprep.subr.bf16.mxu0 %v1178
    %2303 = vmatpush1.bf16.msra.mxu0 %v1177
    %2304 = vmatprep.subr.bf16.mxu0 %v1186
    %2305 = vmatpush1.bf16.msra.mxu0 %v1185
    %2306 = vmatprep.subr.bf16.mxu0 %v1194
    %2307 = vmatpush1.bf16.msra.mxu0 %v1193
    %2308 = vmatprep.subr.bf16.mxu0 %v1202
    %2309 = vmatpush1.bf16.msra.mxu0 %v1201
    %2310 = vmatprep.subr.bf16.mxu0 %v1210
    %2311 = vmatpush1.bf16.msra.mxu0 %v1209
    %2312 = vmatprep.mubr.bf16.mxu0 %v2230
    %2313 = vmatmul.mubr.bf16.gmra.mrb[0].mxu0 %v2229
    %v2314 = vpop.f32.mrb[0].mxu0
    %v2315 = vadd.f32 %v2233, %v2314
    %v2316 = vpop.f32.mrb[0].mxu0
    %v2317 = vadd.f32 %v2234, %v2316
    %v2318 = vpop.f32.mrb[0].mxu0
    %v2319 = vpop.f32.mrb[0].mxu0
    %2320 = vdwg.mxu0
    %2321 = vmatprep.subr.bf16.mxu0 %v1092
    %2322 = vmatpush1.bf16.msra.mxu0 %v1091
    %2323 = vmatprep.subr.bf16.mxu0 %v1100
    %2324 = vmatpush1.bf16.msra.mxu0 %v1099
    %2325 = vmatprep.subr.bf16.mxu0 %v1108
    %2326 = vmatpush1.bf16.msra.mxu0 %v1107
    %2327 = vmatprep.subr.bf16.mxu0 %v1116
    %2328 = vmatpush1.bf16.msra.mxu0 %v1115
    %2329 = vmatprep.subr.bf16.mxu0 %v1124
    %2330 = vmatpush1.bf16.msra.mxu0 %v1123
    %2331 = vmatprep.subr.bf16.mxu0 %v1132
    %2332 = vmatpush1.bf16.msra.mxu0 %v1131
    %2333 = vmatprep.subr.bf16.mxu0 %v1140
    %2334 = vmatpush1.bf16.msra.mxu0 %v1139
    %2335 = vmatprep.subr.bf16.mxu0 %v1148
    %2336 = vmatpush1.bf16.msra.mxu0 %v1147
    %2337 = vmatprep.subr.bf16.mxu0 %v1156
    %2338 = vmatpush1.bf16.msra.mxu0 %v1155
    %2339 = vmatprep.subr.bf16.mxu0 %v1164
    %2340 = vmatpush1.bf16.msra.mxu0 %v1163
    %2341 = vmatprep.subr.bf16.mxu0 %v1172
    %2342 = vmatpush1.bf16.msra.mxu0 %v1171
    %2343 = vmatprep.subr.bf16.mxu0 %v1180
    %2344 = vmatpush1.bf16.msra.mxu0 %v1179
    %2345 = vmatprep.subr.bf16.mxu0 %v1188
    %2346 = vmatpush1.bf16.msra.mxu0 %v1187
    %2347 = vmatprep.subr.bf16.mxu0 %v1196
    %2348 = vmatpush1.bf16.msra.mxu0 %v1195
    %2349 = vmatprep.subr.bf16.mxu0 %v1204
    %2350 = vmatpush1.bf16.msra.mxu0 %v1203
    %2351 = vmatprep.subr.bf16.mxu0 %v1212
    %2352 = vmatpush1.bf16.msra.mxu0 %v1211
    %2353 = vmatprep.mubr.bf16.mxu0 %v2230
    %2354 = vmatmul.mubr.bf16.gmra.mrb[0].mxu0 %v2229
    %v2355 = vpop.f32.mrb[0].mxu0
    %v2356 = vadd.f32 %v2235, %v2355
    %v2357 = vpop.f32.mrb[0].mxu0
    %v2358 = vadd.f32 %v2236, %v2357
    %v2359 = vpop.f32.mrb[0].mxu0
    %v2360 = vpop.f32.mrb[0].mxu0
    %2361 = vdwg.mxu0
    %2362 = vmatprep.subr.bf16.mxu0 %v1094
    %2363 = vmatpush1.bf16.msra.mxu0 %v1093
    %2364 = vmatprep.subr.bf16.mxu0 %v1102
    %2365 = vmatpush1.bf16.msra.mxu0 %v1101
    %2366 = vmatprep.subr.bf16.mxu0 %v1110
    %2367 = vmatpush1.bf16.msra.mxu0 %v1109
    %2368 = vmatprep.subr.bf16.mxu0 %v1118
    %2369 = vmatpush1.bf16.msra.mxu0 %v1117
    %2370 = vmatprep.subr.bf16.mxu0 %v1126
    %2371 = vmatpush1.bf16.msra.mxu0 %v1125
    %2372 = vmatprep.subr.bf16.mxu0 %v1134
    %2373 = vmatpush1.bf16.msra.mxu0 %v1133
    %2374 = vmatprep.subr.bf16.mxu0 %v1142
    %2375 = vmatpush1.bf16.msra.mxu0 %v1141
    %2376 = vmatprep.subr.bf16.mxu0 %v1150
    %2377 = vmatpush1.bf16.msra.mxu0 %v1149
    %2378 = vmatprep.subr.bf16.mxu0 %v1158
    %2379 = vmatpush1.bf16.msra.mxu0 %v1157
    %2380 = vmatprep.subr.bf16.mxu0 %v1166
    %2381 = vmatpush1.bf16.msra.mxu0 %v1165
    %2382 = vmatprep.subr.bf16.mxu0 %v1174
    %2383 = vmatpush1.bf16.msra.mxu0 %v1173
    %2384 = vmatprep.subr.bf16.mxu0 %v1182
    %2385 = vmatpush1.bf16.msra.mxu0 %v1181
    %2386 = vmatprep.subr.bf16.mxu0 %v1190
    %2387 = vmatpush1.bf16.msra.mxu0 %v1189
    %2388 = vmatprep.subr.bf16.mxu0 %v1198
    %2389 = vmatpush1.bf16.msra.mxu0 %v1197
    %2390 = vmatprep.subr.bf16.mxu0 %v1206
    %2391 = vmatpush1.bf16.msra.mxu0 %v1205
    %2392 = vmatprep.subr.bf16.mxu0 %v1214
    %2393 = vmatpush1.bf16.msra.mxu0 %v1213
    %2394 = vmatprep.mubr.bf16.mxu0 %v2230
    %2395 = vmatmul.mubr.bf16.gmra.mrb[0].mxu0 %v2229
    %v2396 = vpop.f32.mrb[0].mxu0
    %v2397 = vadd.f32 %v2237, %v2396
    %v2398 = vpop.f32.mrb[0].mxu0
    %v2399 = vadd.f32 %v2238, %v2398
    %v2400 = vpop.f32.mrb[0].mxu0
    %v2401 = vpop.f32.mrb[0].mxu0
    %2402 = vdwg.mxu0
    %v2403 = vxor.u32 %v2274, 2147483648
    %v2404 = vxor.u32 %v2276, 2147483648
    %v2405 = vmul.f32 %v2403, 1.442695
    %v2406 = vpow.pop %v2405
    %v2407 = vmul.f32 %v2404, 1.442695
    %v2408 = vpow.pop %v2407
    %v2409 = vadd.f32 %v2406, 1.0
    %v2410 = vadd.f32 %v2408, 1.0
    %v2411 = vrcp.pop %v2409
    %v2412 = vmul.f32 1.0, %v2411
    %v2413 = vrcp.pop %v2410
    %v2414 = vmul.f32 1.0, %v2413
    %v2415 = vxor.u32 %v2315, 2147483648
    %v2416 = vxor.u32 %v2317, 2147483648
    %v2417 = vmul.f32 %v2415, 1.442695
    %v2418 = vpow.pop %v2417
    %v2419 = vmul.f32 %v2416, 1.442695
    %v2420 = vpow.pop %v2419
    %v2421 = vadd.f32 %v2418, 1.0
    %v2422 = vadd.f32 %v2420, 1.0
    %v2423 = vrcp.pop %v2421
    %v2424 = vmul.f32 1.0, %v2423
    %v2425 = vrcp.pop %v2422
    %v2426 = vmul.f32 1.0, %v2425
    %v2427 = vtanh.pop %v2356
    %v2428 = vtanh.pop %v2358
    %v2429 = vxor.u32 %v2397, 2147483648
    %v2430 = vxor.u32 %v2399, 2147483648
    %v2431 = vmul.f32 %v2429, 1.442695
    %v2432 = vpow.pop %v2431
    %v2433 = vmul.f32 %v2430, 1.442695
    %v2434 = vpow.pop %v2433
    %v2435 = vadd.f32 %v2432, 1.0
    %v2436 = vadd.f32 %v2434, 1.0
    %v2437 = vrcp.pop %v2435
    %v2438 = vmul.f32 1.0, %v2437
    %v2439 = vrcp.pop %v2436
    %v2440 = vmul.f32 1.0, %v2439
    %v2441 = vmul.f32 %v2424, %v2221
    %v2442 = vmul.f32 %v2426, %v2222
    %v2443 = vmul.f32 %v2412, %v2427
    %v2444 = vmul.f32 %v2414, %v2428
    %v2445 = vadd.f32 %v2441, %v2443
    %v2446 = vadd.f32 %v2442, %v2444
    %v2447 = vtanh.pop %v2445
    %v2448 = vtanh.pop %v2446
    %v2449 = vmul.f32 %v2438, %v2447
    %v2450 = vmul.f32 %v2440, %v2448
    %2451 = vst [vmem:[%s4 + $0x40] sm:$0xff] %v2449
    %2452 = vst [vmem:[%s4 + $0x38] sm:$0xff] %v2450
    %v2453 = vpack.c.bf16 %v2449, %v2449
    %v2454 = vpack.c.bf16 %v2450, %v2450
    %v2455 = vld [vmem:[#allocation2 + $0x140] sm:$0xff]
    %v2456 = vld [vmem:[#allocation2 + $0x148] sm:$0xff]
    %v2457 = vld [vmem:[#allocation2 + $0x150] sm:$0xff]
    %v2458 = vld [vmem:[#allocation2 + $0x158] sm:$0xff]
    %v2459 = vld [vmem:[#allocation2 + $0x160] sm:$0xff]
    %v2460 = vld [vmem:[#allocation2 + $0x168] sm:$0xff]
    %v2461 = vld [vmem:[#allocation2 + $0x170] sm:$0xff]
    %v2462 = vld [vmem:[#allocation2 + $0x178] sm:$0xff]
    %2463 = vmatprep.subr.bf16.mxu0 %v1088
    %2464 = vmatpush1.bf16.msra.mxu0 %v1087
    %2465 = vmatprep.subr.bf16.mxu0 %v1096
    %2466 = vmatpush1.bf16.msra.mxu0 %v1095
    %2467 = vmatprep.subr.bf16.mxu0 %v1104
    %2468 = vmatpush1.bf16.msra.mxu0 %v1103
    %2469 = vmatprep.subr.bf16.mxu0 %v1112
    %2470 = vmatpush1.bf16.msra.mxu0 %v1111
    %2471 = vmatprep.subr.bf16.mxu0 %v1120
    %2472 = vmatpush1.bf16.msra.mxu0 %v1119
    %2473 = vmatprep.subr.bf16.mxu0 %v1128
    %2474 = vmatpush1.bf16.msra.mxu0 %v1127
    %2475 = vmatprep.subr.bf16.mxu0 %v1136
    %2476 = vmatpush1.bf16.msra.mxu0 %v1135
    %2477 = vmatprep.subr.bf16.mxu0 %v1144
    %2478 = vmatpush1.bf16.msra.mxu0 %v1143
    %2479 = vmatprep.subr.bf16.mxu0 %v1152
    %2480 = vmatpush1.bf16.msra.mxu0 %v1151
    %2481 = vmatprep.subr.bf16.mxu0 %v1160
    %2482 = vmatpush1.bf16.msra.mxu0 %v1159
    %2483 = vmatprep.subr.bf16.mxu0 %v1168
    %2484 = vmatpush1.bf16.msra.mxu0 %v1167
    %2485 = vmatprep.subr.bf16.mxu0 %v1176
    %2486 = vmatpush1.bf16.msra.mxu0 %v1175
    %2487 = vmatprep.subr.bf16.mxu0 %v1184
    %2488 = vmatpush1.bf16.msra.mxu0 %v1183
    %2489 = vmatprep.subr.bf16.mxu0 %v1192
    %2490 = vmatpush1.bf16.msra.mxu0 %v1191
    %2491 = vmatprep.subr.bf16.mxu0 %v1200
    %2492 = vmatpush1.bf16.msra.mxu0 %v1199
    %2493 = vmatprep.subr.bf16.mxu0 %v1208
    %2494 = vmatpush1.bf16.msra.mxu0 %v1207
    %2495 = vmatprep.mubr.bf16.mxu0 %v2454
    %2496 = vmatmul.mubr.bf16.gmra.mrb[0].mxu0 %v2453
    %v2497 = vpop.f32.mrb[0].mxu0
    %v2498 = vadd.f32 %v2455, %v2497
    %v2499 = vpop.f32.mrb[0].mxu0
    %v2500 = vadd.f32 %v2456, %v2499
    %v2501 = vpop.f32.mrb[0].mxu0
    %v2502 = vpop.f32.mrb[0].mxu0
    %2503 = vdwg.mxu0
    %2504 = vmatprep.subr.bf16.mxu0 %v1090
    %2505 = vmatpush1.bf16.msra.mxu0 %v1089
    %2506 = vmatprep.subr.bf16.mxu0 %v1098
    %2507 = vmatpush1.bf16.msra.mxu0 %v1097
    %2508 = vmatprep.subr.bf16.mxu0 %v1106
    %2509 = vmatpush1.bf16.msra.mxu0 %v1105
    %2510 = vmatprep.subr.bf16.mxu0 %v1114
    %2511 = vmatpush1.bf16.msra.mxu0 %v1113
    %2512 = vmatprep.subr.bf16.mxu0 %v1122
    %2513 = vmatpush1.bf16.msra.mxu0 %v1121
    %2514 = vmatprep.subr.bf16.mxu0 %v1130
    %2515 = vmatpush1.bf16.msra.mxu0 %v1129
    %2516 = vmatprep.subr.bf16.mxu0 %v1138
    %2517 = vmatpush1.bf16.msra.mxu0 %v1137
    %2518 = vmatprep.subr.bf16.mxu0 %v1146
    %2519 = vmatpush1.bf16.msra.mxu0 %v1145
    %2520 = vmatprep.subr.bf16.mxu0 %v1154
    %2521 = vmatpush1.bf16.msra.mxu0 %v1153
    %2522 = vmatprep.subr.bf16.mxu0 %v1162
    %2523 = vmatpush1.bf16.msra.mxu0 %v1161
    %2524 = vmatprep.subr.bf16.mxu0 %v1170
    %2525 = vmatpush1.bf16.msra.mxu0 %v1169
    %2526 = vmatprep.subr.bf16.mxu0 %v1178
    %2527 = vmatpush1.bf16.msra.mxu0 %v1177
    %2528 = vmatprep.subr.bf16.mxu0 %v1186
    %2529 = vmatpush1.bf16.msra.mxu0 %v1185
    %2530 = vmatprep.subr.bf16.mxu0 %v1194
    %2531 = vmatpush1.bf16.msra.mxu0 %v1193
    %2532 = vmatprep.subr.bf16.mxu0 %v1202
    %2533 = vmatpush1.bf16.msra.mxu0 %v1201
    %2534 = vmatprep.subr.bf16.mxu0 %v1210
    %2535 = vmatpush1.bf16.msra.mxu0 %v1209
    %2536 = vmatprep.mubr.bf16.mxu0 %v2454
    %2537 = vmatmul.mubr.bf16.gmra.mrb[0].mxu0 %v2453
    %v2538 = vpop.f32.mrb[0].mxu0
    %v2539 = vadd.f32 %v2457, %v2538
    %v2540 = vpop.f32.mrb[0].mxu0
    %v2541 = vadd.f32 %v2458, %v2540
    %v2542 = vpop.f32.mrb[0].mxu0
    %v2543 = vpop.f32.mrb[0].mxu0
    %2544 = vdwg.mxu0
    %2545 = vmatprep.subr.bf16.mxu0 %v1092
    %2546 = vmatpush1.bf16.msra.mxu0 %v1091
    %2547 = vmatprep.subr.bf16.mxu0 %v1100
    %2548 = vmatpush1.bf16.msra.mxu0 %v1099
    %2549 = vmatprep.subr.bf16.mxu0 %v1108
    %2550 = vmatpush1.bf16.msra.mxu0 %v1107
    %2551 = vmatprep.subr.bf16.mxu0 %v1116
    %2552 = vmatpush1.bf16.msra.mxu0 %v1115
    %2553 = vmatprep.subr.bf16.mxu0 %v1124
    %2554 = vmatpush1.bf16.msra.mxu0 %v1123
    %2555 = vmatprep.subr.bf16.mxu0 %v1132
    %2556 = vmatpush1.bf16.msra.mxu0 %v1131
    %2557 = vmatprep.subr.bf16.mxu0 %v1140
    %2558 = vmatpush1.bf16.msra.mxu0 %v1139
    %2559 = vmatprep.subr.bf16.mxu0 %v1148
    %2560 = vmatpush1.bf16.msra.mxu0 %v1147
    %2561 = vmatprep.subr.bf16.mxu0 %v1156
    %2562 = vmatpush1.bf16.msra.mxu0 %v1155
    %2563 = vmatprep.subr.bf16.mxu0 %v1164
    %2564 = vmatpush1.bf16.msra.mxu0 %v1163
    %2565 = vmatprep.subr.bf16.mxu0 %v1172
    %2566 = vmatpush1.bf16.msra.mxu0 %v1171
    %2567 = vmatprep.subr.bf16.mxu0 %v1180
    %2568 = vmatpush1.bf16.msra.mxu0 %v1179
    %2569 = vmatprep.subr.bf16.mxu0 %v1188
    %2570 = vmatpush1.bf16.msra.mxu0 %v1187
    %2571 = vmatprep.subr.bf16.mxu0 %v1196
    %2572 = vmatpush1.bf16.msra.mxu0 %v1195
    %2573 = vmatprep.subr.bf16.mxu0 %v1204
    %2574 = vmatpush1.bf16.msra.mxu0 %v1203
    %2575 = vmatprep.subr.bf16.mxu0 %v1212
    %2576 = vmatpush1.bf16.msra.mxu0 %v1211
    %2577 = vmatprep.mubr.bf16.mxu0 %v2454
    %2578 = vmatmul.mubr.bf16.gmra.mrb[0].mxu0 %v2453
    %v2579 = vpop.f32.mrb[0].mxu0
    %v2580 = vadd.f32 %v2459, %v2579
    %v2581 = vpop.f32.mrb[0].mxu0
    %v2582 = vadd.f32 %v2460, %v2581
    %v2583 = vpop.f32.mrb[0].mxu0
    %v2584 = vpop.f32.mrb[0].mxu0
    %2585 = vdwg.mxu0
    %2586 = vmatprep.subr.bf16.mxu0 %v1094
    %2587 = vmatpush1.bf16.msra.mxu0 %v1093
    %2588 = vmatprep.subr.bf16.mxu0 %v1102
    %2589 = vmatpush1.bf16.msra.mxu0 %v1101
    %2590 = vmatprep.subr.bf16.mxu0 %v1110
    %2591 = vmatpush1.bf16.msra.mxu0 %v1109
    %2592 = vmatprep.subr.bf16.mxu0 %v1118
    %2593 = vmatpush1.bf16.msra.mxu0 %v1117
    %2594 = vmatprep.subr.bf16.mxu0 %v1126
    %2595 = vmatpush1.bf16.msra.mxu0 %v1125
    %2596 = vmatprep.subr.bf16.mxu0 %v1134
    %2597 = vmatpush1.bf16.msra.mxu0 %v1133
    %2598 = vmatprep.subr.bf16.mxu0 %v1142
    %2599 = vmatpush1.bf16.msra.mxu0 %v1141
    %2600 = vmatprep.subr.bf16.mxu0 %v1150
    %2601 = vmatpush1.bf16.msra.mxu0 %v1149
    %2602 = vmatprep.subr.bf16.mxu0 %v1158
    %2603 = vmatpush1.bf16.msra.mxu0 %v1157
    %2604 = vmatprep.subr.bf16.mxu0 %v1166
    %2605 = vmatpush1.bf16.msra.mxu0 %v1165
    %2606 = vmatprep.subr.bf16.mxu0 %v1174
    %2607 = vmatpush1.bf16.msra.mxu0 %v1173
    %2608 = vmatprep.subr.bf16.mxu0 %v1182
    %2609 = vmatpush1.bf16.msra.mxu0 %v1181
    %2610 = vmatprep.subr.bf16.mxu0 %v1190
    %2611 = vmatpush1.bf16.msra.mxu0 %v1189
    %2612 = vmatprep.subr.bf16.mxu0 %v1198
    %2613 = vmatpush1.bf16.msra.mxu0 %v1197
    %2614 = vmatprep.subr.bf16.mxu0 %v1206
    %2615 = vmatpush1.bf16.msra.mxu0 %v1205
    %2616 = vmatprep.subr.bf16.mxu0 %v1214
    %2617 = vmatpush1.bf16.msra.mxu0 %v1213
    %2618 = vmatprep.mubr.bf16.mxu0 %v2454
    %2619 = vmatmul.mubr.bf16.gmra.mrb[0].mxu0 %v2453
    %v2620 = vpop.f32.mrb[0].mxu0
    %v2621 = vadd.f32 %v2461, %v2620
    %v2622 = vpop.f32.mrb[0].mxu0
    %v2623 = vadd.f32 %v2462, %v2622
    %v2624 = vpop.f32.mrb[0].mxu0
    %v2625 = vpop.f32.mrb[0].mxu0
    %2626 = vdwg.mxu0
    %v2627 = vxor.u32 %v2498, 2147483648
    %v2628 = vxor.u32 %v2500, 2147483648
    %v2629 = vmul.f32 %v2627, 1.442695
    %v2630 = vpow.pop %v2629
    %v2631 = vmul.f32 %v2628, 1.442695
    %v2632 = vpow.pop %v2631
    %v2633 = vadd.f32 %v2630, 1.0
    %v2634 = vadd.f32 %v2632, 1.0
    %v2635 = vrcp.pop %v2633
    %v2636 = vmul.f32 1.0, %v2635
    %v2637 = vrcp.pop %v2634
    %v2638 = vmul.f32 1.0, %v2637
    %v2639 = vxor.u32 %v2539, 2147483648
    %v2640 = vxor.u32 %v2541, 2147483648
    %v2641 = vmul.f32 %v2639, 1.442695
    %v2642 = vpow.pop %v2641
    %v2643 = vmul.f32 %v2640, 1.442695
    %v2644 = vpow.pop %v2643
    %v2645 = vadd.f32 %v2642, 1.0
    %v2646 = vadd.f32 %v2644, 1.0
    %v2647 = vrcp.pop %v2645
    %v2648 = vmul.f32 1.0, %v2647
    %v2649 = vrcp.pop %v2646
    %v2650 = vmul.f32 1.0, %v2649
    %v2651 = vtanh.pop %v2580
    %v2652 = vtanh.pop %v2582
    %v2653 = vxor.u32 %v2621, 2147483648
    %v2654 = vxor.u32 %v2623, 2147483648
    %v2655 = vmul.f32 %v2653, 1.442695
    %v2656 = vpow.pop %v2655
    %v2657 = vmul.f32 %v2654, 1.442695
    %v2658 = vpow.pop %v2657
    %v2659 = vadd.f32 %v2656, 1.0
    %v2660 = vadd.f32 %v2658, 1.0
    %v2661 = vrcp.pop %v2659
    %v2662 = vmul.f32 1.0, %v2661
    %v2663 = vrcp.pop %v2660
    %v2664 = vmul.f32 1.0, %v2663
    %v2665 = vmul.f32 %v2648, %v2445
    %v2666 = vmul.f32 %v2650, %v2446
    %v2667 = vmul.f32 %v2636, %v2651
    %v2668 = vmul.f32 %v2638, %v2652
    %v2669 = vadd.f32 %v2665, %v2667
    %v2670 = vadd.f32 %v2666, %v2668
    %v2671 = vtanh.pop %v2669
    %v2672 = vtanh.pop %v2670
    %v2673 = vmul.f32 %v2662, %v2671
    %v2674 = vmul.f32 %v2664, %v2672
    %2675 = vst [vmem:[%s4 + $0x50] sm:$0xff] %v2673
    %2676 = vst [vmem:[%s4 + $0x28] sm:$0xff] %v2674
    %v2677 = vpack.c.bf16 %v2673, %v2673
    %v2678 = vpack.c.bf16 %v2674, %v2674
    %v2679 = vld [vmem:[#allocation2 + $0x180] sm:$0xff]
    %v2680 = vld [vmem:[#allocation2 + $0x188] sm:$0xff]
    %v2681 = vld [vmem:[#allocation2 + $0x190] sm:$0xff]
    %v2682 = vld [vmem:[#allocation2 + $0x198] sm:$0xff]
    %v2683 = vld [vmem:[#allocation2 + $0x1a0] sm:$0xff]
    %v2684 = vld [vmem:[#allocation2 + $0x1a8] sm:$0xff]
    %v2685 = vld [vmem:[#allocation2 + $0x1b0] sm:$0xff]
    %v2686 = vld [vmem:[#allocation2 + $0x1b8] sm:$0xff]
    %2687 = vmatprep.subr.bf16.mxu0 %v1088
    %2688 = vmatpush1.bf16.msra.mxu0 %v1087
    %2689 = vmatprep.subr.bf16.mxu0 %v1096
    %2690 = vmatpush1.bf16.msra.mxu0 %v1095
    %2691 = vmatprep.subr.bf16.mxu0 %v1104
    %2692 = vmatpush1.bf16.msra.mxu0 %v1103
    %2693 = vmatprep.subr.bf16.mxu0 %v1112
    %2694 = vmatpush1.bf16.msra.mxu0 %v1111
    %2695 = vmatprep.subr.bf16.mxu0 %v1120
    %2696 = vmatpush1.bf16.msra.mxu0 %v1119
    %2697 = vmatprep.subr.bf16.mxu0 %v1128
    %2698 = vmatpush1.bf16.msra.mxu0 %v1127
    %2699 = vmatprep.subr.bf16.mxu0 %v1136
    %2700 = vmatpush1.bf16.msra.mxu0 %v1135
    %2701 = vmatprep.subr.bf16.mxu0 %v1144
    %2702 = vmatpush1.bf16.msra.mxu0 %v1143
    %2703 = vmatprep.subr.bf16.mxu0 %v1152
    %2704 = vmatpush1.bf16.msra.mxu0 %v1151
    %2705 = vmatprep.subr.bf16.mxu0 %v1160
    %2706 = vmatpush1.bf16.msra.mxu0 %v1159
    %2707 = vmatprep.subr.bf16.mxu0 %v1168
    %2708 = vmatpush1.bf16.msra.mxu0 %v1167
    %2709 = vmatprep.subr.bf16.mxu0 %v1176
    %2710 = vmatpush1.bf16.msra.mxu0 %v1175
    %2711 = vmatprep.subr.bf16.mxu0 %v1184
    %2712 = vmatpush1.bf16.msra.mxu0 %v1183
    %2713 = vmatprep.subr.bf16.mxu0 %v1192
    %2714 = vmatpush1.bf16.msra.mxu0 %v1191
    %2715 = vmatprep.subr.bf16.mxu0 %v1200
    %2716 = vmatpush1.bf16.msra.mxu0 %v1199
    %2717 = vmatprep.subr.bf16.mxu0 %v1208
    %2718 = vmatpush1.bf16.msra.mxu0 %v1207
    %2719 = vmatprep.mubr.bf16.mxu0 %v2678
    %2720 = vmatmul.mubr.bf16.gmra.mrb[0].mxu0 %v2677
    %v2721 = vpop.f32.mrb[0].mxu0
    %v2722 = vadd.f32 %v2679, %v2721
    %v2723 = vpop.f32.mrb[0].mxu0
    %v2724 = vadd.f32 %v2680, %v2723
    %v2725 = vpop.f32.mrb[0].mxu0
    %v2726 = vpop.f32.mrb[0].mxu0
    %2727 = vdwg.mxu0
    %2728 = vmatprep.subr.bf16.mxu0 %v1090
    %2729 = vmatpush1.bf16.msra.mxu0 %v1089
    %2730 = vmatprep.subr.bf16.mxu0 %v1098
    %2731 = vmatpush1.bf16.msra.mxu0 %v1097
    %2732 = vmatprep.subr.bf16.mxu0 %v1106
    %2733 = vmatpush1.bf16.msra.mxu0 %v1105
    %2734 = vmatprep.subr.bf16.mxu0 %v1114
    %2735 = vmatpush1.bf16.msra.mxu0 %v1113
    %2736 = vmatprep.subr.bf16.mxu0 %v1122
    %2737 = vmatpush1.bf16.msra.mxu0 %v1121
    %2738 = vmatprep.subr.bf16.mxu0 %v1130
    %2739 = vmatpush1.bf16.msra.mxu0 %v1129
    %2740 = vmatprep.subr.bf16.mxu0 %v1138
    %2741 = vmatpush1.bf16.msra.mxu0 %v1137
    %2742 = vmatprep.subr.bf16.mxu0 %v1146
    %2743 = vmatpush1.bf16.msra.mxu0 %v1145
    %2744 = vmatprep.subr.bf16.mxu0 %v1154
    %2745 = vmatpush1.bf16.msra.mxu0 %v1153
    %2746 = vmatprep.subr.bf16.mxu0 %v1162
    %2747 = vmatpush1.bf16.msra.mxu0 %v1161
    %2748 = vmatprep.subr.bf16.mxu0 %v1170
    %2749 = vmatpush1.bf16.msra.mxu0 %v1169
    %2750 = vmatprep.subr.bf16.mxu0 %v1178
    %2751 = vmatpush1.bf16.msra.mxu0 %v1177
    %2752 = vmatprep.subr.bf16.mxu0 %v1186
    %2753 = vmatpush1.bf16.msra.mxu0 %v1185
    %2754 = vmatprep.subr.bf16.mxu0 %v1194
    %2755 = vmatpush1.bf16.msra.mxu0 %v1193
    %2756 = vmatprep.subr.bf16.mxu0 %v1202
    %2757 = vmatpush1.bf16.msra.mxu0 %v1201
    %2758 = vmatprep.subr.bf16.mxu0 %v1210
    %2759 = vmatpush1.bf16.msra.mxu0 %v1209
    %2760 = vmatprep.mubr.bf16.mxu0 %v2678
    %2761 = vmatmul.mubr.bf16.gmra.mrb[0].mxu0 %v2677
    %v2762 = vpop.f32.mrb[0].mxu0
    %v2763 = vadd.f32 %v2681, %v2762
    %v2764 = vpop.f32.mrb[0].mxu0
    %v2765 = vadd.f32 %v2682, %v2764
    %v2766 = vpop.f32.mrb[0].mxu0
    %v2767 = vpop.f32.mrb[0].mxu0
    %2768 = vdwg.mxu0
    %2769 = vmatprep.subr.bf16.mxu0 %v1092
    %2770 = vmatpush1.bf16.msra.mxu0 %v1091
    %2771 = vmatprep.subr.bf16.mxu0 %v1100
    %2772 = vmatpush1.bf16.msra.mxu0 %v1099
    %2773 = vmatprep.subr.bf16.mxu0 %v1108
    %2774 = vmatpush1.bf16.msra.mxu0 %v1107
    %2775 = vmatprep.subr.bf16.mxu0 %v1116
    %2776 = vmatpush1.bf16.msra.mxu0 %v1115
    %2777 = vmatprep.subr.bf16.mxu0 %v1124
    %2778 = vmatpush1.bf16.msra.mxu0 %v1123
    %2779 = vmatprep.subr.bf16.mxu0 %v1132
    %2780 = vmatpush1.bf16.msra.mxu0 %v1131
    %2781 = vmatprep.subr.bf16.mxu0 %v1140
    %2782 = vmatpush1.bf16.msra.mxu0 %v1139
    %2783 = vmatprep.subr.bf16.mxu0 %v1148
    %2784 = vmatpush1.bf16.msra.mxu0 %v1147
    %2785 = vmatprep.subr.bf16.mxu0 %v1156
    %2786 = vmatpush1.bf16.msra.mxu0 %v1155
    %2787 = vmatprep.subr.bf16.mxu0 %v1164
    %2788 = vmatpush1.bf16.msra.mxu0 %v1163
    %2789 = vmatprep.subr.bf16.mxu0 %v1172
    %2790 = vmatpush1.bf16.msra.mxu0 %v1171
    %2791 = vmatprep.subr.bf16.mxu0 %v1180
    %2792 = vmatpush1.bf16.msra.mxu0 %v1179
    %2793 = vmatprep.subr.bf16.mxu0 %v1188
    %2794 = vmatpush1.bf16.msra.mxu0 %v1187
    %2795 = vmatprep.subr.bf16.mxu0 %v1196
    %2796 = vmatpush1.bf16.msra.mxu0 %v1195
    %2797 = vmatprep.subr.bf16.mxu0 %v1204
    %2798 = vmatpush1.bf16.msra.mxu0 %v1203
    %2799 = vmatprep.subr.bf16.mxu0 %v1212
    %2800 = vmatpush1.bf16.msra.mxu0 %v1211
    %2801 = vmatprep.mubr.bf16.mxu0 %v2678
    %2802 = vmatmul.mubr.bf16.gmra.mrb[0].mxu0 %v2677
    %v2803 = vpop.f32.mrb[0].mxu0
    %v2804 = vadd.f32 %v2683, %v2803
    %v2805 = vpop.f32.mrb[0].mxu0
    %v2806 = vadd.f32 %v2684, %v2805
    %v2807 = vpop.f32.mrb[0].mxu0
    %v2808 = vpop.f32.mrb[0].mxu0
    %2809 = vdwg.mxu0
    %2810 = vmatprep.subr.bf16.mxu0 %v1094
    %2811 = vmatpush1.bf16.msra.mxu0 %v1093
    %2812 = vmatprep.subr.bf16.mxu0 %v1102
    %2813 = vmatpush1.bf16.msra.mxu0 %v1101
    %2814 = vmatprep.subr.bf16.mxu0 %v1110
    %2815 = vmatpush1.bf16.msra.mxu0 %v1109
    %2816 = vmatprep.subr.bf16.mxu0 %v1118
    %2817 = vmatpush1.bf16.msra.mxu0 %v1117
    %2818 = vmatprep.subr.bf16.mxu0 %v1126
    %2819 = vmatpush1.bf16.msra.mxu0 %v1125
    %2820 = vmatprep.subr.bf16.mxu0 %v1134
    %2821 = vmatpush1.bf16.msra.mxu0 %v1133
    %2822 = vmatprep.subr.bf16.mxu0 %v1142
    %2823 = vmatpush1.bf16.msra.mxu0 %v1141
    %2824 = vmatprep.subr.bf16.mxu0 %v1150
    %2825 = vmatpush1.bf16.msra.mxu0 %v1149
    %2826 = vmatprep.subr.bf16.mxu0 %v1158
    %2827 = vmatpush1.bf16.msra.mxu0 %v1157
    %2828 = vmatprep.subr.bf16.mxu0 %v1166
    %2829 = vmatpush1.bf16.msra.mxu0 %v1165
    %2830 = vmatprep.subr.bf16.mxu0 %v1174
    %2831 = vmatpush1.bf16.msra.mxu0 %v1173
    %2832 = vmatprep.subr.bf16.mxu0 %v1182
    %2833 = vmatpush1.bf16.msra.mxu0 %v1181
    %2834 = vmatprep.subr.bf16.mxu0 %v1190
    %2835 = vmatpush1.bf16.msra.mxu0 %v1189
    %2836 = vmatprep.subr.bf16.mxu0 %v1198
    %2837 = vmatpush1.bf16.msra.mxu0 %v1197
    %2838 = vmatprep.subr.bf16.mxu0 %v1206
    %2839 = vmatpush1.bf16.msra.mxu0 %v1205
    %2840 = vmatprep.subr.bf16.mxu0 %v1214
    %2841 = vmatpush1.bf16.msra.mxu0 %v1213
    %2842 = vmatprep.mubr.bf16.mxu0 %v2678
    %2843 = vmatmul.mubr.bf16.gmra.mrb[0].mxu0 %v2677
    %v2844 = vpop.f32.mrb[0].mxu0
    %v2845 = vadd.f32 %v2685, %v2844
    %v2846 = vpop.f32.mrb[0].mxu0
    %v2847 = vadd.f32 %v2686, %v2846
    %v2848 = vpop.f32.mrb[0].mxu0
    %v2849 = vpop.f32.mrb[0].mxu0
    %2850 = vdwg.mxu0
    %v2851 = vxor.u32 %v2722, 2147483648
    %v2852 = vxor.u32 %v2724, 2147483648
    %v2853 = vmul.f32 %v2851, 1.442695
    %v2854 = vpow.pop %v2853
    %v2855 = vmul.f32 %v2852, 1.442695
    %v2856 = vpow.pop %v2855
    %v2857 = vadd.f32 %v2854, 1.0
    %v2858 = vadd.f32 %v2856, 1.0
    %v2859 = vrcp.pop %v2857
    %v2860 = vmul.f32 1.0, %v2859
    %v2861 = vrcp.pop %v2858
    %v2862 = vmul.f32 1.0, %v2861
    %v2863 = vxor.u32 %v2763, 2147483648
    %v2864 = vxor.u32 %v2765, 2147483648
    %v2865 = vmul.f32 %v2863, 1.442695
    %v2866 = vpow.pop %v2865
    %v2867 = vmul.f32 %v2864, 1.442695
    %v2868 = vpow.pop %v2867
    %v2869 = vadd.f32 %v2866, 1.0
    %v2870 = vadd.f32 %v2868, 1.0
    %v2871 = vrcp.pop %v2869
    %v2872 = vmul.f32 1.0, %v2871
    %v2873 = vrcp.pop %v2870
    %v2874 = vmul.f32 1.0, %v2873
    %v2875 = vtanh.pop %v2804
    %v2876 = vtanh.pop %v2806
    %v2877 = vxor.u32 %v2845, 2147483648
    %v2878 = vxor.u32 %v2847, 2147483648
    %v2879 = vmul.f32 %v2877, 1.442695
    %v2880 = vpow.pop %v2879
    %v2881 = vmul.f32 %v2878, 1.442695
    %v2882 = vpow.pop %v2881
    %v2883 = vadd.f32 %v2880, 1.0
    %v2884 = vadd.f32 %v2882, 1.0
    %v2885 = vrcp.pop %v2883
    %v2886 = vmul.f32 1.0, %v2885
    %v2887 = vrcp.pop %v2884
    %v2888 = vmul.f32 1.0, %v2887
    %v2889 = vmul.f32 %v2872, %v2669
    %v2890 = vmul.f32 %v2874, %v2670
    %v2891 = vmul.f32 %v2860, %v2875
    %v2892 = vmul.f32 %v2862, %v2876
    %v2893 = vadd.f32 %v2889, %v2891
    %v2894 = vadd.f32 %v2890, %v2892
    %v2895 = vtanh.pop %v2893
    %v2896 = vtanh.pop %v2894
    %v2897 = vmul.f32 %v2886, %v2895
    %v2898 = vmul.f32 %v2888, %v2896
    %2899 = vst [vmem:[%s4 + $0x60] sm:$0xff] %v2897
    %2900 = vst [vmem:[%s4 + $0x18] sm:$0xff] %v2898
    %v2901 = vpack.c.bf16 %v2897, %v2897
    %v2902 = vpack.c.bf16 %v2898, %v2898
    %v2903 = vld [vmem:[#allocation2 + $0x1c0] sm:$0xff]
    %v2904 = vld [vmem:[#allocation2 + $0x1c8] sm:$0xff]
    %v2905 = vld [vmem:[#allocation2 + $0x1d0] sm:$0xff]
    %v2906 = vld [vmem:[#allocation2 + $0x1d8] sm:$0xff]
    %v2907 = vld [vmem:[#allocation2 + $0x1e0] sm:$0xff]
    %v2908 = vld [vmem:[#allocation2 + $0x1e8] sm:$0xff]
    %v2909 = vld [vmem:[#allocation2 + $0x1f0] sm:$0xff]
    %v2910 = vld [vmem:[#allocation2 + $0x1f8] sm:$0xff]
    %2911 = vmatprep.subr.bf16.mxu0 %v1088
    %2912 = vmatpush1.bf16.msra.mxu0 %v1087
    %2913 = vmatprep.subr.bf16.mxu0 %v1096
    %2914 = vmatpush1.bf16.msra.mxu0 %v1095
    %2915 = vmatprep.subr.bf16.mxu0 %v1104
    %2916 = vmatpush1.bf16.msra.mxu0 %v1103
    %2917 = vmatprep.subr.bf16.mxu0 %v1112
    %2918 = vmatpush1.bf16.msra.mxu0 %v1111
    %2919 = vmatprep.subr.bf16.mxu0 %v1120
    %2920 = vmatpush1.bf16.msra.mxu0 %v1119
    %2921 = vmatprep.subr.bf16.mxu0 %v1128
    %2922 = vmatpush1.bf16.msra.mxu0 %v1127
    %2923 = vmatprep.subr.bf16.mxu0 %v1136
    %2924 = vmatpush1.bf16.msra.mxu0 %v1135
    %2925 = vmatprep.subr.bf16.mxu0 %v1144
    %2926 = vmatpush1.bf16.msra.mxu0 %v1143
    %2927 = vmatprep.subr.bf16.mxu0 %v1152
    %2928 = vmatpush1.bf16.msra.mxu0 %v1151
    %2929 = vmatprep.subr.bf16.mxu0 %v1160
    %2930 = vmatpush1.bf16.msra.mxu0 %v1159
    %2931 = vmatprep.subr.bf16.mxu0 %v1168
    %2932 = vmatpush1.bf16.msra.mxu0 %v1167
    %2933 = vmatprep.subr.bf16.mxu0 %v1176
    %2934 = vmatpush1.bf16.msra.mxu0 %v1175
    %2935 = vmatprep.subr.bf16.mxu0 %v1184
    %2936 = vmatpush1.bf16.msra.mxu0 %v1183
    %2937 = vmatprep.subr.bf16.mxu0 %v1192
    %2938 = vmatpush1.bf16.msra.mxu0 %v1191
    %2939 = vmatprep.subr.bf16.mxu0 %v1200
    %2940 = vmatpush1.bf16.msra.mxu0 %v1199
    %2941 = vmatprep.subr.bf16.mxu0 %v1208
    %2942 = vmatpush1.bf16.msra.mxu0 %v1207
    %2943 = vmatprep.mubr.bf16.mxu0 %v2902
    %2944 = vmatmul.mubr.bf16.gmra.mrb[0].mxu0 %v2901
    %v2945 = vpop.f32.mrb[0].mxu0
    %v2946 = vadd.f32 %v2903, %v2945
    %v2947 = vpop.f32.mrb[0].mxu0
    %v2948 = vadd.f32 %v2904, %v2947
    %v2949 = vpop.f32.mrb[0].mxu0
    %v2950 = vpop.f32.mrb[0].mxu0
    %2951 = vdwg.mxu0
    %2952 = vmatprep.subr.bf16.mxu0 %v1090
    %2953 = vmatpush1.bf16.msra.mxu0 %v1089
    %2954 = vmatprep.subr.bf16.mxu0 %v1098
    %2955 = vmatpush1.bf16.msra.mxu0 %v1097
    %2956 = vmatprep.subr.bf16.mxu0 %v1106
    %2957 = vmatpush1.bf16.msra.mxu0 %v1105
    %2958 = vmatprep.subr.bf16.mxu0 %v1114
    %2959 = vmatpush1.bf16.msra.mxu0 %v1113
    %2960 = vmatprep.subr.bf16.mxu0 %v1122
    %2961 = vmatpush1.bf16.msra.mxu0 %v1121
    %2962 = vmatprep.subr.bf16.mxu0 %v1130
    %2963 = vmatpush1.bf16.msra.mxu0 %v1129
    %2964 = vmatprep.subr.bf16.mxu0 %v1138
    %2965 = vmatpush1.bf16.msra.mxu0 %v1137
    %2966 = vmatprep.subr.bf16.mxu0 %v1146
    %2967 = vmatpush1.bf16.msra.mxu0 %v1145
    %2968 = vmatprep.subr.bf16.mxu0 %v1154
    %2969 = vmatpush1.bf16.msra.mxu0 %v1153
    %2970 = vmatprep.subr.bf16.mxu0 %v1162
    %2971 = vmatpush1.bf16.msra.mxu0 %v1161
    %2972 = vmatprep.subr.bf16.mxu0 %v1170
    %2973 = vmatpush1.bf16.msra.mxu0 %v1169
    %2974 = vmatprep.subr.bf16.mxu0 %v1178
    %2975 = vmatpush1.bf16.msra.mxu0 %v1177
    %2976 = vmatprep.subr.bf16.mxu0 %v1186
    %2977 = vmatpush1.bf16.msra.mxu0 %v1185
    %2978 = vmatprep.subr.bf16.mxu0 %v1194
    %2979 = vmatpush1.bf16.msra.mxu0 %v1193
    %2980 = vmatprep.subr.bf16.mxu0 %v1202
    %2981 = vmatpush1.bf16.msra.mxu0 %v1201
    %2982 = vmatprep.subr.bf16.mxu0 %v1210
    %2983 = vmatpush1.bf16.msra.mxu0 %v1209
    %2984 = vmatprep.mubr.bf16.mxu0 %v2902
    %2985 = vmatmul.mubr.bf16.gmra.mrb[0].mxu0 %v2901
    %v2986 = vpop.f32.mrb[0].mxu0
    %v2987 = vadd.f32 %v2905, %v2986
    %v2988 = vpop.f32.mrb[0].mxu0
    %v2989 = vadd.f32 %v2906, %v2988
    %v2990 = vpop.f32.mrb[0].mxu0
    %v2991 = vpop.f32.mrb[0].mxu0
    %2992 = vdwg.mxu0
    %2993 = vmatprep.subr.bf16.mxu0 %v1092
    %2994 = vmatpush1.bf16.msra.mxu0 %v1091
    %2995 = vmatprep.subr.bf16.mxu0 %v1100
    %2996 = vmatpush1.bf16.msra.mxu0 %v1099
    %2997 = vmatprep.subr.bf16.mxu0 %v1108
    %2998 = vmatpush1.bf16.msra.mxu0 %v1107
    %2999 = vmatprep.subr.bf16.mxu0 %v1116
    %3000 = vmatpush1.bf16.msra.mxu0 %v1115
    %3001 = vmatprep.subr.bf16.mxu0 %v1124
    %3002 = vmatpush1.bf16.msra.mxu0 %v1123
    %3003 = vmatprep.subr.bf16.mxu0 %v1132
    %3004 = vmatpush1.bf16.msra.mxu0 %v1131
    %3005 = vmatprep.subr.bf16.mxu0 %v1140
    %3006 = vmatpush1.bf16.msra.mxu0 %v1139
    %3007 = vmatprep.subr.bf16.mxu0 %v1148
    %3008 = vmatpush1.bf16.msra.mxu0 %v1147
    %3009 = vmatprep.subr.bf16.mxu0 %v1156
    %3010 = vmatpush1.bf16.msra.mxu0 %v1155
    %3011 = vmatprep.subr.bf16.mxu0 %v1164
    %3012 = vmatpush1.bf16.msra.mxu0 %v1163
    %3013 = vmatprep.subr.bf16.mxu0 %v1172
    %3014 = vmatpush1.bf16.msra.mxu0 %v1171
    %3015 = vmatprep.subr.bf16.mxu0 %v1180
    %3016 = vmatpush1.bf16.msra.mxu0 %v1179
    %3017 = vmatprep.subr.bf16.mxu0 %v1188
    %3018 = vmatpush1.bf16.msra.mxu0 %v1187
    %3019 = vmatprep.subr.bf16.mxu0 %v1196
    %3020 = vmatpush1.bf16.msra.mxu0 %v1195
    %3021 = vmatprep.subr.bf16.mxu0 %v1204
    %3022 = vmatpush1.bf16.msra.mxu0 %v1203
    %3023 = vmatprep.subr.bf16.mxu0 %v1212
    %3024 = vmatpush1.bf16.msra.mxu0 %v1211
    %3025 = vmatprep.mubr.bf16.mxu0 %v2902
    %3026 = vmatmul.mubr.bf16.gmra.mrb[0].mxu0 %v2901
    %v3027 = vpop.f32.mrb[0].mxu0
    %v3028 = vadd.f32 %v2907, %v3027
    %v3029 = vpop.f32.mrb[0].mxu0
    %v3030 = vadd.f32 %v2908, %v3029
    %v3031 = vpop.f32.mrb[0].mxu0
    %v3032 = vpop.f32.mrb[0].mxu0
    %3033 = vdwg.mxu0
    %3034 = vmatprep.subr.bf16.mxu0 %v1094
    %3035 = vmatpush1.bf16.msra.mxu0 %v1093
    %3036 = vmatprep.subr.bf16.mxu0 %v1102
    %3037 = vmatpush1.bf16.msra.mxu0 %v1101
    %3038 = vmatprep.subr.bf16.mxu0 %v1110
    %3039 = vmatpush1.bf16.msra.mxu0 %v1109
    %3040 = vmatprep.subr.bf16.mxu0 %v1118
    %3041 = vmatpush1.bf16.msra.mxu0 %v1117
    %3042 = vmatprep.subr.bf16.mxu0 %v1126
    %3043 = vmatpush1.bf16.msra.mxu0 %v1125
    %3044 = vmatprep.subr.bf16.mxu0 %v1134
    %3045 = vmatpush1.bf16.msra.mxu0 %v1133
    %3046 = vmatprep.subr.bf16.mxu0 %v1142
    %3047 = vmatpush1.bf16.msra.mxu0 %v1141
    %3048 = vmatprep.subr.bf16.mxu0 %v1150
    %3049 = vmatpush1.bf16.msra.mxu0 %v1149
    %3050 = vmatprep.subr.bf16.mxu0 %v1158
    %3051 = vmatpush1.bf16.msra.mxu0 %v1157
    %3052 = vmatprep.subr.bf16.mxu0 %v1166
    %3053 = vmatpush1.bf16.msra.mxu0 %v1165
    %3054 = vmatprep.subr.bf16.mxu0 %v1174
    %3055 = vmatpush1.bf16.msra.mxu0 %v1173
    %3056 = vmatprep.subr.bf16.mxu0 %v1182
    %3057 = vmatpush1.bf16.msra.mxu0 %v1181
    %3058 = vmatprep.subr.bf16.mxu0 %v1190
    %3059 = vmatpush1.bf16.msra.mxu0 %v1189
    %3060 = vmatprep.subr.bf16.mxu0 %v1198
    %3061 = vmatpush1.bf16.msra.mxu0 %v1197
    %3062 = vmatprep.subr.bf16.mxu0 %v1206
    %3063 = vmatpush1.bf16.msra.mxu0 %v1205
    %3064 = vmatprep.subr.bf16.mxu0 %v1214
    %3065 = vmatpush1.bf16.msra.mxu0 %v1213
    %3066 = vmatprep.mubr.bf16.mxu0 %v2902
    %3067 = vmatmul.mubr.bf16.gmra.mrb[0].mxu0 %v2901
    %v3068 = vpop.f32.mrb[0].mxu0
    %v3069 = vadd.f32 %v2909, %v3068
    %v3070 = vpop.f32.mrb[0].mxu0
    %v3071 = vadd.f32 %v2910, %v3070
    %v3072 = vpop.f32.mrb[0].mxu0
    %v3073 = vpop.f32.mrb[0].mxu0
    %3074 = vdwg.mxu0
    %v3075 = vxor.u32 %v2946, 2147483648
    %v3076 = vxor.u32 %v2948, 2147483648
    %v3077 = vmul.f32 %v3075, 1.442695
    %v3078 = vpow.pop %v3077
    %v3079 = vmul.f32 %v3076, 1.442695
    %v3080 = vpow.pop %v3079
    %v3081 = vadd.f32 %v3078, 1.0
    %v3082 = vadd.f32 %v3080, 1.0
    %v3083 = vrcp.pop %v3081
    %v3084 = vmul.f32 1.0, %v3083
    %v3085 = vrcp.pop %v3082
    %v3086 = vmul.f32 1.0, %v3085
    %v3087 = vxor.u32 %v2987, 2147483648
    %v3088 = vxor.u32 %v2989, 2147483648
    %v3089 = vmul.f32 %v3087, 1.442695
    %v3090 = vpow.pop %v3089
    %v3091 = vmul.f32 %v3088, 1.442695
    %v3092 = vpow.pop %v3091
    %v3093 = vadd.f32 %v3090, 1.0
    %v3094 = vadd.f32 %v3092, 1.0
    %v3095 = vrcp.pop %v3093
    %v3096 = vmul.f32 1.0, %v3095
    %v3097 = vrcp.pop %v3094
    %v3098 = vmul.f32 1.0, %v3097
    %v3099 = vtanh.pop %v3028
    %v3100 = vtanh.pop %v3030
    %v3101 = vxor.u32 %v3069, 2147483648
    %v3102 = vxor.u32 %v3071, 2147483648
    %v3103 = vmul.f32 %v3101, 1.442695
    %v3104 = vpow.pop %v3103
    %v3105 = vmul.f32 %v3102, 1.442695
    %v3106 = vpow.pop %v3105
    %v3107 = vadd.f32 %v3104, 1.0
    %v3108 = vadd.f32 %v3106, 1.0
    %v3109 = vrcp.pop %v3107
    %v3110 = vmul.f32 1.0, %v3109
    %v3111 = vrcp.pop %v3108
    %v3112 = vmul.f32 1.0, %v3111
    %v3113 = vmul.f32 %v3096, %v2893
    %v3114 = vmul.f32 %v3098, %v2894
    %v3115 = vmul.f32 %v3084, %v3099
    %v3116 = vmul.f32 %v3086, %v3100
    %v3117 = vadd.f32 %v3113, %v3115
    %v3118 = vadd.f32 %v3114, %v3116
    %v3119 = vtanh.pop %v3117
    %v3120 = vtanh.pop %v3118
    %v3121 = vmul.f32 %v3110, %v3119
    %v3122 = vmul.f32 %v3112, %v3120
    %3123 = vst [vmem:[%s4 + $0x70] sm:$0xff] %v3121
    %3124 = vst [vmem:[%s4 + $0x8] sm:$0xff] %v3122
    // Predicated region
    $region22: #{rnn_sequential_encoder.1} parent=1 // pred_check
      _
    $region23: #{rnn_sequential_encoder.1} parent=1 // pred_check_branch
      %3126 = sbr.rel (0) target = $region25
    $region24: #{rnn_sequential_encoder.1} parent=1 // pred_region
      _
    $region25: #{rnn_sequential_encoder.1} parent=1 // pred_fallthru
      _
    // Predicated region
    $region26: #{rnn_sequential_encoder.1} parent=1 // pred_check
      _
    $region27: #{rnn_sequential_encoder.1} parent=1 // pred_check_branch
      %3128 = sbr.rel (0) target = $region29
    $region28: #{rnn_sequential_encoder.1} parent=1 // pred_region
      _
    $region29: #{rnn_sequential_encoder.1} parent=1 // pred_fallthru
      _
    %3129 = vsyncpa [#allocation4], 1

</llo_original>
